<compile_context>
chip_gen: v5e
topology: v5e:2x2
jax: 0.10.0
libtpu: 0.0.40
codegen_flags: <defaults>
</compile_context>

<pallas_src>
import jax
import jax.numpy as jnp
import numpy as np
from jax.experimental import pallas as pl
from jax.experimental.pallas import tpu as pltpu


def _round_up(x, m):
    return ((x + m - 1) // m) * m


# ---------------------------------------------------------------------------
# Fused Bottleneck kernel: one (batch image, row tile) block per grid step.
# ---------------------------------------------------------------------------
def _bottleneck_kernel(x_ref, w1_ref, b1_ref, w2_ref, b2_ref, w3_ref, b3_ref,
                       o_ref):
    f32, bf16 = jnp.float32, jnp.bfloat16
    _, h, w, cin = x_ref.shape            # full image (single x DMA stream)
    _, th, _, cout = o_ref.shape          # output row tile
    cw = w1_ref.shape[1]
    wp = _round_up(w + 2, 8)              # 8-aligned padded row stride
    nrows = th * wp

    row0 = pl.program_id(1) * th

    # ---- x window: row tile + clamped 1-row halos (clamp == replicate in H) --
    x_main = x_ref[0, pl.ds(row0, th), :, :]                          # (TH,W,Cin) f32
    x_top = x_ref[0, pl.ds(jnp.maximum(row0 - 1, 0), 1), :, :]        # (1,W,Cin)
    x_bot = x_ref[0, pl.ds(jnp.minimum(row0 + th, h - 1), 1), :, :]   # (1,W,Cin)

    # ---- conv1 (1x1) + bn1 + relu, piecewise (no f32 Cin-wide concatenate) ---
    def conv1(xp, rows):
        y = jnp.dot(xp.reshape(rows * w, cin).astype(bf16), w1_ref[...],
                    preferred_element_type=f32)
        return jnp.maximum(y + b1_ref[...], 0.0).astype(bf16).reshape(rows, w, cw)

    o1_top = conv1(x_top, 1)
    o1_mid = conv1(x_main, th)
    o1_bot = conv1(x_bot, 1)

    # ---- assemble the replicate-padded slab: one H concat + one W concat -----
    # The trailing zero row keeps all nine tap windows statically in bounds;
    # the WP-(W+2) filler columns only ever feed discarded output rows.
    o1 = jnp.concatenate(
        [o1_top, o1_mid, o1_bot, jnp.zeros((1, w, cw), bf16)], axis=0)  # (TH+3,W,Cw)
    parts = [o1[:, :1, :], o1, o1[:, w - 1:w, :]]
    if wp > w + 2:
        parts.append(jnp.zeros((th + 3, wp - w - 2, cw), bf16))
    o1f = jnp.concatenate(parts, axis=1).reshape((th + 3) * wp, cw)

    # ---- conv2 (3x3) + bn2 + relu: nine 2-D MXU matmuls over contiguous row --
    # windows of the flat slab (ky*WP offsets are sublane aligned).
    acc = jnp.dot(o1f[0:nrows, :], w2_ref[0], preferred_element_type=f32)
    for t in range(1, 9):
        ky, kx = divmod(t, 3)
        off = ky * wp + kx
        acc = acc + jnp.dot(o1f[off:off + nrows, :], w2_ref[t],
                            preferred_element_type=f32)
    o2 = jnp.maximum(acc + b2_ref[...], 0.0).astype(bf16)              # (nrows,Cw)

    # drop junk padded columns BEFORE conv3 (cheap bf16 Cw-wide slab)
    o2 = o2.reshape(th, wp, cw)[:, :w, :].reshape(th * w, cw)

    # ---- conv3 (1x1) + bn3 + identity add + relu ------------------------------
    y3 = jnp.dot(o2, w3_ref[...], preferred_element_type=f32) + b3_ref[...]
    y3 = y3.reshape(th, w, cout) + x_main                              # residual, f32
    o_ref[0] = jnp.maximum(y3, 0.0).astype(o_ref.dtype)


# ---------------------------------------------------------------------------
# Tile sizing: largest divisor of H whose per-step VMEM estimate fits budget.
# ---------------------------------------------------------------------------
def _vmem_estimate(th, h, w, cin, cw, cout):
    """Rough per-step VMEM bytes: double-buffered operands + kernel temporaries."""
    wp = _round_up(w + 2, 8)
    weights = 2 * 2 * (cin * cw + 9 * cw * cw + cw * cout)   # bf16, 2 buffers
    x_img = 2 * 4 * h * w * cin                              # f32 image, 2 buffers
    out_t = 2 * 4 * th * w * cout                            # f32 out tile, 2 buffers
    x_win = 4 * (th + 2) * w * cin                           # f32 window copy
    o1 = 2 * 2 * (th + 3) * wp * cw                          # bf16 slab + concat temp
    acc = 4 * th * wp * cw                                   # f32 conv2 accumulator
    o2 = 2 * th * wp * cw + 2 * th * w * cw                  # bf16
    y3 = 4 * th * w * cout                                   # f32
    return weights + x_img + out_t + x_win + o1 + acc + o2 + y3


def _pick_tile_rows(n, h, w, cin, cw, cout, budget_bytes):
    divisors = [d for d in range(1, h + 1) if h % d == 0]
    fitting = [d for d in divisors
               if _vmem_estimate(d, h, w, cin, cw, cout) <= budget_bytes]
    th = max(fitting) if fitting else 1
    # v7x has two TensorCores per chip: keep >= 2 parallel grid steps if possible.
    if n * (h // th) < 2:
        halves = [d for d in fitting if h // d >= 2]
        if halves:
            th = max(halves)
    return th


# ---------------------------------------------------------------------------
# Wrappers
# ---------------------------------------------------------------------------
def bottleneck_forward_nhwc(x, fp, *, tile_rows=None,
                            vmem_budget_bytes=36 * 1024 * 1024):
    """x: (N, H, W, Cin) f32.  fp: folded params (bf16 weights, f32 biases)."""
    n, h, w, cin = x.shape
    cw = fp["w1"].shape[1]
    cout = fp["w3"].shape[1]
    if cin != cout:
        raise ValueError(
            "identity add requires inplanes == planes * 4 (no-downsample config)")

    if tile_rows is None:
        th = _pick_tile_rows(n, h, w, cin, cw, cout, vmem_budget_bytes)
    else:
        th = int(tile_rows)
        if h % th != 0:
            raise ValueError("tile_rows must divide H")
    nh = h // th

    est = _vmem_estimate(th, h, w, cin, cw, cout)
    vmem_limit = int(min(56 * 1024 * 1024, max(32 * 1024 * 1024, 2 * est)))

    return pl.pallas_call(
        _bottleneck_kernel,
        out_shape=jax.ShapeDtypeStruct((n, h, w, cout), x.dtype),
        grid=(n, nh),
        in_specs=[
            # Full image; the block index only depends on b, so consecutive row
            # tiles reuse the resident copy (one HBM read of x per image).
            pl.BlockSpec((1, h, w, cin), lambda b, i: (b, 0, 0, 0)),
            pl.BlockSpec((cin, cw), lambda b, i: (0, 0)),       # w1 (bn1 folded)
            pl.BlockSpec((1, cw), lambda b, i: (0, 0)),         # b1
            pl.BlockSpec((9, cw, cw), lambda b, i: (0, 0, 0)),  # w2 taps (bn2 folded)
            pl.BlockSpec((1, cw), lambda b, i: (0, 0)),         # b2
            pl.BlockSpec((cw, cout), lambda b, i: (0, 0)),      # w3 (bn3 folded)
            pl.BlockSpec((1, cout), lambda b, i: (0, 0)),       # b3
        ],
        out_specs=pl.BlockSpec((1, th, w, cout), lambda b, i: (b, i, 0, 0)),
        compiler_params=pltpu.CompilerParams(
            dimension_semantics=("parallel", "parallel"),
            vmem_limit_bytes=vmem_limit),
    )(x, fp["w1"], fp["b1"], fp["w2"], fp["b2"], fp["w3"], fp["b3"])


def bottleneck_forward(x_nchw, params, *, tile_rows=None,
                       vmem_budget_bytes=36 * 1024 * 1024):
    """PyTorch-layout entry point (NCHW in / NCHW out)."""
    fp = fold_params(params)
    x = jnp.transpose(x_nchw, (0, 2, 3, 1))            # NCHW -> NHWC
    y = bottleneck_forward_nhwc(x, fp, tile_rows=tile_rows,
                                vmem_budget_bytes=vmem_budget_bytes)
    return jnp.transpose(y, (0, 3, 1, 2))              # NHWC -> NCHW


# ---------------------------------------------------------------------------
# Parameters: BN folded to (scale, bias); scale folded into weights, bf16 cast.
# ---------------------------------------------------------------------------
def _fold_bn(gamma, beta, mean, var, eps=1e-5):
    scale = gamma / jnp.sqrt(var + eps)
    bias = beta - mean * scale
    return scale[None, :], bias[None, :]


def fold_params(p):
    bf16 = jnp.bfloat16
    return dict(
        w1=(p["w1"] * p["s1"]).astype(bf16),                 # (Cin, Cw)
        w2=(p["w2"] * p["s2"][None, :, :]).astype(bf16),     # (9, Cw, Cw)
        w3=(p["w3"] * p["s3"]).astype(bf16),                 # (Cw, Cout)
        b1=p["b1"].astype(jnp.float32),                      # (1, Cw)
        b2=p["b2"].astype(jnp.float32),                      # (1, Cw)
        b3=p["b3"].astype(jnp.float32),                      # (1, Cout)
    )


def make_params(key, inplanes, planes):
    width = planes                      # base_width=64, groups=1
    cout = planes * 4                   # expansion = 4
    ks = jax.random.split(key, 6)
    f32 = jnp.float32

    w1 = jax.random.normal(ks[0], (inplanes, width), f32) * 0.05
    w2 = jax.random.normal(ks[1], (9, width, width), f32) * 0.05
    w3 = jax.random.normal(ks[2], (width, cout), f32) * 0.05

    def bn(k, c):
        kg, kb, km, kv = jax.random.split(k, 4)
        gamma = 1.0 + 0.1 * jax.random.normal(kg, (c,), f32)
        beta = 0.1 * jax.random.normal(kb, (c,), f32)
        mean = 0.1 * jax.random.normal(km, (c,), f32)
        var = 1.0 + 0.1 * jax.random.uniform(kv, (c,), f32)
        return _fold_bn(gamma, beta, mean, var)

    s1, b1 = bn(ks[3], width)
    s2, b2 = bn(ks[4], width)
    s3, b3 = bn(ks[5], cout)
    return dict(w1=w1, w2=w2, w3=w3, s1=s1, b1=b1, s2=s2, b2=b2, s3=s3, b3=b3)


# ---------------------------------------------------------------------------
# Pure-JAX reference (mirrors the kernel's bf16 matmul operands, f32 elsewhere)
# ---------------------------------------------------------------------------
def _ref_forward(x_nchw, params):
    f32, bf16 = jnp.float32, jnp.bfloat16
    fp = fold_params(params)
    w1 = fp["w1"].astype(f32)
    w2 = fp["w2"].astype(f32)
    w3 = fp["w3"].astype(f32)

    x = jnp.transpose(x_nchw, (0, 2, 3, 1)).astype(f32)
    n, h, w, _ = x.shape

    xb = x.astype(bf16).astype(f32)
    o1 = jnp.maximum(jnp.einsum("nhwc,cd->nhwd", xb, w1) + fp["b1"], 0.0)
    o1 = o1.astype(bf16).astype(f32)

    o1p = jnp.pad(o1, ((0, 0), (1, 1), (1, 1), (0, 0)), mode="edge")
    acc = 0.0
    for ky in range(3):
        for kx in range(3):
            acc = acc + jnp.einsum("nhwc,cd->nhwd",
                                   o1p[:, ky:ky + h, kx:kx + w, :],
                                   w2[ky * 3 + kx])
    o2 = jnp.maximum(acc + fp["b2"], 0.0).astype(bf16).astype(f32)

    o3 = jnp.einsum("nhwc,cd->nhwd", o2, w3) + fp["b3"] + x
    o3 = jnp.maximum(o3, 0.0)
    return jnp.transpose(o3, (0, 3, 1, 2))


if __name__ == "__main__":
    key = jax.random.PRNGKey(0)
    k_x, k_p = jax.random.split(key)

    planes = 32
    inplanes = planes * 4               # 128: identity add is shape-valid (no downsample)
    n, h, w = 2, 16, 16
    x = jax.random.normal(k_x, (n, inplanes, h, w), jnp.float32)   # NCHW

    params = make_params(k_p, inplanes, planes)
    ref = jax.block_until_ready(_ref_forward(x, params))

    # Default path: VMEM-budgeted tile (full H here -> grid (2, 1)).
    out = jax.block_until_ready(jax.jit(bottleneck_forward)(x, params))
    assert out.shape == (n, inplanes, h, w), out.shape
    np.testing.assert_allclose(np.asarray(out), np.asarray(ref),
                               rtol=2e-3, atol=2e-3)

    # Forced multi-tile path (grid (2, 4)): exercises the clamped-halo logic.
    out_tiled = jax.block_until_ready(bottleneck_forward(x, params, tile_rows=4))
    np.testing.assert_allclose(np.asarray(out_tiled), np.asarray(ref),
                               rtol=2e-3, atol=2e-3)

    print("KERNEL_OK")
</pallas_src>

<mosaic_0001>
module attributes {stable_mosaic.version = 11 : i64} {
  func.func @_bottleneck_kernel(%arg0: i32, %arg1: i32, %arg2: memref<1x16x16x128xf32, #tpu.memory_space<vmem>>, %arg3: memref<128x32xbf16, #tpu.memory_space<vmem>>, %arg4: memref<1x32xf32, #tpu.memory_space<vmem>>, %arg5: memref<9x32x32xbf16, #tpu.memory_space<vmem>>, %arg6: memref<1x32xf32, #tpu.memory_space<vmem>>, %arg7: memref<32x128xbf16, #tpu.memory_space<vmem>>, %arg8: memref<1x128xf32, #tpu.memory_space<vmem>>, %arg9: memref<1x16x16x128xf32, #tpu.memory_space<vmem>>) attributes {dimension_semantics = [#tpu.dimension_semantics<parallel>, #tpu.dimension_semantics<parallel>], iteration_bounds = array<i64: 2, 1>, scalar_prefetch = 0 : i64, scratch_operands = 0 : i64, tpu.core_type = #tpu.core_type<tc>, window_params = [{transform_indices = @transform_0, window_bounds = array<i64: 1, 16, 16, 128>}, {pipeline_mode = #tpu.pipeline_mode<synchronous>, transform_indices = @transform_1, window_bounds = array<i64: 128, 32>}, {pipeline_mode = #tpu.pipeline_mode<synchronous>, transform_indices = @transform_2, window_bounds = array<i64: 1, 32>}, {pipeline_mode = #tpu.pipeline_mode<synchronous>, transform_indices = @transform_3, window_bounds = array<i64: 9, 32, 32>}, {pipeline_mode = #tpu.pipeline_mode<synchronous>, transform_indices = @transform_4, window_bounds = array<i64: 1, 32>}, {pipeline_mode = #tpu.pipeline_mode<synchronous>, transform_indices = @transform_5, window_bounds = array<i64: 32, 128>}, {pipeline_mode = #tpu.pipeline_mode<synchronous>, transform_indices = @transform_6, window_bounds = array<i64: 1, 128>}, {transform_indices = @transform_7, window_bounds = array<i64: 1, 16, 16, 128>}]} {
    %c16_i32 = arith.constant 16 : i32
    %0 = arith.muli %arg1, %c16_i32 : i32
    %c0 = arith.constant 0 : index
    %1 = arith.index_cast %0 : i32 to index
    %c0_0 = arith.constant 0 : index
    %c0_1 = arith.constant 0 : index
    %2 = vector.load %arg2[%c0, %1, %c0_0, %c0_1] : memref<1x16x16x128xf32, #tpu.memory_space<vmem>>, vector<1x16x16x128xf32>
    %3 = vector.shape_cast %2 : vector<1x16x16x128xf32> to vector<16x16x128xf32>
    %c1_i32 = arith.constant 1 : i32
    %4 = arith.subi %0, %c1_i32 : i32
    %c0_i32 = arith.constant 0 : i32
    %5 = arith.maxsi %4, %c0_i32 : i32
    %c0_2 = arith.constant 0 : index
    %6 = arith.index_cast %5 : i32 to index
    %c0_3 = arith.constant 0 : index
    %c0_4 = arith.constant 0 : index
    %7 = vector.load %arg2[%c0_2, %6, %c0_3, %c0_4] : memref<1x16x16x128xf32, #tpu.memory_space<vmem>>, vector<1x1x16x128xf32>
    %8 = vector.shape_cast %7 : vector<1x1x16x128xf32> to vector<1x16x128xf32>
    %c16_i32_5 = arith.constant 16 : i32
    %9 = arith.addi %0, %c16_i32_5 : i32
    %c15_i32 = arith.constant 15 : i32
    %10 = arith.minsi %9, %c15_i32 : i32
    %c0_6 = arith.constant 0 : index
    %11 = arith.index_cast %10 : i32 to index
    %c0_7 = arith.constant 0 : index
    %c0_8 = arith.constant 0 : index
    %12 = vector.load %arg2[%c0_6, %11, %c0_7, %c0_8] : memref<1x16x16x128xf32, #tpu.memory_space<vmem>>, vector<1x1x16x128xf32>
    %13 = vector.shape_cast %12 : vector<1x1x16x128xf32> to vector<1x16x128xf32>
    %14 = vector.shape_cast %8 : vector<1x16x128xf32> to vector<16x128xf32>
    %15 = arith.truncf %14 : vector<16x128xf32> to vector<16x128xbf16>
    %c0_9 = arith.constant 0 : index
    %c0_10 = arith.constant 0 : index
    %16 = vector.load %arg3[%c0_9, %c0_10] : memref<128x32xbf16, #tpu.memory_space<vmem>>, vector<128x32xbf16>
    %cst = arith.constant dense<0.000000e+00> : vector<16x32xf32>
    %17 = tpu.matmul %15, %16, %cst {dimension_numbers = #tpu.dot_dimension_numbers<[1], [0], [0], [1], [0, 0, 1, 1], [], []>} : vector<16x128xbf16>, vector<128x32xbf16>, vector<16x32xf32> -> vector<16x32xf32>
    %c0_11 = arith.constant 0 : index
    %c0_12 = arith.constant 0 : index
    %18 = vector.load %arg4[%c0_11, %c0_12] : memref<1x32xf32, #tpu.memory_space<vmem>>, vector<1x32xf32>
    %19 = vector.broadcast %18 : vector<1x32xf32> to vector<16x32xf32>
    %20 = arith.addf %17, %19 : vector<16x32xf32>
    %cst_13 = arith.constant 0.000000e+00 : f32
    %21 = vector.broadcast %cst_13 : f32 to vector<16x32xf32>
    %22 = arith.maximumf %20, %21 : vector<16x32xf32>
    %23 = arith.truncf %22 : vector<16x32xf32> to vector<16x32xbf16>
    %24 = vector.shape_cast %23 : vector<16x32xbf16> to vector<1x16x32xbf16>
    %25 = vector.shape_cast %3 : vector<16x16x128xf32> to vector<256x128xf32>
    %26 = arith.truncf %25 : vector<256x128xf32> to vector<256x128xbf16>
    %c0_14 = arith.constant 0 : index
    %c0_15 = arith.constant 0 : index
    %27 = vector.load %arg3[%c0_14, %c0_15] : memref<128x32xbf16, #tpu.memory_space<vmem>>, vector<128x32xbf16>
    %cst_16 = arith.constant dense<0.000000e+00> : vector<256x32xf32>
    %28 = tpu.matmul %26, %27, %cst_16 {dimension_numbers = #tpu.dot_dimension_numbers<[1], [0], [0], [1], [0, 0, 1, 1], [], []>} : vector<256x128xbf16>, vector<128x32xbf16>, vector<256x32xf32> -> vector<256x32xf32>
    %c0_17 = arith.constant 0 : index
    %c0_18 = arith.constant 0 : index
    %29 = vector.load %arg4[%c0_17, %c0_18] : memref<1x32xf32, #tpu.memory_space<vmem>>, vector<1x32xf32>
    %30 = vector.broadcast %29 : vector<1x32xf32> to vector<256x32xf32>
    %31 = arith.addf %28, %30 : vector<256x32xf32>
    %cst_19 = arith.constant 0.000000e+00 : f32
    %32 = vector.broadcast %cst_19 : f32 to vector<256x32xf32>
    %33 = arith.maximumf %31, %32 : vector<256x32xf32>
    %34 = arith.truncf %33 : vector<256x32xf32> to vector<256x32xbf16>
    %35 = vector.shape_cast %34 : vector<256x32xbf16> to vector<16x16x32xbf16>
    %36 = vector.shape_cast %13 : vector<1x16x128xf32> to vector<16x128xf32>
    %37 = arith.truncf %36 : vector<16x128xf32> to vector<16x128xbf16>
    %c0_20 = arith.constant 0 : index
    %c0_21 = arith.constant 0 : index
    %38 = vector.load %arg3[%c0_20, %c0_21] : memref<128x32xbf16, #tpu.memory_space<vmem>>, vector<128x32xbf16>
    %cst_22 = arith.constant dense<0.000000e+00> : vector<16x32xf32>
    %39 = tpu.matmul %37, %38, %cst_22 {dimension_numbers = #tpu.dot_dimension_numbers<[1], [0], [0], [1], [0, 0, 1, 1], [], []>} : vector<16x128xbf16>, vector<128x32xbf16>, vector<16x32xf32> -> vector<16x32xf32>
    %c0_23 = arith.constant 0 : index
    %c0_24 = arith.constant 0 : index
    %40 = vector.load %arg4[%c0_23, %c0_24] : memref<1x32xf32, #tpu.memory_space<vmem>>, vector<1x32xf32>
    %41 = vector.broadcast %40 : vector<1x32xf32> to vector<16x32xf32>
    %42 = arith.addf %39, %41 : vector<16x32xf32>
    %cst_25 = arith.constant 0.000000e+00 : f32
    %43 = vector.broadcast %cst_25 : f32 to vector<16x32xf32>
    %44 = arith.maximumf %42, %43 : vector<16x32xf32>
    %45 = arith.truncf %44 : vector<16x32xf32> to vector<16x32xbf16>
    %46 = vector.shape_cast %45 : vector<16x32xbf16> to vector<1x16x32xbf16>
    %cst_26 = arith.constant 0.000000e+00 : bf16
    %47 = vector.broadcast %cst_26 : bf16 to vector<1x16x32xbf16>
    %48 = tpu.concatenate %24, %35, %46, %47 in 0 : vector<1x16x32xbf16>, vector<16x16x32xbf16>, vector<1x16x32xbf16>, vector<1x16x32xbf16> -> vector<19x16x32xbf16>
    %49 = vector.extract_strided_slice %48 {offsets = [0, 0, 0], sizes = [19, 1, 32], strides = [1, 1, 1]} : vector<19x16x32xbf16> to vector<19x1x32xbf16>
    %50 = vector.extract_strided_slice %48 {offsets = [0, 15, 0], sizes = [19, 1, 32], strides = [1, 1, 1]} : vector<19x16x32xbf16> to vector<19x1x32xbf16>
    %cst_27 = arith.constant 0.000000e+00 : bf16
    %51 = vector.broadcast %cst_27 : bf16 to vector<19x6x32xbf16>
    %52 = tpu.concatenate %49, %48, %50, %51 in 1 : vector<19x1x32xbf16>, vector<19x16x32xbf16>, vector<19x1x32xbf16>, vector<19x6x32xbf16> -> vector<19x24x32xbf16>
    %53 = vector.shape_cast %52 : vector<19x24x32xbf16> to vector<456x32xbf16>
    %54 = vector.extract_strided_slice %53 {offsets = [0, 0], sizes = [384, 32], strides = [1, 1]} : vector<456x32xbf16> to vector<384x32xbf16>
    %c0_28 = arith.constant 0 : index
    %c0_29 = arith.constant 0 : index
    %c0_30 = arith.constant 0 : index
    %55 = vector.load %arg5[%c0_28, %c0_29, %c0_30] : memref<9x32x32xbf16, #tpu.memory_space<vmem>>, vector<1x32x32xbf16>
    %56 = vector.shape_cast %55 : vector<1x32x32xbf16> to vector<32x32xbf16>
    %cst_31 = arith.constant dense<0.000000e+00> : vector<384x32xf32>
    %57 = tpu.matmul %54, %56, %cst_31 {dimension_numbers = #tpu.dot_dimension_numbers<[1], [0], [0], [1], [0, 0, 1, 1], [], []>} : vector<384x32xbf16>, vector<32x32xbf16>, vector<384x32xf32> -> vector<384x32xf32>
    %58 = vector.extract_strided_slice %53 {offsets = [1, 0], sizes = [384, 32], strides = [1, 1]} : vector<456x32xbf16> to vector<384x32xbf16>
    %c1 = arith.constant 1 : index
    %c0_32 = arith.constant 0 : index
    %c0_33 = arith.constant 0 : index
    %59 = vector.load %arg5[%c1, %c0_32, %c0_33] : memref<9x32x32xbf16, #tpu.memory_space<vmem>>, vector<1x32x32xbf16>
    %60 = vector.shape_cast %59 : vector<1x32x32xbf16> to vector<32x32xbf16>
    %cst_34 = arith.constant dense<0.000000e+00> : vector<384x32xf32>
    %61 = tpu.matmul %58, %60, %cst_34 {dimension_numbers = #tpu.dot_dimension_numbers<[1], [0], [0], [1], [0, 0, 1, 1], [], []>} : vector<384x32xbf16>, vector<32x32xbf16>, vector<384x32xf32> -> vector<384x32xf32>
    %62 = arith.addf %57, %61 : vector<384x32xf32>
    %63 = vector.extract_strided_slice %53 {offsets = [2, 0], sizes = [384, 32], strides = [1, 1]} : vector<456x32xbf16> to vector<384x32xbf16>
    %c2 = arith.constant 2 : index
    %c0_35 = arith.constant 0 : index
    %c0_36 = arith.constant 0 : index
    %64 = vector.load %arg5[%c2, %c0_35, %c0_36] : memref<9x32x32xbf16, #tpu.memory_space<vmem>>, vector<1x32x32xbf16>
    %65 = vector.shape_cast %64 : vector<1x32x32xbf16> to vector<32x32xbf16>
    %cst_37 = arith.constant dense<0.000000e+00> : vector<384x32xf32>
    %66 = tpu.matmul %63, %65, %cst_37 {dimension_numbers = #tpu.dot_dimension_numbers<[1], [0], [0], [1], [0, 0, 1, 1], [], []>} : vector<384x32xbf16>, vector<32x32xbf16>, vector<384x32xf32> -> vector<384x32xf32>
    %67 = arith.addf %62, %66 : vector<384x32xf32>
    %68 = vector.extract_strided_slice %53 {offsets = [24, 0], sizes = [384, 32], strides = [1, 1]} : vector<456x32xbf16> to vector<384x32xbf16>
    %c3 = arith.constant 3 : index
    %c0_38 = arith.constant 0 : index
    %c0_39 = arith.constant 0 : index
    %69 = vector.load %arg5[%c3, %c0_38, %c0_39] : memref<9x32x32xbf16, #tpu.memory_space<vmem>>, vector<1x32x32xbf16>
    %70 = vector.shape_cast %69 : vector<1x32x32xbf16> to vector<32x32xbf16>
    %cst_40 = arith.constant dense<0.000000e+00> : vector<384x32xf32>
    %71 = tpu.matmul %68, %70, %cst_40 {dimension_numbers = #tpu.dot_dimension_numbers<[1], [0], [0], [1], [0, 0, 1, 1], [], []>} : vector<384x32xbf16>, vector<32x32xbf16>, vector<384x32xf32> -> vector<384x32xf32>
    %72 = arith.addf %67, %71 : vector<384x32xf32>
    %73 = vector.extract_strided_slice %53 {offsets = [25, 0], sizes = [384, 32], strides = [1, 1]} : vector<456x32xbf16> to vector<384x32xbf16>
    %c4 = arith.constant 4 : index
    %c0_41 = arith.constant 0 : index
    %c0_42 = arith.constant 0 : index
    %74 = vector.load %arg5[%c4, %c0_41, %c0_42] : memref<9x32x32xbf16, #tpu.memory_space<vmem>>, vector<1x32x32xbf16>
    %75 = vector.shape_cast %74 : vector<1x32x32xbf16> to vector<32x32xbf16>
    %cst_43 = arith.constant dense<0.000000e+00> : vector<384x32xf32>
    %76 = tpu.matmul %73, %75, %cst_43 {dimension_numbers = #tpu.dot_dimension_numbers<[1], [0], [0], [1], [0, 0, 1, 1], [], []>} : vector<384x32xbf16>, vector<32x32xbf16>, vector<384x32xf32> -> vector<384x32xf32>
    %77 = arith.addf %72, %76 : vector<384x32xf32>
    %78 = vector.extract_strided_slice %53 {offsets = [26, 0], sizes = [384, 32], strides = [1, 1]} : vector<456x32xbf16> to vector<384x32xbf16>
    %c5 = arith.constant 5 : index
    %c0_44 = arith.constant 0 : index
    %c0_45 = arith.constant 0 : index
    %79 = vector.load %arg5[%c5, %c0_44, %c0_45] : memref<9x32x32xbf16, #tpu.memory_space<vmem>>, vector<1x32x32xbf16>
    %80 = vector.shape_cast %79 : vector<1x32x32xbf16> to vector<32x32xbf16>
    %cst_46 = arith.constant dense<0.000000e+00> : vector<384x32xf32>
    %81 = tpu.matmul %78, %80, %cst_46 {dimension_numbers = #tpu.dot_dimension_numbers<[1], [0], [0], [1], [0, 0, 1, 1], [], []>} : vector<384x32xbf16>, vector<32x32xbf16>, vector<384x32xf32> -> vector<384x32xf32>
    %82 = arith.addf %77, %81 : vector<384x32xf32>
    %83 = vector.extract_strided_slice %53 {offsets = [48, 0], sizes = [384, 32], strides = [1, 1]} : vector<456x32xbf16> to vector<384x32xbf16>
    %c6 = arith.constant 6 : index
    %c0_47 = arith.constant 0 : index
    %c0_48 = arith.constant 0 : index
    %84 = vector.load %arg5[%c6, %c0_47, %c0_48] : memref<9x32x32xbf16, #tpu.memory_space<vmem>>, vector<1x32x32xbf16>
    %85 = vector.shape_cast %84 : vector<1x32x32xbf16> to vector<32x32xbf16>
    %cst_49 = arith.constant dense<0.000000e+00> : vector<384x32xf32>
    %86 = tpu.matmul %83, %85, %cst_49 {dimension_numbers = #tpu.dot_dimension_numbers<[1], [0], [0], [1], [0, 0, 1, 1], [], []>} : vector<384x32xbf16>, vector<32x32xbf16>, vector<384x32xf32> -> vector<384x32xf32>
    %87 = arith.addf %82, %86 : vector<384x32xf32>
    %88 = vector.extract_strided_slice %53 {offsets = [49, 0], sizes = [384, 32], strides = [1, 1]} : vector<456x32xbf16> to vector<384x32xbf16>
    %c7 = arith.constant 7 : index
    %c0_50 = arith.constant 0 : index
    %c0_51 = arith.constant 0 : index
    %89 = vector.load %arg5[%c7, %c0_50, %c0_51] : memref<9x32x32xbf16, #tpu.memory_space<vmem>>, vector<1x32x32xbf16>
    %90 = vector.shape_cast %89 : vector<1x32x32xbf16> to vector<32x32xbf16>
    %cst_52 = arith.constant dense<0.000000e+00> : vector<384x32xf32>
    %91 = tpu.matmul %88, %90, %cst_52 {dimension_numbers = #tpu.dot_dimension_numbers<[1], [0], [0], [1], [0, 0, 1, 1], [], []>} : vector<384x32xbf16>, vector<32x32xbf16>, vector<384x32xf32> -> vector<384x32xf32>
    %92 = arith.addf %87, %91 : vector<384x32xf32>
    %93 = vector.extract_strided_slice %53 {offsets = [50, 0], sizes = [384, 32], strides = [1, 1]} : vector<456x32xbf16> to vector<384x32xbf16>
    %c8 = arith.constant 8 : index
    %c0_53 = arith.constant 0 : index
    %c0_54 = arith.constant 0 : index
    %94 = vector.load %arg5[%c8, %c0_53, %c0_54] : memref<9x32x32xbf16, #tpu.memory_space<vmem>>, vector<1x32x32xbf16>
    %95 = vector.shape_cast %94 : vector<1x32x32xbf16> to vector<32x32xbf16>
    %cst_55 = arith.constant dense<0.000000e+00> : vector<384x32xf32>
    %96 = tpu.matmul %93, %95, %cst_55 {dimension_numbers = #tpu.dot_dimension_numbers<[1], [0], [0], [1], [0, 0, 1, 1], [], []>} : vector<384x32xbf16>, vector<32x32xbf16>, vector<384x32xf32> -> vector<384x32xf32>
    %97 = arith.addf %92, %96 : vector<384x32xf32>
    %c0_56 = arith.constant 0 : index
    %c0_57 = arith.constant 0 : index
    %98 = vector.load %arg6[%c0_56, %c0_57] : memref<1x32xf32, #tpu.memory_space<vmem>>, vector<1x32xf32>
    %99 = vector.broadcast %98 : vector<1x32xf32> to vector<384x32xf32>
    %100 = arith.addf %97, %99 : vector<384x32xf32>
    %cst_58 = arith.constant 0.000000e+00 : f32
    %101 = vector.broadcast %cst_58 : f32 to vector<384x32xf32>
    %102 = arith.maximumf %100, %101 : vector<384x32xf32>
    %103 = arith.truncf %102 : vector<384x32xf32> to vector<384x32xbf16>
    %104 = vector.shape_cast %103 : vector<384x32xbf16> to vector<16x24x32xbf16>
    %105 = vector.extract_strided_slice %104 {offsets = [0, 0, 0], sizes = [16, 16, 32], strides = [1, 1, 1]} : vector<16x24x32xbf16> to vector<16x16x32xbf16>
    %106 = vector.shape_cast %105 : vector<16x16x32xbf16> to vector<256x32xbf16>
    %c0_59 = arith.constant 0 : index
    %c0_60 = arith.constant 0 : index
    %107 = vector.load %arg7[%c0_59, %c0_60] : memref<32x128xbf16, #tpu.memory_space<vmem>>, vector<32x128xbf16>
    %cst_61 = arith.constant dense<0.000000e+00> : vector<256x128xf32>
    %108 = tpu.matmul %106, %107, %cst_61 {dimension_numbers = #tpu.dot_dimension_numbers<[1], [0], [0], [1], [0, 0, 1, 1], [], []>} : vector<256x32xbf16>, vector<32x128xbf16>, vector<256x128xf32> -> vector<256x128xf32>
    %c0_62 = arith.constant 0 : index
    %c0_63 = arith.constant 0 : index
    %109 = vector.load %arg8[%c0_62, %c0_63] : memref<1x128xf32, #tpu.memory_space<vmem>>, vector<1x128xf32>
    %110 = vector.broadcast %109 : vector<1x128xf32> to vector<256x128xf32>
    %111 = arith.addf %108, %110 : vector<256x128xf32>
    %112 = vector.shape_cast %111 : vector<256x128xf32> to vector<16x16x128xf32>
    %113 = arith.addf %112, %3 : vector<16x16x128xf32>
    %cst_64 = arith.constant 0.000000e+00 : f32
    %114 = vector.broadcast %cst_64 : f32 to vector<16x16x128xf32>
    %115 = arith.maximumf %113, %114 : vector<16x16x128xf32>
    %c0_65 = arith.constant 0 : index
    %c0_66 = arith.constant 0 : index
    %c0_67 = arith.constant 0 : index
    %c0_68 = arith.constant 0 : index
    %116 = vector.load %arg9[%c0_65, %c0_66, %c0_67, %c0_68] : memref<1x16x16x128xf32, #tpu.memory_space<vmem>>, vector<1x16x16x128xf32>
    %117 = vector.shape_cast %116 : vector<1x16x16x128xf32> to vector<16x16x128xf32>
    %118 = vector.shape_cast %115 : vector<16x16x128xf32> to vector<1x16x16x128xf32>
    tpu.vector_store %arg9[%c0_65, %c0_66, %c0_67, %c0_68], %118 {strides = array<i32>} : memref<1x16x16x128xf32, #tpu.memory_space<vmem>>, vector<1x16x16x128xf32>,
    return
  }
  func.func @transform_0(%arg0: i32, %arg1: i32) -> (i32, i32, i32, i32) {
    %c0_i32 = arith.constant 0 : i32
    %c0_i32_0 = arith.constant 0 : i32
    %c0_i32_1 = arith.constant 0 : i32
    %c0_i32_2 = arith.constant 0 : i32
    return %arg0, %c0_i32, %c0_i32_0, %c0_i32_1 : i32, i32, i32, i32
  }
  func.func @transform_1(%arg0: i32, %arg1: i32) -> (i32, i32) {
    %c0_i32 = arith.constant 0 : i32
    %c0_i32_0 = arith.constant 0 : i32
    %c0_i32_1 = arith.constant 0 : i32
    return %c0_i32, %c0_i32_0 : i32, i32
  }
  func.func @transform_2(%arg0: i32, %arg1: i32) -> (i32, i32) {
    %c0_i32 = arith.constant 0 : i32
    %c0_i32_0 = arith.constant 0 : i32
    %c0_i32_1 = arith.constant 0 : i32
    return %c0_i32, %c0_i32_0 : i32, i32
  }
  func.func @transform_3(%arg0: i32, %arg1: i32) -> (i32, i32, i32) {
    %c0_i32 = arith.constant 0 : i32
    %c0_i32_0 = arith.constant 0 : i32
    %c0_i32_1 = arith.constant 0 : i32
    %c0_i32_2 = arith.constant 0 : i32
    return %c0_i32, %c0_i32_0, %c0_i32_1 : i32, i32, i32
  }
  func.func @transform_4(%arg0: i32, %arg1: i32) -> (i32, i32) {
    %c0_i32 = arith.constant 0 : i32
    %c0_i32_0 = arith.constant 0 : i32
    %c0_i32_1 = arith.constant 0 : i32
    return %c0_i32, %c0_i32_0 : i32, i32
  }
  func.func @transform_5(%arg0: i32, %arg1: i32) -> (i32, i32) {
    %c0_i32 = arith.constant 0 : i32
    %c0_i32_0 = arith.constant 0 : i32
    %c0_i32_1 = arith.constant 0 : i32
    return %c0_i32, %c0_i32_0 : i32, i32
  }
  func.func @transform_6(%arg0: i32, %arg1: i32) -> (i32, i32) {
    %c0_i32 = arith.constant 0 : i32
    %c0_i32_0 = arith.constant 0 : i32
    %c0_i32_1 = arith.constant 0 : i32
    return %c0_i32, %c0_i32_0 : i32, i32
  }
  func.func @transform_7(%arg0: i32, %arg1: i32) -> (i32, i32, i32, i32) {
    %c0_i32 = arith.constant 0 : i32
    %c0_i32_0 = arith.constant 0 : i32
    %c0_i32_1 = arith.constant 0 : i32
    return %arg0, %arg1, %c0_i32, %c0_i32_0 : i32, i32, i32, i32
  }
}

</mosaic_0001>

<llo_original>
// kernel: bottleneck_forward.1
$region0: #{bottleneck_forward.1}
  #allocation0 [shape = 'u32[]', space=smem, size = 0x4, offset = 0x4, fixed_abs, tag = 'smem constant byte address 0x4 - core index']
  #allocation1 [shape = 'u32[72,128]{1,0:T(1,128)}', space=vmem, size = 0x9000, scoped, tag = 'internal scratch']
  %s0 = inlined_call_operand.vmem [shape: f32[2,16,16,128], index: 0, kind: input, shape index: {}]
  %s1 = inlined_call_operand.vmem [shape: bf16[128,32], index: 1, kind: input, shape index: {}]
  %s2 = inlined_call_operand.vmem [shape: f32[1,32], index: 2, kind: input, shape index: {}]
  %s3 = inlined_call_operand.vmem [shape: bf16[9,32,32], index: 3, kind: input, shape index: {}]
  %s4 = inlined_call_operand.vmem [shape: f32[1,32], index: 4, kind: input, shape index: {}]
  %s5 = inlined_call_operand.vmem [shape: bf16[32,128], index: 5, kind: input, shape index: {}]
  %s6 = inlined_call_operand.vmem [shape: f32[1,128], index: 6, kind: input, shape index: {}]
  %s7 = inlined_call_operand.hbm [shape: f32[2,16,16,128], index: 7, kind: output, shape index: {}]
  %s8 = sld [smem:[#allocation0]]
  $region61: #{bottleneck_forward.1} parent=0
    _
  %s10 = ssub.s32 1, %s8
  %s11 = scalar_select 0, %s10, %s8
  $region1: #{bottleneck_forward.1} parent=0
    #allocation2 [shape = 'u8[262144]{0}', space=vmem, size = 0x40000, scoped, tag = 'output window, operand 0']
    #allocation3 [shape = 's32[2]{0}', space=sflag, size = 0x8, scoped, tag = 'scoped memory for bottleneck_forward.1']
    %12 = vsyncpa [#allocation3], 0
    %s13 = scalar_lea.sflag [#allocation3], 1
    %14 = vsyncpa %s13, 0
    loop: start=0, step=1, limit=4
    $region2: #{bottleneck_forward.1} parent=1 // loop_pre_header
      _
    $region3: #{bottleneck_forward.1} parent=1 // loop_header
      %s16 = sphi 0, %s20
      %p17 = scmp.ge.s32.totalorder %s16, 4
      %s23 = sphi 0, %s35
      %s24 = sphi 0, %s31
      %s25 = sphi 0, %s23
      %s26 = sphi 0, %s24
      %s27 = sphi 0, %s25
      %s28 = sphi 0, %s26
      %s38 = sphi 0, %s40
      %s41 = sphi 0, %s38
      %s42 = sphi 0, %s41
      %s58 = sphi 0, %s42
      %s62 = sphi 0, %s62
      %s64 = sphi 0, %s62
      %s65 = sphi 0, %s64
      %s79 = sphi 0, %s65
      %s83 = sphi 0, %s83
      %s85 = sphi 0, %s83
      %s86 = sphi 0, %s85
      %s100 = sphi 0, %s86
      %s104 = sphi 0, %s104
      %s106 = sphi 0, %s104
      %s107 = sphi 0, %s106
      %s121 = sphi 0, %s107
      %s125 = sphi 0, %s125
      %s127 = sphi 0, %s125
      %s128 = sphi 0, %s127
      %s142 = sphi 0, %s128
      %s146 = sphi 0, %s146
      %s148 = sphi 0, %s146
      %s149 = sphi 0, %s148
      %s163 = sphi 0, %s149
      %s167 = sphi 0, %s167
      %s169 = sphi 0, %s167
      %s170 = sphi 0, %s169
      %s184 = sphi 0, %s170
      %s192 = sphi 0, %s194
      %s195 = sphi 0, %s192
      %s196 = sphi 0, %s195
      %s212 = sphi 0, %s196
    $region4: #{bottleneck_forward.1} parent=1 // loop_header_branch
      %19 = sbr.rel (%p17) target = $region8
    $region5: #{bottleneck_forward.1} parent=1 // loop_body
      %s21 = ssub.s32 %s16, 1
      %s22 = ssub.s32 %s16, 2
      %s29 = sadd.s32 1, %s24
      %p30 = scmp.ge.s32.totalorder %s29, 1
      %s31 = scalar_select %p30, 0, %s29
      %s32 = sadd.s32 1, %s23
      %s33 = scalar_select %p30, %s32, %s23
      %p34 = scmp.ge.s32.totalorder %s33, 2
      %s35 = scalar_select %p34, 0, %s33
      %s36 = ssub.s32 %s23, %s35
      %p37 = scmp.eq.s32.totalorder %s36, 0
      %s39 = sadd.s32 %s38, 1
      %s40 = scalar_select %p37, %s38, %s39
      %p43 = pneg %p37
      %p44 = scmp.eq.s32.totalorder %s16, 1
      %p45 = por %p43, %p44
      %p46 = scmp.ne.s32.totalorder %s38, %s41
      %p47 = scmp.eq.s32.totalorder %s16, 0
      %p48 = por %p46, %p47
      %p49 = scmp.ne.s32.totalorder %s38, %s41
      %p50 = scmp.eq.s32.totalorder %s21, 1
      %p51 = por %p49, %p50
      %p52 = scmp.ne.s32.totalorder %s41, %s42
      %p53 = scmp.eq.s32.totalorder %s21, 0
      %p54 = por %p52, %p53
      %p55 = scmp.ne.s32.totalorder %s41, %s42
      %p56 = scmp.eq.s32.totalorder %s22, 1
      %p57 = por %p55, %p56
      %p59 = scmp.ne.s32.totalorder %s42, %s58
      %p60 = scmp.eq.s32.totalorder %s22, 0
      %p61 = por %p59, %p60
      %s63 = sadd.s32 %s62, 1
      %p66 = scmp.eq.s32.totalorder %s16, 1
      %p67 = scmp.ne.s32.totalorder %s62, %s64
      %p68 = scmp.eq.s32.totalorder %s16, 0
      %p69 = por %p67, %p68
      %p70 = scmp.ne.s32.totalorder %s62, %s64
      %p71 = scmp.eq.s32.totalorder %s21, 1
      %p72 = por %p70, %p71
      %p73 = scmp.ne.s32.totalorder %s64, %s65
      %p74 = scmp.eq.s32.totalorder %s21, 0
      %p75 = por %p73, %p74
      %p76 = scmp.ne.s32.totalorder %s64, %s65
      %p77 = scmp.eq.s32.totalorder %s22, 1
      %p78 = por %p76, %p77
      %p80 = scmp.ne.s32.totalorder %s65, %s79
      %p81 = scmp.eq.s32.totalorder %s22, 0
      %p82 = por %p80, %p81
      %s84 = sadd.s32 %s83, 1
      %p87 = scmp.eq.s32.totalorder %s16, 1
      %p88 = scmp.ne.s32.totalorder %s83, %s85
      %p89 = scmp.eq.s32.totalorder %s16, 0
      %p90 = por %p88, %p89
      %p91 = scmp.ne.s32.totalorder %s83, %s85
      %p92 = scmp.eq.s32.totalorder %s21, 1
      %p93 = por %p91, %p92
      %p94 = scmp.ne.s32.totalorder %s85, %s86
      %p95 = scmp.eq.s32.totalorder %s21, 0
      %p96 = por %p94, %p95
      %p97 = scmp.ne.s32.totalorder %s85, %s86
      %p98 = scmp.eq.s32.totalorder %s22, 1
      %p99 = por %p97, %p98
      %p101 = scmp.ne.s32.totalorder %s86, %s100
      %p102 = scmp.eq.s32.totalorder %s22, 0
      %p103 = por %p101, %p102
      %s105 = sadd.s32 %s104, 1
      %p108 = scmp.eq.s32.totalorder %s16, 1
      %p109 = scmp.ne.s32.totalorder %s104, %s106
      %p110 = scmp.eq.s32.totalorder %s16, 0
      %p111 = por %p109, %p110
      %p112 = scmp.ne.s32.totalorder %s104, %s106
      %p113 = scmp.eq.s32.totalorder %s21, 1
      %p114 = por %p112, %p113
      %p115 = scmp.ne.s32.totalorder %s106, %s107
      %p116 = scmp.eq.s32.totalorder %s21, 0
      %p117 = por %p115, %p116
      %p118 = scmp.ne.s32.totalorder %s106, %s107
      %p119 = scmp.eq.s32.totalorder %s22, 1
      %p120 = por %p118, %p119
      %p122 = scmp.ne.s32.totalorder %s107, %s121
      %p123 = scmp.eq.s32.totalorder %s22, 0
      %p124 = por %p122, %p123
      %s126 = sadd.s32 %s125, 1
      %p129 = scmp.eq.s32.totalorder %s16, 1
      %p130 = scmp.ne.s32.totalorder %s125, %s127
      %p131 = scmp.eq.s32.totalorder %s16, 0
      %p132 = por %p130, %p131
      %p133 = scmp.ne.s32.totalorder %s125, %s127
      %p134 = scmp.eq.s32.totalorder %s21, 1
      %p135 = por %p133, %p134
      %p136 = scmp.ne.s32.totalorder %s127, %s128
      %p137 = scmp.eq.s32.totalorder %s21, 0
      %p138 = por %p136, %p137
      %p139 = scmp.ne.s32.totalorder %s127, %s128
      %p140 = scmp.eq.s32.totalorder %s22, 1
      %p141 = por %p139, %p140
      %p143 = scmp.ne.s32.totalorder %s128, %s142
      %p144 = scmp.eq.s32.totalorder %s22, 0
      %p145 = por %p143, %p144
      %s147 = sadd.s32 %s146, 1
      %p150 = scmp.eq.s32.totalorder %s16, 1
      %p151 = scmp.ne.s32.totalorder %s146, %s148
      %p152 = scmp.eq.s32.totalorder %s16, 0
      %p153 = por %p151, %p152
      %p154 = scmp.ne.s32.totalorder %s146, %s148
      %p155 = scmp.eq.s32.totalorder %s21, 1
      %p156 = por %p154, %p155
      %p157 = scmp.ne.s32.totalorder %s148, %s149
      %p158 = scmp.eq.s32.totalorder %s21, 0
      %p159 = por %p157, %p158
      %p160 = scmp.ne.s32.totalorder %s148, %s149
      %p161 = scmp.eq.s32.totalorder %s22, 1
      %p162 = por %p160, %p161
      %p164 = scmp.ne.s32.totalorder %s149, %s163
      %p165 = scmp.eq.s32.totalorder %s22, 0
      %p166 = por %p164, %p165
      %s168 = sadd.s32 %s167, 1
      %p171 = scmp.eq.s32.totalorder %s16, 1
      %p172 = scmp.ne.s32.totalorder %s167, %s169
      %p173 = scmp.eq.s32.totalorder %s16, 0
      %p174 = por %p172, %p173
      %p175 = scmp.ne.s32.totalorder %s167, %s169
      %p176 = scmp.eq.s32.totalorder %s21, 1
      %p177 = por %p175, %p176
      %p178 = scmp.ne.s32.totalorder %s169, %s170
      %p179 = scmp.eq.s32.totalorder %s21, 0
      %p180 = por %p178, %p179
      %p181 = scmp.ne.s32.totalorder %s169, %s170
      %p182 = scmp.eq.s32.totalorder %s22, 1
      %p183 = por %p181, %p182
      %p185 = scmp.ne.s32.totalorder %s170, %s184
      %p186 = scmp.eq.s32.totalorder %s22, 0
      %p187 = por %p185, %p186
      %s188 = ssub.s32 %s23, %s35
      %s189 = ssub.s32 %s24, %s31
      %s190 = sor.u32 %s188, %s189
      %p191 = scmp.eq.s32.totalorder %s190, 0
      %s193 = sadd.s32 %s192, 1
      %s194 = scalar_select %p191, %s192, %s193
      %p197 = pneg %p191
      %p198 = scmp.eq.s32.totalorder %s16, 1
      %p199 = por %p197, %p198
      %p200 = scmp.ne.s32.totalorder %s192, %s195
      %p201 = scmp.eq.s32.totalorder %s16, 0
      %p202 = por %p200, %p201
      %p203 = scmp.ne.s32.totalorder %s192, %s195
      %p204 = scmp.eq.s32.totalorder %s21, 1
      %p205 = por %p203, %p204
      %p206 = scmp.ne.s32.totalorder %s195, %s196
      %p207 = scmp.eq.s32.totalorder %s21, 0
      %p208 = por %p206, %p207
      %p209 = scmp.ne.s32.totalorder %s195, %s196
      %p210 = scmp.eq.s32.totalorder %s22, 1
      %p211 = por %p209, %p210
      %p213 = scmp.ne.s32.totalorder %s196, %s212
      %p214 = scmp.eq.s32.totalorder %s22, 0
      %p215 = por %p213, %p214
      %p216 = scmp.le.s32.totalorder 1, %s16
      %p217 = scmp.lt.s32.totalorder %s16, 3
      %p218 = pnand %p216, %p217
      %p219 = pneg %p218
      // Predicated region
      $region9: #{bottleneck_forward.1} parent=5 // pred_check
        _
      $region10: #{bottleneck_forward.1} parent=5 // pred_check_branch
        %221 = sbr.rel (%p218) target = $region12
      $region11: #{bottleneck_forward.1} parent=5 // pred_region
        %s222 = ssub.s32 %s16, 1
        // Predicated region
        $region13: #{bottleneck_forward.1} parent=11 // pred_check
          %p223 = pneg %p75
        $region14: #{bottleneck_forward.1} parent=11 // pred_check_branch
          %225 = sbr.rel (%p223) target = $region16
        $region15: #{bottleneck_forward.1} parent=11 // pred_region
          _
        $region16: #{bottleneck_forward.1} parent=11 // pred_fallthru
          _
        // Predicated region
        $region17: #{bottleneck_forward.1} parent=11 // pred_check
          %p226 = pneg %p96
        $region18: #{bottleneck_forward.1} parent=11 // pred_check_branch
          %228 = sbr.rel (%p226) target = $region20
        $region19: #{bottleneck_forward.1} parent=11 // pred_region
          _
        $region20: #{bottleneck_forward.1} parent=11 // pred_fallthru
          _
        // Predicated region
        $region21: #{bottleneck_forward.1} parent=11 // pred_check
          %p229 = pneg %p117
        $region22: #{bottleneck_forward.1} parent=11 // pred_check_branch
          %231 = sbr.rel (%p229) target = $region24
        $region23: #{bottleneck_forward.1} parent=11 // pred_region
          _
        $region24: #{bottleneck_forward.1} parent=11 // pred_fallthru
          _
        // Predicated region
        $region25: #{bottleneck_forward.1} parent=11 // pred_check
          %p232 = pneg %p138
        $region26: #{bottleneck_forward.1} parent=11 // pred_check_branch
          %234 = sbr.rel (%p232) target = $region28
        $region27: #{bottleneck_forward.1} parent=11 // pred_region
          _
        $region28: #{bottleneck_forward.1} parent=11 // pred_fallthru
          _
        // Predicated region
        $region29: #{bottleneck_forward.1} parent=11 // pred_check
          %p235 = pneg %p159
        $region30: #{bottleneck_forward.1} parent=11 // pred_check_branch
          %237 = sbr.rel (%p235) target = $region32
        $region31: #{bottleneck_forward.1} parent=11 // pred_region
          _
        $region32: #{bottleneck_forward.1} parent=11 // pred_fallthru
          _
        // Predicated region
        $region33: #{bottleneck_forward.1} parent=11 // pred_check
          %p238 = pneg %p180
        $region34: #{bottleneck_forward.1} parent=11 // pred_check_branch
          %240 = sbr.rel (%p238) target = $region36
        $region35: #{bottleneck_forward.1} parent=11 // pred_region
          _
        $region36: #{bottleneck_forward.1} parent=11 // pred_fallthru
          _
      $region12: #{bottleneck_forward.1} parent=5 // pred_fallthru
        _
      %p241 = scmp.lt.s32.totalorder %s16, 2
      // Predicated region
      $region37: #{bottleneck_forward.1} parent=5 // pred_check
        %p242 = pneg %p241
      $region38: #{bottleneck_forward.1} parent=5 // pred_check_branch
        %244 = sbr.rel (%p242) target = $region40
      $region39: #{bottleneck_forward.1} parent=5 // pred_region
        // Predicated region
        $region41: #{bottleneck_forward.1} parent=39 // pred_check
          %p245 = pneg %p48
        $region42: #{bottleneck_forward.1} parent=39 // pred_check_branch
          %247 = sbr.rel (%p245) target = $region44
        $region43: #{bottleneck_forward.1} parent=39 // pred_region
          %p248 = scmp.lt.s32.totalorder %s23, 1
          %s249 = scalar_select %p248, %s23, 1
          %s250 = smul.addr %s249, 32
          %s251 = smul.addr %s250, 8
          %s252 = scalar_lea.vmem %s0, %s251
        $region44: #{bottleneck_forward.1} parent=39 // pred_fallthru
          _
      $region40: #{bottleneck_forward.1} parent=5 // pred_fallthru
        _
      %p253 = scmp.le.s32.totalorder 1, %s16
      %p254 = scmp.lt.s32.totalorder %s16, 3
      %p255 = pnand %p253, %p254
      %p256 = pneg %p255
      // Predicated region
      $region45: #{bottleneck_forward.1} parent=5 // pred_check
        _
      $region46: #{bottleneck_forward.1} parent=5 // pred_check_branch
        %258 = sbr.rel (%p255) target = $region48
      $region47: #{bottleneck_forward.1} parent=5 // pred_region
        %s259 = ssub.s32 %s16, 1
        %p260 = scmp.lt.s32.totalorder %s25, 1
        %s261 = scalar_select %p260, %s25, 1
        %s262 = smul.addr %s261, 32
        %s263 = smul.addr %s262, 8
        %s264 = scalar_lea.vmem %s0, %s263
        %p265 = pneg %p54
        %p266 = pneg %p51
        %p267 = pneg %p75
        %p268 = pneg %p72
        %p269 = pneg %p96
        %p270 = pneg %p93
        %p271 = pneg %p117
        %p272 = pneg %p114
        %p273 = pneg %p138
        %p274 = pneg %p135
        %p275 = pneg %p159
        %p276 = pneg %p156
        %p277 = pneg %p180
        %p278 = pneg %p177
        %p279 = pneg %p208
        %p280 = pneg %p205
        %s281 = sand.u32 %s195, 1
        %s282 = scalar_lea.sflag [#allocation3], %s281
        %s283 = sand.u32 %s195, 1
        %s284 = smul.addr %s283, 256
        %s285 = scalar_lea.vmem [#allocation2], %s284
        %p286 = scmp.lt.s32.totalorder %s25, 1
        %s287 = scalar_select %p286, %s25, 1
        %s288 = smul.addr %s287, 32
        %s289 = smul.addr %s288, 8
        %s290 = scalar_lea.vmem %s0, %s289
        %s291 = smul.u32 16, %s26
        %s293 = smul.u32 %s26, 16
        %s294 = smul.u32 %s293, 16
        %s295 = scalar_lea.vmem %s290, %s294
        %v296 = vld [vmem:[%s295] sm:$0xff]
        %v297 = vld [vmem:[%s295 + $0x8] sm:$0xff]
        %v298 = vld [vmem:[%s295 + $0x10] sm:$0xff]
        %v299 = vld [vmem:[%s295 + $0x18] sm:$0xff]
        %v300 = vld [vmem:[%s295 + $0x20] sm:$0xff]
        %v301 = vld [vmem:[%s295 + $0x28] sm:$0xff]
        %v302 = vld [vmem:[%s295 + $0x30] sm:$0xff]
        %v303 = vld [vmem:[%s295 + $0x38] sm:$0xff]
        %v304 = vld [vmem:[%s295 + $0x40] sm:$0xff]
        %v305 = vld [vmem:[%s295 + $0x48] sm:$0xff]
        %v306 = vld [vmem:[%s295 + $0x50] sm:$0xff]
        %v307 = vld [vmem:[%s295 + $0x58] sm:$0xff]
        %v308 = vld [vmem:[%s295 + $0x60] sm:$0xff]
        %v309 = vld [vmem:[%s295 + $0x68] sm:$0xff]
        %v310 = vld [vmem:[%s295 + $0x70] sm:$0xff]
        %v311 = vld [vmem:[%s295 + $0x78] sm:$0xff]
        %v312 = vld [vmem:[%s295 + $0x80] sm:$0xff]
        %v313 = vld [vmem:[%s295 + $0x88] sm:$0xff]
        %v314 = vld [vmem:[%s295 + $0x90] sm:$0xff]
        %v315 = vld [vmem:[%s295 + $0x98] sm:$0xff]
        %v316 = vld [vmem:[%s295 + $0xa0] sm:$0xff]
        %v317 = vld [vmem:[%s295 + $0xa8] sm:$0xff]
        %v318 = vld [vmem:[%s295 + $0xb0] sm:$0xff]
        %v319 = vld [vmem:[%s295 + $0xb8] sm:$0xff]
        %v320 = vld [vmem:[%s295 + $0xc0] sm:$0xff]
        %v321 = vld [vmem:[%s295 + $0xc8] sm:$0xff]
        %v322 = vld [vmem:[%s295 + $0xd0] sm:$0xff]
        %v323 = vld [vmem:[%s295 + $0xd8] sm:$0xff]
        %v324 = vld [vmem:[%s295 + $0xe0] sm:$0xff]
        %v325 = vld [vmem:[%s295 + $0xe8] sm:$0xff]
        %v326 = vld [vmem:[%s295 + $0xf0] sm:$0xff]
        %v327 = vld [vmem:[%s295 + $0xf8] sm:$0xff]
        %s328 = ssub.s32 %s293, 1
        %p329 = scmp.gt.s32.totalorder %s328, 0
        %s330 = scalar_select %p329, %s328, 0
        %s331 = smul.u32 %s330, 16
        %s332 = scalar_lea.vmem %s290, %s331
        %v333 = vld [vmem:[%s332] sm:$0xff]
        %v334 = vld [vmem:[%s332 + $0x8] sm:$0xff]
        %s335 = sadd.s32 %s293, 16
        %p336 = scmp.lt.s32.totalorder %s335, 15
        %s337 = scalar_select %p336, %s335, 15
        %s338 = smul.u32 %s337, 16
        %s339 = scalar_lea.vmem %s290, %s338
        %v340 = vld [vmem:[%s339] sm:$0xff]
        %v341 = vld [vmem:[%s339 + $0x8] sm:$0xff]
        %v342 = vpack.c.bf16 %v334, %v333
        %v343 = vld [vmem:[%s1] sm:$0xf]
        %v344 = vld [vmem:[%s1 + $0x4] sm:$0xf]
        %v345 = vld [vmem:[%s1 + $0x8] sm:$0xf]
        %v346 = vld [vmem:[%s1 + $0xc] sm:$0xf]
        %v347 = vld [vmem:[%s1 + $0x10] sm:$0xf]
        %v348 = vld [vmem:[%s1 + $0x14] sm:$0xf]
        %v349 = vld [vmem:[%s1 + $0x18] sm:$0xf]
        %v350 = vld [vmem:[%s1 + $0x1c] sm:$0xf]
        %v351 = vld [vmem:[%s1 + $0x20] sm:$0xf]
        %v352 = vld [vmem:[%s1 + $0x24] sm:$0xf]
        %v353 = vld [vmem:[%s1 + $0x28] sm:$0xf]
        %v354 = vld [vmem:[%s1 + $0x2c] sm:$0xf]
        %v355 = vld [vmem:[%s1 + $0x30] sm:$0xf]
        %v356 = vld [vmem:[%s1 + $0x34] sm:$0xf]
        %v357 = vld [vmem:[%s1 + $0x38] sm:$0xf]
        %v358 = vld [vmem:[%s1 + $0x3c] sm:$0xf]
        %v359 = vld [vmem:[%s2] sm:$0x1]
        %v361 = vperm.slane %v359, 0
        %v379 = vunpack.c.l.b16 %v343
        %v380 = vunpack.c.l.b16 %v344
        %v381 = vunpack.c.l.b16 %v345
        %v382 = vunpack.c.l.b16 %v346
        %v383 = vunpack.c.l.b16 %v347
        %v384 = vunpack.c.l.b16 %v348
        %v385 = vunpack.c.l.b16 %v349
        %v386 = vunpack.c.l.b16 %v350
        %v387 = vunpack.c.l.b16 %v351
        %v388 = vunpack.c.l.b16 %v352
        %v389 = vunpack.c.l.b16 %v353
        %v390 = vunpack.c.l.b16 %v354
        %v391 = vunpack.c.l.b16 %v355
        %v392 = vunpack.c.l.b16 %v356
        %v393 = vunpack.c.l.b16 %v357
        %v394 = vunpack.c.l.b16 %v358
        %v395 = vpack.c.b16 %v380, %v379
        %v396 = vpack.c.b16 %v382, %v381
        %v397 = vpack.c.b16 %v384, %v383
        %v398 = vpack.c.b16 %v386, %v385
        %v399 = vpack.c.b16 %v388, %v387
        %v400 = vpack.c.b16 %v390, %v389
        %v401 = vpack.c.b16 %v392, %v391
        %v402 = vpack.c.b16 %v394, %v393
        %411 = vmatpush.bf16.msra.mxu0 %v402
        %412 = vmatpush.bf16.msra.mxu0 %v401
        %413 = vmatpush.bf16.msra.mxu0 %v400
        %414 = vmatpush.bf16.msra.mxu0 %v399
        %415 = vmatpush.bf16.msra.mxu0 %v398
        %416 = vmatpush.bf16.msra.mxu0 %v397
        %417 = vmatpush.bf16.msra.mxu0 %v396
        %418 = vmatpush.bf16.msra.mxu0 %v395
        %419 = vmatmul.bf16.gmra.mxu0 %v342
        %v420 = vpop.f32.mrf.mxu0
        %v421 = vadd.f32 %v361, %v420
        %v422 = vpop.f32.mrf.mxu0
        %v423 = vadd.f32 %v361, %v422
        %424 = vdwg.mxu0
        %v425 = vmax.f32 %v421, 0.0
        %v426 = vmax.f32 %v423, 0.0
        %v427 = vpack.c.bf16 %v425, %v425
        %v428 = vpack.c.bf16 %v426, %v426
        %v429 = vpack.c.bf16 %v297, %v296
        %v430 = vpack.c.bf16 %v299, %v298
        %v431 = vpack.c.bf16 %v301, %v300
        %v432 = vpack.c.bf16 %v303, %v302
        %v433 = vpack.c.bf16 %v305, %v304
        %v434 = vpack.c.bf16 %v307, %v306
        %v435 = vpack.c.bf16 %v309, %v308
        %v436 = vpack.c.bf16 %v311, %v310
        %v437 = vpack.c.bf16 %v313, %v312
        %v438 = vpack.c.bf16 %v315, %v314
        %v439 = vpack.c.bf16 %v317, %v316
        %v440 = vpack.c.bf16 %v319, %v318
        %v441 = vpack.c.bf16 %v321, %v320
        %v442 = vpack.c.bf16 %v323, %v322
        %v443 = vpack.c.bf16 %v325, %v324
        %v444 = vpack.c.bf16 %v327, %v326
        %445 = vmatpush.bf16.msra.mxu0 %v402
        %446 = vmatpush.bf16.msra.mxu0 %v401
        %447 = vmatpush.bf16.msra.mxu0 %v400
        %448 = vmatpush.bf16.msra.mxu0 %v399
        %449 = vmatpush.bf16.msra.mxu0 %v398
        %450 = vmatpush.bf16.msra.mxu0 %v397
        %451 = vmatpush.bf16.msra.mxu0 %v396
        %452 = vmatpush.bf16.msra.mxu0 %v395
        %453 = vmatmul.bf16.gmra.mxu0 %v429
        %v454 = vpop.f32.mrf.mxu0
        %v455 = vadd.f32 %v361, %v454
        %v456 = vpop.f32.mrf.mxu0
        %v457 = vadd.f32 %v361, %v456
        %458 = vmatmul.bf16.gmra.mxu0 %v430
        %v459 = vpop.f32.mrf.mxu0
        %v460 = vadd.f32 %v361, %v459
        %v461 = vpop.f32.mrf.mxu0
        %v462 = vadd.f32 %v361, %v461
        %463 = vmatmul.bf16.gmra.mxu0 %v431
        %v464 = vpop.f32.mrf.mxu0
        %v465 = vadd.f32 %v361, %v464
        %v466 = vpop.f32.mrf.mxu0
        %v467 = vadd.f32 %v361, %v466
        %468 = vmatmul.bf16.gmra.mxu0 %v432
        %v469 = vpop.f32.mrf.mxu0
        %v470 = vadd.f32 %v361, %v469
        %v471 = vpop.f32.mrf.mxu0
        %v472 = vadd.f32 %v361, %v471
        %473 = vmatmul.bf16.gmra.mxu0 %v433
        %v474 = vpop.f32.mrf.mxu0
        %v475 = vadd.f32 %v361, %v474
        %v476 = vpop.f32.mrf.mxu0
        %v477 = vadd.f32 %v361, %v476
        %478 = vmatmul.bf16.gmra.mxu0 %v434
        %v479 = vpop.f32.mrf.mxu0
        %v480 = vadd.f32 %v361, %v479
        %v481 = vpop.f32.mrf.mxu0
        %v482 = vadd.f32 %v361, %v481
        %483 = vmatmul.bf16.gmra.mxu0 %v435
        %v484 = vpop.f32.mrf.mxu0
        %v485 = vadd.f32 %v361, %v484
        %v486 = vpop.f32.mrf.mxu0
        %v487 = vadd.f32 %v361, %v486
        %488 = vmatmul.bf16.gmra.mxu0 %v436
        %v489 = vpop.f32.mrf.mxu0
        %v490 = vadd.f32 %v361, %v489
        %v491 = vpop.f32.mrf.mxu0
        %v492 = vadd.f32 %v361, %v491
        %493 = vmatmul.bf16.gmra.mxu0 %v437
        %v494 = vpop.f32.mrf.mxu0
        %v495 = vadd.f32 %v361, %v494
        %v496 = vpop.f32.mrf.mxu0
        %v497 = vadd.f32 %v361, %v496
        %498 = vmatmul.bf16.gmra.mxu0 %v438
        %v499 = vpop.f32.mrf.mxu0
        %v500 = vadd.f32 %v361, %v499
        %v501 = vpop.f32.mrf.mxu0
        %v502 = vadd.f32 %v361, %v501
        %503 = vmatmul.bf16.gmra.mxu0 %v439
        %v504 = vpop.f32.mrf.mxu0
        %v505 = vadd.f32 %v361, %v504
        %v506 = vpop.f32.mrf.mxu0
        %v507 = vadd.f32 %v361, %v506
        %508 = vmatmul.bf16.gmra.mxu0 %v440
        %v509 = vpop.f32.mrf.mxu0
        %v510 = vadd.f32 %v361, %v509
        %v511 = vpop.f32.mrf.mxu0
        %v512 = vadd.f32 %v361, %v511
        %513 = vmatmul.bf16.gmra.mxu0 %v441
        %v514 = vpop.f32.mrf.mxu0
        %v515 = vadd.f32 %v361, %v514
        %v516 = vpop.f32.mrf.mxu0
        %v517 = vadd.f32 %v361, %v516
        %518 = vmatmul.bf16.gmra.mxu0 %v442
        %v519 = vpop.f32.mrf.mxu0
        %v520 = vadd.f32 %v361, %v519
        %v521 = vpop.f32.mrf.mxu0
        %v522 = vadd.f32 %v361, %v521
        %523 = vmatmul.bf16.gmra.mxu0 %v443
        %v524 = vpop.f32.mrf.mxu0
        %v525 = vadd.f32 %v361, %v524
        %v526 = vpop.f32.mrf.mxu0
        %v527 = vadd.f32 %v361, %v526
        %528 = vmatmul.bf16.gmra.mxu0 %v444
        %v529 = vpop.f32.mrf.mxu0
        %v530 = vadd.f32 %v361, %v529
        %v531 = vpop.f32.mrf.mxu0
        %v532 = vadd.f32 %v361, %v531
        %533 = vdwg.mxu0
        %v534 = vmax.f32 %v455, 0.0
        %v535 = vmax.f32 %v457, 0.0
        %v536 = vmax.f32 %v460, 0.0
        %v537 = vmax.f32 %v462, 0.0
        %v538 = vmax.f32 %v465, 0.0
        %v539 = vmax.f32 %v467, 0.0
        %v540 = vmax.f32 %v470, 0.0
        %v541 = vmax.f32 %v472, 0.0
        %v542 = vmax.f32 %v475, 0.0
        %v543 = vmax.f32 %v477, 0.0
        %v544 = vmax.f32 %v480, 0.0
        %v545 = vmax.f32 %v482, 0.0
        %v546 = vmax.f32 %v485, 0.0
        %v547 = vmax.f32 %v487, 0.0
        %v548 = vmax.f32 %v490, 0.0
        %v549 = vmax.f32 %v492, 0.0
        %v550 = vmax.f32 %v495, 0.0
        %v551 = vmax.f32 %v497, 0.0
        %v552 = vmax.f32 %v500, 0.0
        %v553 = vmax.f32 %v502, 0.0
        %v554 = vmax.f32 %v505, 0.0
        %v555 = vmax.f32 %v507, 0.0
        %v556 = vmax.f32 %v510, 0.0
        %v557 = vmax.f32 %v512, 0.0
        %v558 = vmax.f32 %v515, 0.0
        %v559 = vmax.f32 %v517, 0.0
        %v560 = vmax.f32 %v520, 0.0
        %v561 = vmax.f32 %v522, 0.0
        %v562 = vmax.f32 %v525, 0.0
        %v563 = vmax.f32 %v527, 0.0
        %v564 = vmax.f32 %v530, 0.0
        %v565 = vmax.f32 %v532, 0.0
        %v566 = vpack.c.bf16 %v534, %v534
        %v567 = vpack.c.bf16 %v535, %v535
        %v568 = vpack.c.bf16 %v536, %v536
        %v569 = vpack.c.bf16 %v537, %v537
        %v570 = vpack.c.bf16 %v538, %v538
        %v571 = vpack.c.bf16 %v539, %v539
        %v572 = vpack.c.bf16 %v540, %v540
        %v573 = vpack.c.bf16 %v541, %v541
        %v574 = vpack.c.bf16 %v542, %v542
        %v575 = vpack.c.bf16 %v543, %v543
        %v576 = vpack.c.bf16 %v544, %v544
        %v577 = vpack.c.bf16 %v545, %v545
        %v578 = vpack.c.bf16 %v546, %v546
        %v579 = vpack.c.bf16 %v547, %v547
        %v580 = vpack.c.bf16 %v548, %v548
        %v581 = vpack.c.bf16 %v549, %v549
        %v582 = vpack.c.bf16 %v550, %v550
        %v583 = vpack.c.bf16 %v551, %v551
        %v584 = vpack.c.bf16 %v552, %v552
        %v585 = vpack.c.bf16 %v553, %v553
        %v586 = vpack.c.bf16 %v554, %v554
        %v587 = vpack.c.bf16 %v555, %v555
        %v588 = vpack.c.bf16 %v556, %v556
        %v589 = vpack.c.bf16 %v557, %v557
        %v590 = vpack.c.bf16 %v558, %v558
        %v591 = vpack.c.bf16 %v559, %v559
        %v592 = vpack.c.bf16 %v560, %v560
        %v593 = vpack.c.bf16 %v561, %v561
        %v594 = vpack.c.bf16 %v562, %v562
        %v595 = vpack.c.bf16 %v563, %v563
        %v596 = vpack.c.bf16 %v564, %v564
        %v597 = vpack.c.bf16 %v565, %v565
        %v598 = vpack.c.bf16 %v341, %v340
        %599 = vmatpush.bf16.msra.mxu0 %v402
        %600 = vmatpush.bf16.msra.mxu0 %v401
        %601 = vmatpush.bf16.msra.mxu0 %v400
        %602 = vmatpush.bf16.msra.mxu0 %v399
        %603 = vmatpush.bf16.msra.mxu0 %v398
        %604 = vmatpush.bf16.msra.mxu0 %v397
        %605 = vmatpush.bf16.msra.mxu0 %v396
        %606 = vmatpush.bf16.msra.mxu0 %v395
        %607 = vmatmul.bf16.gmra.mxu0 %v598
        %v608 = vpop.f32.mrf.mxu0
        %v609 = vadd.f32 %v361, %v608
        %v610 = vpop.f32.mrf.mxu0
        %v611 = vadd.f32 %v361, %v610
        %612 = vdwg.mxu0
        %v613 = vmax.f32 %v609, 0.0
        %v614 = vmax.f32 %v611, 0.0
        %v615 = vpack.c.bf16 %v613, %v613
        %v616 = vpack.c.bf16 %v614, %v614
        %v654 = vunpack.c.l.b16 %v427
        %v655 = vunpack.c.l.b16 %v428
        %v656 = vunpack.c.l.b16 %v566
        %v657 = vunpack.c.l.b16 %v567
        %v658 = vunpack.c.l.b16 %v568
        %v659 = vunpack.c.l.b16 %v569
        %v660 = vunpack.c.l.b16 %v570
        %v661 = vunpack.c.l.b16 %v571
        %v662 = vunpack.c.l.b16 %v572
        %v663 = vunpack.c.l.b16 %v573
        %v664 = vunpack.c.l.b16 %v574
        %v665 = vunpack.c.l.b16 %v575
        %v666 = vunpack.c.l.b16 %v576
        %v667 = vunpack.c.l.b16 %v577
        %v668 = vunpack.c.l.b16 %v578
        %v669 = vunpack.c.l.b16 %v579
        %v670 = vunpack.c.l.b16 %v580
        %v671 = vunpack.c.l.b16 %v581
        %v672 = vunpack.c.l.b16 %v582
        %v673 = vunpack.c.l.b16 %v583
        %v674 = vunpack.c.l.b16 %v584
        %v675 = vunpack.c.l.b16 %v585
        %v676 = vunpack.c.l.b16 %v586
        %v677 = vunpack.c.l.b16 %v587
        %v678 = vunpack.c.l.b16 %v588
        %v679 = vunpack.c.l.b16 %v589
        %v680 = vunpack.c.l.b16 %v590
        %v681 = vunpack.c.l.b16 %v591
        %v682 = vunpack.c.l.b16 %v592
        %v683 = vunpack.c.l.b16 %v593
        %v684 = vunpack.c.l.b16 %v594
        %v685 = vunpack.c.l.b16 %v595
        %v686 = vunpack.c.l.b16 %v596
        %v687 = vunpack.c.l.b16 %v597
        %v688 = vunpack.c.l.b16 %v615
        %v689 = vunpack.c.l.b16 %v616
        %v690 = vunpack.c.l.b16 0
        %v691 = vpack.c.b16 %v655, %v654
        %v692 = vpack.c.b16 %v657, %v656
        %v693 = vpack.c.b16 %v659, %v658
        %v694 = vpack.c.b16 %v661, %v660
        %v695 = vpack.c.b16 %v663, %v662
        %v696 = vpack.c.b16 %v665, %v664
        %v697 = vpack.c.b16 %v667, %v666
        %v698 = vpack.c.b16 %v669, %v668
        %v699 = vpack.c.b16 %v671, %v670
        %v700 = vpack.c.b16 %v673, %v672
        %v701 = vpack.c.b16 %v675, %v674
        %v702 = vpack.c.b16 %v677, %v676
        %v703 = vpack.c.b16 %v679, %v678
        %v704 = vpack.c.b16 %v681, %v680
        %v705 = vpack.c.b16 %v683, %v682
        %v706 = vpack.c.b16 %v685, %v684
        %v707 = vpack.c.b16 %v687, %v686
        %v708 = vpack.c.b16 %v689, %v688
        %v709 = vpack.c.b16 %v690, %v690
        %v711 = vshrl.u32 %v691, 16
        %v713 = vrot.slane %v711, 7
        %v714 = vshll.u32 %v691, 16
        %v716 = vor.u32 %v713, %v714
        %v718 = vshrl.u32 %v692, 16
        %v720 = vrot.slane %v718, 7
        %v721 = vshll.u32 %v692, 16
        %v723 = vor.u32 %v720, %v721
        %v725 = vshrl.u32 %v693, 16
        %v727 = vrot.slane %v725, 7
        %v728 = vshll.u32 %v693, 16
        %v730 = vor.u32 %v727, %v728
        %v732 = vshrl.u32 %v694, 16
        %v734 = vrot.slane %v732, 7
        %v735 = vshll.u32 %v694, 16
        %v737 = vor.u32 %v734, %v735
        %v739 = vshrl.u32 %v695, 16
        %v741 = vrot.slane %v739, 7
        %v742 = vshll.u32 %v695, 16
        %v744 = vor.u32 %v741, %v742
        %v746 = vshrl.u32 %v696, 16
        %v748 = vrot.slane %v746, 7
        %v749 = vshll.u32 %v696, 16
        %v751 = vor.u32 %v748, %v749
        %v753 = vshrl.u32 %v697, 16
        %v755 = vrot.slane %v753, 7
        %v756 = vshll.u32 %v697, 16
        %v758 = vor.u32 %v755, %v756
        %v760 = vshrl.u32 %v698, 16
        %v762 = vrot.slane %v760, 7
        %v763 = vshll.u32 %v698, 16
        %v765 = vor.u32 %v762, %v763
        %v767 = vshrl.u32 %v699, 16
        %v769 = vrot.slane %v767, 7
        %v770 = vshll.u32 %v699, 16
        %v772 = vor.u32 %v769, %v770
        %v774 = vshrl.u32 %v700, 16
        %v776 = vrot.slane %v774, 7
        %v777 = vshll.u32 %v700, 16
        %v779 = vor.u32 %v776, %v777
        %v781 = vshrl.u32 %v701, 16
        %v783 = vrot.slane %v781, 7
        %v784 = vshll.u32 %v701, 16
        %v786 = vor.u32 %v783, %v784
        %v788 = vshrl.u32 %v702, 16
        %v790 = vrot.slane %v788, 7
        %v791 = vshll.u32 %v702, 16
        %v793 = vor.u32 %v790, %v791
        %v795 = vshrl.u32 %v703, 16
        %v797 = vrot.slane %v795, 7
        %v798 = vshll.u32 %v703, 16
        %v800 = vor.u32 %v797, %v798
        %v802 = vshrl.u32 %v704, 16
        %v804 = vrot.slane %v802, 7
        %v805 = vshll.u32 %v704, 16
        %v807 = vor.u32 %v804, %v805
        %v809 = vshrl.u32 %v705, 16
        %v811 = vrot.slane %v809, 7
        %v812 = vshll.u32 %v705, 16
        %v814 = vor.u32 %v811, %v812
        %v816 = vshrl.u32 %v706, 16
        %v818 = vrot.slane %v816, 7
        %v819 = vshll.u32 %v706, 16
        %v821 = vor.u32 %v818, %v819
        %v823 = vshrl.u32 %v707, 16
        %v825 = vrot.slane %v823, 7
        %v826 = vshll.u32 %v707, 16
        %v828 = vor.u32 %v825, %v826
        %v830 = vshrl.u32 %v708, 16
        %v832 = vrot.slane %v830, 7
        %v833 = vshll.u32 %v708, 16
        %v835 = vor.u32 %v832, %v833
        %v837 = vshrl.u32 %v709, 16
        %v839 = vrot.slane %v837, 7
        %v840 = vshll.u32 %v709, 16
        %v842 = vor.u32 %v839, %v840
        %v880 = vpack.c.b16 %v655, %v655
        %v881 = vpack.c.b16 %v657, %v657
        %v882 = vpack.c.b16 %v659, %v659
        %v883 = vpack.c.b16 %v661, %v661
        %v884 = vpack.c.b16 %v663, %v663
        %v885 = vpack.c.b16 %v665, %v665
        %v886 = vpack.c.b16 %v667, %v667
        %v887 = vpack.c.b16 %v669, %v669
        %v888 = vpack.c.b16 %v671, %v671
        %v889 = vpack.c.b16 %v673, %v673
        %v890 = vpack.c.b16 %v675, %v675
        %v891 = vpack.c.b16 %v677, %v677
        %v892 = vpack.c.b16 %v679, %v679
        %v893 = vpack.c.b16 %v681, %v681
        %v894 = vpack.c.b16 %v683, %v683
        %v895 = vpack.c.b16 %v685, %v685
        %v896 = vpack.c.b16 %v687, %v687
        %v897 = vpack.c.b16 %v689, %v689
        %v898 = vrot.slane %v880, 3
        %v899 = vrot.slane %v881, 3
        %v900 = vrot.slane %v882, 3
        %v901 = vrot.slane %v883, 3
        %v902 = vrot.slane %v884, 3
        %v903 = vrot.slane %v885, 3
        %v904 = vrot.slane %v886, 3
        %v905 = vrot.slane %v887, 3
        %v906 = vrot.slane %v888, 3
        %v907 = vrot.slane %v889, 3
        %v908 = vrot.slane %v890, 3
        %v909 = vrot.slane %v891, 3
        %v910 = vrot.slane %v892, 3
        %v911 = vrot.slane %v893, 3
        %v912 = vrot.slane %v894, 3
        %v913 = vrot.slane %v895, 3
        %v914 = vrot.slane %v896, 3
        %v915 = vrot.slane %v897, 3
        %vm934 = vcmask 1040384
        %vm935 = vsmask.f32 256
        %vm936 = vmand %vm934, %vm935
        %v937 = vsel %vm936, %v427, %v716
        %v938 = vsel %vm936, %v566, %v723
        %v939 = vsel %vm936, %v568, %v730
        %v940 = vsel %vm936, %v570, %v737
        %v941 = vsel %vm936, %v572, %v744
        %v942 = vsel %vm936, %v574, %v751
        %v943 = vsel %vm936, %v576, %v758
        %v944 = vsel %vm936, %v578, %v765
        %v945 = vsel %vm936, %v580, %v772
        %v946 = vsel %vm936, %v582, %v779
        %v947 = vsel %vm936, %v584, %v786
        %v948 = vsel %vm936, %v586, %v793
        %v949 = vsel %vm936, %v588, %v800
        %v950 = vsel %vm936, %v590, %v807
        %v951 = vsel %vm936, %v592, %v814
        %v952 = vsel %vm936, %v594, %v821
        %v953 = vsel %vm936, %v596, %v828
        %v954 = vsel %vm936, %v615, %v835
        %v955 = vsel %vm936, 0, %v842
        %v956 = vsel %vm936, %v713, %v898
        %v957 = vsel %vm936, %v720, %v899
        %v958 = vsel %vm936, %v727, %v900
        %v959 = vsel %vm936, %v734, %v901
        %v960 = vsel %vm936, %v741, %v902
        %v961 = vsel %vm936, %v748, %v903
        %v962 = vsel %vm936, %v755, %v904
        %v963 = vsel %vm936, %v762, %v905
        %v964 = vsel %vm936, %v769, %v906
        %v965 = vsel %vm936, %v776, %v907
        %v966 = vsel %vm936, %v783, %v908
        %v967 = vsel %vm936, %v790, %v909
        %v968 = vsel %vm936, %v797, %v910
        %v969 = vsel %vm936, %v804, %v911
        %v970 = vsel %vm936, %v811, %v912
        %v971 = vsel %vm936, %v818, %v913
        %v972 = vsel %vm936, %v825, %v914
        %v973 = vsel %vm936, %v832, %v915
        %vm974 = vcmask 1040384
        %v977 = vsel %vm974, %v956, 0
        %v979 = vsel %vm974, %v957, 0
        %v981 = vsel %vm974, %v958, 0
        %v983 = vsel %vm974, %v959, 0
        %v985 = vsel %vm974, %v960, 0
        %v987 = vsel %vm974, %v961, 0
        %v989 = vsel %vm974, %v962, 0
        %v991 = vsel %vm974, %v963, 0
        %v993 = vsel %vm974, %v964, 0
        %v995 = vsel %vm974, %v965, 0
        %v997 = vsel %vm974, %v966, 0
        %v999 = vsel %vm974, %v967, 0
        %v1001 = vsel %vm974, %v968, 0
        %v1003 = vsel %vm974, %v969, 0
        %v1005 = vsel %vm974, %v970, 0
        %v1007 = vsel %vm974, %v971, 0
        %v1009 = vsel %vm974, %v972, 0
        %v1011 = vsel %vm974, %v973, 0
        %v1049 = vunpack.c.l.b16 %v937
        %v1050 = vunpack.c.h.b16 %v937
        %v1051 = vunpack.c.l.b16 %v977
        %v1052 = vunpack.c.l.b16 %v938
        %v1053 = vunpack.c.h.b16 %v938
        %v1054 = vunpack.c.l.b16 %v979
        %v1055 = vunpack.c.l.b16 %v939
        %v1056 = vunpack.c.h.b16 %v939
        %v1057 = vunpack.c.l.b16 %v981
        %v1058 = vunpack.c.l.b16 %v940
        %v1059 = vunpack.c.h.b16 %v940
        %v1060 = vunpack.c.l.b16 %v983
        %v1061 = vunpack.c.l.b16 %v941
        %v1062 = vunpack.c.h.b16 %v941
        %v1063 = vunpack.c.l.b16 %v985
        %v1064 = vunpack.c.l.b16 %v942
        %v1065 = vunpack.c.h.b16 %v942
        %v1066 = vunpack.c.l.b16 %v987
        %v1067 = vunpack.c.l.b16 %v943
        %v1068 = vunpack.c.h.b16 %v943
        %v1069 = vunpack.c.l.b16 %v989
        %v1070 = vunpack.c.l.b16 %v944
        %v1071 = vunpack.c.h.b16 %v944
        %v1072 = vunpack.c.l.b16 %v991
        %v1073 = vunpack.c.l.b16 %v945
        %v1074 = vunpack.c.h.b16 %v945
        %v1075 = vunpack.c.l.b16 %v993
        %v1076 = vunpack.c.l.b16 %v946
        %v1077 = vunpack.c.h.b16 %v946
        %v1078 = vunpack.c.l.b16 %v995
        %v1079 = vunpack.c.l.b16 %v947
        %v1080 = vunpack.c.h.b16 %v947
        %v1081 = vunpack.c.l.b16 %v997
        %v1082 = vunpack.c.l.b16 %v948
        %v1083 = vunpack.c.h.b16 %v948
        %v1084 = vunpack.c.l.b16 %v999
        %v1085 = vunpack.c.l.b16 %v949
        %v1086 = vunpack.c.h.b16 %v949
        %v1087 = vunpack.c.l.b16 %v1001
        %v1088 = vunpack.c.l.b16 %v950
        %v1089 = vunpack.c.h.b16 %v950
        %v1090 = vunpack.c.l.b16 %v1003
        %v1091 = vunpack.c.l.b16 %v951
        %v1092 = vunpack.c.h.b16 %v951
        %v1093 = vunpack.c.l.b16 %v1005
        %v1094 = vunpack.c.l.b16 %v952
        %v1095 = vunpack.c.h.b16 %v952
        %v1096 = vunpack.c.l.b16 %v1007
        %v1097 = vunpack.c.l.b16 %v953
        %v1098 = vunpack.c.h.b16 %v953
        %v1099 = vunpack.c.l.b16 %v1009
        %v1100 = vunpack.c.l.b16 %v954
        %v1101 = vunpack.c.h.b16 %v954
        %v1102 = vunpack.c.l.b16 %v1011
        %v1103 = vunpack.c.l.b16 %v955
        %v1104 = vld [vmem:[%s3] sm:$0xf]
        %v1105 = vld [vmem:[%s3 + $0x4] sm:$0xf]
        %v1106 = vld [vmem:[%s3 + $0x8] sm:$0xf]
        %v1107 = vld [vmem:[%s3 + $0xc] sm:$0xf]
        %s1108 = scalar_lea.vmem %s3, 16
        %v1109 = vld [vmem:[%s1108] sm:$0xf]
        %v1110 = vld [vmem:[%s1108 + $0x4] sm:$0xf]
        %v1111 = vld [vmem:[%s1108 + $0x8] sm:$0xf]
        %v1112 = vld [vmem:[%s1108 + $0xc] sm:$0xf]
        %v1113 = vpack.c.b16 %v1050, %v1049
        %v1114 = vpack.c.b16 %v1052, %v1051
        %v1115 = vpack.c.b16 %v1054, %v1053
        %v1116 = vpack.c.b16 %v1056, %v1055
        %v1117 = vpack.c.b16 %v1058, %v1057
        %v1118 = vpack.c.b16 %v1060, %v1059
        %v1119 = vpack.c.b16 %v1062, %v1061
        %v1120 = vpack.c.b16 %v1064, %v1063
        %v1121 = vpack.c.b16 %v1066, %v1065
        %v1122 = vpack.c.b16 %v1068, %v1067
        %v1123 = vpack.c.b16 %v1070, %v1069
        %v1124 = vpack.c.b16 %v1072, %v1071
        %v1125 = vpack.c.b16 %v1074, %v1073
        %v1126 = vpack.c.b16 %v1076, %v1075
        %v1127 = vpack.c.b16 %v1078, %v1077
        %v1128 = vpack.c.b16 %v1080, %v1079
        %v1129 = vpack.c.b16 %v1082, %v1081
        %v1130 = vpack.c.b16 %v1084, %v1083
        %v1131 = vpack.c.b16 %v1086, %v1085
        %v1132 = vpack.c.b16 %v1088, %v1087
        %v1133 = vpack.c.b16 %v1090, %v1089
        %v1134 = vpack.c.b16 %v1092, %v1091
        %v1135 = vpack.c.b16 %v1094, %v1093
        %v1136 = vpack.c.b16 %v1096, %v1095
        %v1137 = vpack.c.b16 %v1097, %v1097
        %vm1138 = vsmask.f32 7424
        %v1140 = vshrl.u32 %v1113, 16
        %v1142 = vshll.u32 %v1113, 16
        %v1144 = vrot.slane %v1142, 1
        %v1145 = vor.u32 %v1140, %v1144
        %v1147 = vshll.u32 %v1114, 16
        %v1149 = vrot.slane %v1147, 1
        %v1150 = vsel %vm1138, %v1145, %v1149
        %v1151 = vshrl.u32 %v1114, 16
        %v1153 = vor.u32 %v1151, %v1149
        %v1155 = vshll.u32 %v1115, 16
        %v1157 = vrot.slane %v1155, 1
        %v1158 = vsel %vm1138, %v1153, %v1157
        %v1159 = vshrl.u32 %v1115, 16
        %v1161 = vor.u32 %v1159, %v1157
        %v1163 = vshll.u32 %v1116, 16
        %v1165 = vrot.slane %v1163, 1
        %v1166 = vsel %vm1138, %v1161, %v1165
        %v1167 = vshrl.u32 %v1116, 16
        %v1169 = vor.u32 %v1167, %v1165
        %v1171 = vshll.u32 %v1117, 16
        %v1173 = vrot.slane %v1171, 1
        %v1174 = vsel %vm1138, %v1169, %v1173
        %v1175 = vshrl.u32 %v1117, 16
        %v1177 = vor.u32 %v1175, %v1173
        %v1179 = vshll.u32 %v1118, 16
        %v1181 = vrot.slane %v1179, 1
        %v1182 = vsel %vm1138, %v1177, %v1181
        %v1183 = vshrl.u32 %v1118, 16
        %v1185 = vor.u32 %v1183, %v1181
        %v1187 = vshll.u32 %v1119, 16
        %v1189 = vrot.slane %v1187, 1
        %v1190 = vsel %vm1138, %v1185, %v1189
        %v1191 = vshrl.u32 %v1119, 16
        %v1193 = vor.u32 %v1191, %v1189
        %v1195 = vshll.u32 %v1120, 16
        %v1197 = vrot.slane %v1195, 1
        %v1198 = vsel %vm1138, %v1193, %v1197
        %v1199 = vshrl.u32 %v1120, 16
        %v1201 = vor.u32 %v1199, %v1197
        %v1203 = vshll.u32 %v1121, 16
        %v1205 = vrot.slane %v1203, 1
        %v1206 = vsel %vm1138, %v1201, %v1205
        %v1207 = vshrl.u32 %v1121, 16
        %v1209 = vor.u32 %v1207, %v1205
        %v1211 = vshll.u32 %v1122, 16
        %v1213 = vrot.slane %v1211, 1
        %v1214 = vsel %vm1138, %v1209, %v1213
        %v1215 = vshrl.u32 %v1122, 16
        %v1217 = vor.u32 %v1215, %v1213
        %v1219 = vshll.u32 %v1123, 16
        %v1221 = vrot.slane %v1219, 1
        %v1222 = vsel %vm1138, %v1217, %v1221
        %v1223 = vshrl.u32 %v1123, 16
        %v1225 = vor.u32 %v1223, %v1221
        %v1227 = vshll.u32 %v1124, 16
        %v1229 = vrot.slane %v1227, 1
        %v1230 = vsel %vm1138, %v1225, %v1229
        %v1231 = vshrl.u32 %v1124, 16
        %v1233 = vor.u32 %v1231, %v1229
        %v1235 = vshll.u32 %v1125, 16
        %v1237 = vrot.slane %v1235, 1
        %v1238 = vsel %vm1138, %v1233, %v1237
        %v1239 = vshrl.u32 %v1125, 16
        %v1241 = vor.u32 %v1239, %v1237
        %v1243 = vshll.u32 %v1126, 16
        %v1245 = vrot.slane %v1243, 1
        %v1246 = vsel %vm1138, %v1241, %v1245
        %v1247 = vshrl.u32 %v1126, 16
        %v1249 = vor.u32 %v1247, %v1245
        %v1251 = vshll.u32 %v1127, 16
        %v1253 = vrot.slane %v1251, 1
        %v1254 = vsel %vm1138, %v1249, %v1253
        %v1255 = vshrl.u32 %v1127, 16
        %v1257 = vor.u32 %v1255, %v1253
        %v1259 = vshll.u32 %v1128, 16
        %v1261 = vrot.slane %v1259, 1
        %v1262 = vsel %vm1138, %v1257, %v1261
        %v1263 = vshrl.u32 %v1128, 16
        %v1265 = vor.u32 %v1263, %v1261
        %v1267 = vshll.u32 %v1129, 16
        %v1269 = vrot.slane %v1267, 1
        %v1270 = vsel %vm1138, %v1265, %v1269
        %v1271 = vshrl.u32 %v1129, 16
        %v1273 = vor.u32 %v1271, %v1269
        %v1275 = vshll.u32 %v1130, 16
        %v1277 = vrot.slane %v1275, 1
        %v1278 = vsel %vm1138, %v1273, %v1277
        %v1279 = vshrl.u32 %v1130, 16
        %v1281 = vor.u32 %v1279, %v1277
        %v1283 = vshll.u32 %v1131, 16
        %v1285 = vrot.slane %v1283, 1
        %v1286 = vsel %vm1138, %v1281, %v1285
        %v1287 = vshrl.u32 %v1131, 16
        %v1289 = vor.u32 %v1287, %v1285
        %v1291 = vshll.u32 %v1132, 16
        %v1293 = vrot.slane %v1291, 1
        %v1294 = vsel %vm1138, %v1289, %v1293
        %v1295 = vshrl.u32 %v1132, 16
        %v1297 = vor.u32 %v1295, %v1293
        %v1299 = vshll.u32 %v1133, 16
        %v1301 = vrot.slane %v1299, 1
        %v1302 = vsel %vm1138, %v1297, %v1301
        %v1303 = vshrl.u32 %v1133, 16
        %v1305 = vor.u32 %v1303, %v1301
        %v1307 = vshll.u32 %v1134, 16
        %v1309 = vrot.slane %v1307, 1
        %v1310 = vsel %vm1138, %v1305, %v1309
        %v1311 = vshrl.u32 %v1134, 16
        %v1313 = vor.u32 %v1311, %v1309
        %v1315 = vshll.u32 %v1135, 16
        %v1317 = vrot.slane %v1315, 1
        %v1318 = vsel %vm1138, %v1313, %v1317
        %v1319 = vshrl.u32 %v1135, 16
        %v1321 = vor.u32 %v1319, %v1317
        %v1323 = vshll.u32 %v1136, 16
        %v1325 = vrot.slane %v1323, 1
        %v1326 = vsel %vm1138, %v1321, %v1325
        %v1327 = vshrl.u32 %v1136, 16
        %v1329 = vor.u32 %v1327, %v1325
        %v1331 = vshll.u32 %v1137, 16
        %v1333 = vrot.slane %v1331, 1
        %v1334 = vsel %vm1138, %v1329, %v1333
        %v1339 = vunpack.c.l.b16 %v1109
        %v1340 = vunpack.c.l.b16 %v1110
        %v1341 = vunpack.c.l.b16 %v1111
        %v1342 = vunpack.c.l.b16 %v1112
        %v1343 = vpack.c.b16 %v1340, %v1339
        %v1344 = vpack.c.b16 %v1342, %v1341
        %vm1347 = vcmask 261120
        %v1349 = vsel %vm1347, %v1150, 0
        %v1352 = vsel %vm1347, %v1158, 0
        %v1355 = vsel %vm1347, %v1166, 0
        %v1358 = vsel %vm1347, %v1174, 0
        %v1361 = vsel %vm1347, %v1182, 0
        %v1364 = vsel %vm1347, %v1190, 0
        %v1367 = vsel %vm1347, %v1198, 0
        %v1370 = vsel %vm1347, %v1206, 0
        %v1373 = vsel %vm1347, %v1214, 0
        %v1376 = vsel %vm1347, %v1222, 0
        %v1379 = vsel %vm1347, %v1230, 0
        %v1382 = vsel %vm1347, %v1238, 0
        %v1385 = vsel %vm1347, %v1246, 0
        %v1388 = vsel %vm1347, %v1254, 0
        %v1391 = vsel %vm1347, %v1262, 0
        %v1394 = vsel %vm1347, %v1270, 0
        %v1397 = vsel %vm1347, %v1278, 0
        %v1400 = vsel %vm1347, %v1286, 0
        %v1403 = vsel %vm1347, %v1294, 0
        %v1406 = vsel %vm1347, %v1302, 0
        %v1409 = vsel %vm1347, %v1310, 0
        %v1412 = vsel %vm1347, %v1318, 0
        %v1415 = vsel %vm1347, %v1326, 0
        %v1418 = vsel %vm1347, %v1334, 0
        %1420 = vmatpush.bf16.msra.mxu0 0
        %1421 = vmatpush.bf16.msra.mxu0 0
        %1422 = vmatpush.bf16.msra.mxu0 0
        %1423 = vmatpush.bf16.msra.mxu0 0
        %1424 = vmatpush.bf16.msra.mxu0 0
        %1425 = vmatpush.bf16.msra.mxu0 0
        %1426 = vmatpush.bf16.msra.mxu0 %v1344
        %1427 = vmatpush.bf16.msra.mxu0 %v1343
        %1428 = vmatmul.bf16.gmra.mxu0 %v1349
        %v1429 = vpop.f32.mrf.mxu0
        %v1430 = vadd.f32 0.0, %v1429
        %v1431 = vpop.f32.mrf.mxu0
        %v1432 = vadd.f32 0.0, %v1431
        %1433 = vmatmul.bf16.gmra.mxu0 %v1352
        %v1434 = vpop.f32.mrf.mxu0
        %v1435 = vpop.f32.mrf.mxu0
        %v1436 = vadd.f32 0.0, %v1435
        %1437 = vmatmul.bf16.gmra.mxu0 %v1355
        %v1438 = vpop.f32.mrf.mxu0
        %v1439 = vadd.f32 0.0, %v1438
        %v1440 = vpop.f32.mrf.mxu0
        %1441 = vmatmul.bf16.gmra.mxu0 %v1358
        %v1442 = vpop.f32.mrf.mxu0
        %v1443 = vadd.f32 0.0, %v1442
        %v1444 = vpop.f32.mrf.mxu0
        %v1445 = vadd.f32 0.0, %v1444
        %1446 = vmatmul.bf16.gmra.mxu0 %v1361
        %v1447 = vpop.f32.mrf.mxu0
        %v1448 = vpop.f32.mrf.mxu0
        %v1449 = vadd.f32 0.0, %v1448
        %1450 = vmatmul.bf16.gmra.mxu0 %v1364
        %v1451 = vpop.f32.mrf.mxu0
        %v1452 = vadd.f32 0.0, %v1451
        %v1453 = vpop.f32.mrf.mxu0
        %1454 = vmatmul.bf16.gmra.mxu0 %v1367
        %v1455 = vpop.f32.mrf.mxu0
        %v1456 = vadd.f32 0.0, %v1455
        %v1457 = vpop.f32.mrf.mxu0
        %v1458 = vadd.f32 0.0, %v1457
        %1459 = vmatmul.bf16.gmra.mxu0 %v1370
        %v1460 = vpop.f32.mrf.mxu0
        %v1461 = vpop.f32.mrf.mxu0
        %v1462 = vadd.f32 0.0, %v1461
        %1463 = vmatmul.bf16.gmra.mxu0 %v1373
        %v1464 = vpop.f32.mrf.mxu0
        %v1465 = vadd.f32 0.0, %v1464
        %v1466 = vpop.f32.mrf.mxu0
        %1467 = vmatmul.bf16.gmra.mxu0 %v1376
        %v1468 = vpop.f32.mrf.mxu0
        %v1469 = vadd.f32 0.0, %v1468
        %v1470 = vpop.f32.mrf.mxu0
        %v1471 = vadd.f32 0.0, %v1470
        %1472 = vmatmul.bf16.gmra.mxu0 %v1379
        %v1473 = vpop.f32.mrf.mxu0
        %v1474 = vpop.f32.mrf.mxu0
        %v1475 = vadd.f32 0.0, %v1474
        %1476 = vmatmul.bf16.gmra.mxu0 %v1382
        %v1477 = vpop.f32.mrf.mxu0
        %v1478 = vadd.f32 0.0, %v1477
        %v1479 = vpop.f32.mrf.mxu0
        %1480 = vmatmul.bf16.gmra.mxu0 %v1385
        %v1481 = vpop.f32.mrf.mxu0
        %v1482 = vadd.f32 0.0, %v1481
        %v1483 = vpop.f32.mrf.mxu0
        %v1484 = vadd.f32 0.0, %v1483
        %1485 = vmatmul.bf16.gmra.mxu0 %v1388
        %v1486 = vpop.f32.mrf.mxu0
        %v1487 = vpop.f32.mrf.mxu0
        %v1488 = vadd.f32 0.0, %v1487
        %1489 = vmatmul.bf16.gmra.mxu0 %v1391
        %v1490 = vpop.f32.mrf.mxu0
        %v1491 = vadd.f32 0.0, %v1490
        %v1492 = vpop.f32.mrf.mxu0
        %1493 = vmatmul.bf16.gmra.mxu0 %v1394
        %v1494 = vpop.f32.mrf.mxu0
        %v1495 = vadd.f32 0.0, %v1494
        %v1496 = vpop.f32.mrf.mxu0
        %v1497 = vadd.f32 0.0, %v1496
        %1498 = vmatmul.bf16.gmra.mxu0 %v1397
        %v1499 = vpop.f32.mrf.mxu0
        %v1500 = vpop.f32.mrf.mxu0
        %v1501 = vadd.f32 0.0, %v1500
        %1502 = vmatmul.bf16.gmra.mxu0 %v1400
        %v1503 = vpop.f32.mrf.mxu0
        %v1504 = vadd.f32 0.0, %v1503
        %v1505 = vpop.f32.mrf.mxu0
        %1506 = vmatmul.bf16.gmra.mxu0 %v1403
        %v1507 = vpop.f32.mrf.mxu0
        %v1508 = vadd.f32 0.0, %v1507
        %v1509 = vpop.f32.mrf.mxu0
        %v1510 = vadd.f32 0.0, %v1509
        %1511 = vmatmul.bf16.gmra.mxu0 %v1406
        %v1512 = vpop.f32.mrf.mxu0
        %v1513 = vpop.f32.mrf.mxu0
        %v1514 = vadd.f32 0.0, %v1513
        %1515 = vmatmul.bf16.gmra.mxu0 %v1409
        %v1516 = vpop.f32.mrf.mxu0
        %v1517 = vadd.f32 0.0, %v1516
        %v1518 = vpop.f32.mrf.mxu0
        %1519 = vmatmul.bf16.gmra.mxu0 %v1412
        %v1520 = vpop.f32.mrf.mxu0
        %v1521 = vadd.f32 0.0, %v1520
        %v1522 = vpop.f32.mrf.mxu0
        %v1523 = vadd.f32 0.0, %v1522
        %1524 = vmatmul.bf16.gmra.mxu0 %v1415
        %v1525 = vpop.f32.mrf.mxu0
        %v1526 = vpop.f32.mrf.mxu0
        %v1527 = vadd.f32 0.0, %v1526
        %1528 = vmatmul.bf16.gmra.mxu0 %v1418
        %v1529 = vpop.f32.mrf.mxu0
        %v1530 = vadd.f32 0.0, %v1529
        %v1531 = vpop.f32.mrf.mxu0
        %1532 = vdwg.mxu0
        %v1537 = vunpack.c.l.b16 %v1104
        %v1538 = vunpack.c.l.b16 %v1105
        %v1539 = vunpack.c.l.b16 %v1106
        %v1540 = vunpack.c.l.b16 %v1107
        %v1541 = vpack.c.b16 %v1538, %v1537
        %v1542 = vpack.c.b16 %v1540, %v1539
        %v1545 = vsel %vm1347, %v1113, 0
        %v1547 = vsel %vm1347, %v1114, 0
        %v1549 = vsel %vm1347, %v1115, 0
        %v1551 = vsel %vm1347, %v1116, 0
        %v1553 = vsel %vm1347, %v1117, 0
        %v1555 = vsel %vm1347, %v1118, 0
        %v1557 = vsel %vm1347, %v1119, 0
        %v1559 = vsel %vm1347, %v1120, 0
        %v1561 = vsel %vm1347, %v1121, 0
        %v1563 = vsel %vm1347, %v1122, 0
        %v1565 = vsel %vm1347, %v1123, 0
        %v1567 = vsel %vm1347, %v1124, 0
        %v1569 = vsel %vm1347, %v1125, 0
        %v1571 = vsel %vm1347, %v1126, 0
        %v1573 = vsel %vm1347, %v1127, 0
        %v1575 = vsel %vm1347, %v1128, 0
        %v1577 = vsel %vm1347, %v1129, 0
        %v1579 = vsel %vm1347, %v1130, 0
        %v1581 = vsel %vm1347, %v1131, 0
        %v1583 = vsel %vm1347, %v1132, 0
        %v1585 = vsel %vm1347, %v1133, 0
        %v1587 = vsel %vm1347, %v1134, 0
        %v1589 = vsel %vm1347, %v1135, 0
        %v1591 = vsel %vm1347, %v1136, 0
        %1593 = vmatpush.bf16.msra.mxu0 0
        %1594 = vmatpush.bf16.msra.mxu0 0
        %1595 = vmatpush.bf16.msra.mxu0 0
        %1596 = vmatpush.bf16.msra.mxu0 0
        %1597 = vmatpush.bf16.msra.mxu0 0
        %1598 = vmatpush.bf16.msra.mxu0 0
        %1599 = vmatpush.bf16.msra.mxu0 %v1542
        %1600 = vmatpush.bf16.msra.mxu0 %v1541
        %1601 = vmatmul.bf16.gmra.mxu0 %v1545
        %v1602 = vpop.f32.mrf.mxu0
        %v1603 = vadd.f32 %v1430, %v1602
        %v1604 = vpop.f32.mrf.mxu0
        %v1605 = vadd.f32 %v1432, %v1604
        %1606 = vmatmul.bf16.gmra.mxu0 %v1547
        %v1607 = vpop.f32.mrf.mxu0
        %v1608 = vpop.f32.mrf.mxu0
        %v1609 = vadd.f32 %v1436, %v1608
        %1610 = vmatmul.bf16.gmra.mxu0 %v1549
        %v1611 = vpop.f32.mrf.mxu0
        %v1612 = vadd.f32 %v1439, %v1611
        %v1613 = vpop.f32.mrf.mxu0
        %1614 = vmatmul.bf16.gmra.mxu0 %v1551
        %v1615 = vpop.f32.mrf.mxu0
        %v1616 = vadd.f32 %v1443, %v1615
        %v1617 = vpop.f32.mrf.mxu0
        %v1618 = vadd.f32 %v1445, %v1617
        %1619 = vmatmul.bf16.gmra.mxu0 %v1553
        %v1620 = vpop.f32.mrf.mxu0
        %v1621 = vpop.f32.mrf.mxu0
        %v1622 = vadd.f32 %v1449, %v1621
        %1623 = vmatmul.bf16.gmra.mxu0 %v1555
        %v1624 = vpop.f32.mrf.mxu0
        %v1625 = vadd.f32 %v1452, %v1624
        %v1626 = vpop.f32.mrf.mxu0
        %1627 = vmatmul.bf16.gmra.mxu0 %v1557
        %v1628 = vpop.f32.mrf.mxu0
        %v1629 = vadd.f32 %v1456, %v1628
        %v1630 = vpop.f32.mrf.mxu0
        %v1631 = vadd.f32 %v1458, %v1630
        %1632 = vmatmul.bf16.gmra.mxu0 %v1559
        %v1633 = vpop.f32.mrf.mxu0
        %v1634 = vpop.f32.mrf.mxu0
        %v1635 = vadd.f32 %v1462, %v1634
        %1636 = vmatmul.bf16.gmra.mxu0 %v1561
        %v1637 = vpop.f32.mrf.mxu0
        %v1638 = vadd.f32 %v1465, %v1637
        %v1639 = vpop.f32.mrf.mxu0
        %1640 = vmatmul.bf16.gmra.mxu0 %v1563
        %v1641 = vpop.f32.mrf.mxu0
        %v1642 = vadd.f32 %v1469, %v1641
        %v1643 = vpop.f32.mrf.mxu0
        %v1644 = vadd.f32 %v1471, %v1643
        %1645 = vmatmul.bf16.gmra.mxu0 %v1565
        %v1646 = vpop.f32.mrf.mxu0
        %v1647 = vpop.f32.mrf.mxu0
        %v1648 = vadd.f32 %v1475, %v1647
        %1649 = vmatmul.bf16.gmra.mxu0 %v1567
        %v1650 = vpop.f32.mrf.mxu0
        %v1651 = vadd.f32 %v1478, %v1650
        %v1652 = vpop.f32.mrf.mxu0
        %1653 = vmatmul.bf16.gmra.mxu0 %v1569
        %v1654 = vpop.f32.mrf.mxu0
        %v1655 = vadd.f32 %v1482, %v1654
        %v1656 = vpop.f32.mrf.mxu0
        %v1657 = vadd.f32 %v1484, %v1656
        %1658 = vmatmul.bf16.gmra.mxu0 %v1571
        %v1659 = vpop.f32.mrf.mxu0
        %v1660 = vpop.f32.mrf.mxu0
        %v1661 = vadd.f32 %v1488, %v1660
        %1662 = vmatmul.bf16.gmra.mxu0 %v1573
        %v1663 = vpop.f32.mrf.mxu0
        %v1664 = vadd.f32 %v1491, %v1663
        %v1665 = vpop.f32.mrf.mxu0
        %1666 = vmatmul.bf16.gmra.mxu0 %v1575
        %v1667 = vpop.f32.mrf.mxu0
        %v1668 = vadd.f32 %v1495, %v1667
        %v1669 = vpop.f32.mrf.mxu0
        %v1670 = vadd.f32 %v1497, %v1669
        %1671 = vmatmul.bf16.gmra.mxu0 %v1577
        %v1672 = vpop.f32.mrf.mxu0
        %v1673 = vpop.f32.mrf.mxu0
        %v1674 = vadd.f32 %v1501, %v1673
        %1675 = vmatmul.bf16.gmra.mxu0 %v1579
        %v1676 = vpop.f32.mrf.mxu0
        %v1677 = vadd.f32 %v1504, %v1676
        %v1678 = vpop.f32.mrf.mxu0
        %1679 = vmatmul.bf16.gmra.mxu0 %v1581
        %v1680 = vpop.f32.mrf.mxu0
        %v1681 = vadd.f32 %v1508, %v1680
        %v1682 = vpop.f32.mrf.mxu0
        %v1683 = vadd.f32 %v1510, %v1682
        %1684 = vmatmul.bf16.gmra.mxu0 %v1583
        %v1685 = vpop.f32.mrf.mxu0
        %v1686 = vpop.f32.mrf.mxu0
        %v1687 = vadd.f32 %v1514, %v1686
        %1688 = vmatmul.bf16.gmra.mxu0 %v1585
        %v1689 = vpop.f32.mrf.mxu0
        %v1690 = vadd.f32 %v1517, %v1689
        %v1691 = vpop.f32.mrf.mxu0
        %1692 = vmatmul.bf16.gmra.mxu0 %v1587
        %v1693 = vpop.f32.mrf.mxu0
        %v1694 = vadd.f32 %v1521, %v1693
        %v1695 = vpop.f32.mrf.mxu0
        %v1696 = vadd.f32 %v1523, %v1695
        %1697 = vmatmul.bf16.gmra.mxu0 %v1589
        %v1698 = vpop.f32.mrf.mxu0
        %v1699 = vpop.f32.mrf.mxu0
        %v1700 = vadd.f32 %v1527, %v1699
        %1701 = vmatmul.bf16.gmra.mxu0 %v1591
        %v1702 = vpop.f32.mrf.mxu0
        %v1703 = vadd.f32 %v1530, %v1702
        %v1704 = vpop.f32.mrf.mxu0
        %1705 = vdwg.mxu0
        %s1706 = scalar_lea.vmem %s3, 32
        %v1707 = vld [vmem:[%s1706] sm:$0xf]
        %v1708 = vld [vmem:[%s1706 + $0x4] sm:$0xf]
        %v1709 = vld [vmem:[%s1706 + $0x8] sm:$0xf]
        %v1710 = vld [vmem:[%s1706 + $0xc] sm:$0xf]
        %vm1711 = vcmask 1046528
        %v1712 = vrot.slane %v1113, 1
        %v1713 = vrot.slane %v1114, 1
        %v1714 = vsel %vm1711, %v1712, %v1713
        %v1715 = vrot.slane %v1115, 1
        %v1716 = vsel %vm1711, %v1713, %v1715
        %v1717 = vrot.slane %v1116, 1
        %v1718 = vsel %vm1711, %v1715, %v1717
        %v1719 = vrot.slane %v1117, 1
        %v1720 = vsel %vm1711, %v1717, %v1719
        %v1721 = vrot.slane %v1118, 1
        %v1722 = vsel %vm1711, %v1719, %v1721
        %v1723 = vrot.slane %v1119, 1
        %v1724 = vsel %vm1711, %v1721, %v1723
        %v1725 = vrot.slane %v1120, 1
        %v1726 = vsel %vm1711, %v1723, %v1725
        %v1727 = vrot.slane %v1121, 1
        %v1728 = vsel %vm1711, %v1725, %v1727
        %v1729 = vrot.slane %v1122, 1
        %v1730 = vsel %vm1711, %v1727, %v1729
        %v1731 = vrot.slane %v1123, 1
        %v1732 = vsel %vm1711, %v1729, %v1731
        %v1733 = vrot.slane %v1124, 1
        %v1734 = vsel %vm1711, %v1731, %v1733
        %v1735 = vrot.slane %v1125, 1
        %v1736 = vsel %vm1711, %v1733, %v1735
        %v1737 = vrot.slane %v1126, 1
        %v1738 = vsel %vm1711, %v1735, %v1737
        %v1739 = vrot.slane %v1127, 1
        %v1740 = vsel %vm1711, %v1737, %v1739
        %v1741 = vrot.slane %v1128, 1
        %v1742 = vsel %vm1711, %v1739, %v1741
        %v1743 = vrot.slane %v1129, 1
        %v1744 = vsel %vm1711, %v1741, %v1743
        %v1745 = vrot.slane %v1130, 1
        %v1746 = vsel %vm1711, %v1743, %v1745
        %v1747 = vrot.slane %v1131, 1
        %v1748 = vsel %vm1711, %v1745, %v1747
        %v1749 = vrot.slane %v1132, 1
        %v1750 = vsel %vm1711, %v1747, %v1749
        %v1751 = vrot.slane %v1133, 1
        %v1752 = vsel %vm1711, %v1749, %v1751
        %v1753 = vrot.slane %v1134, 1
        %v1754 = vsel %vm1711, %v1751, %v1753
        %v1755 = vrot.slane %v1135, 1
        %v1756 = vsel %vm1711, %v1753, %v1755
        %v1757 = vrot.slane %v1136, 1
        %v1758 = vsel %vm1711, %v1755, %v1757
        %v1759 = vrot.slane %v1137, 1
        %v1760 = vsel %vm1711, %v1757, %v1759
        %v1765 = vunpack.c.l.b16 %v1707
        %v1766 = vunpack.c.l.b16 %v1708
        %v1767 = vunpack.c.l.b16 %v1709
        %v1768 = vunpack.c.l.b16 %v1710
        %v1769 = vpack.c.b16 %v1766, %v1765
        %v1770 = vpack.c.b16 %v1768, %v1767
        %v1774 = vsel %vm1347, %v1714, 0
        %v1777 = vsel %vm1347, %v1716, 0
        %v1780 = vsel %vm1347, %v1718, 0
        %v1783 = vsel %vm1347, %v1720, 0
        %v1786 = vsel %vm1347, %v1722, 0
        %v1789 = vsel %vm1347, %v1724, 0
        %v1792 = vsel %vm1347, %v1726, 0
        %v1795 = vsel %vm1347, %v1728, 0
        %v1798 = vsel %vm1347, %v1730, 0
        %v1801 = vsel %vm1347, %v1732, 0
        %v1804 = vsel %vm1347, %v1734, 0
        %v1807 = vsel %vm1347, %v1736, 0
        %v1810 = vsel %vm1347, %v1738, 0
        %v1813 = vsel %vm1347, %v1740, 0
        %v1816 = vsel %vm1347, %v1742, 0
        %v1819 = vsel %vm1347, %v1744, 0
        %v1822 = vsel %vm1347, %v1746, 0
        %v1825 = vsel %vm1347, %v1748, 0
        %v1828 = vsel %vm1347, %v1750, 0
        %v1831 = vsel %vm1347, %v1752, 0
        %v1834 = vsel %vm1347, %v1754, 0
        %v1837 = vsel %vm1347, %v1756, 0
        %v1840 = vsel %vm1347, %v1758, 0
        %v1843 = vsel %vm1347, %v1760, 0
        %1845 = vmatpush.bf16.msra.mxu0 0
        %1846 = vmatpush.bf16.msra.mxu0 0
        %1847 = vmatpush.bf16.msra.mxu0 0
        %1848 = vmatpush.bf16.msra.mxu0 0
        %1849 = vmatpush.bf16.msra.mxu0 0
        %1850 = vmatpush.bf16.msra.mxu0 0
        %1851 = vmatpush.bf16.msra.mxu0 %v1770
        %1852 = vmatpush.bf16.msra.mxu0 %v1769
        %1853 = vmatmul.bf16.gmra.mxu0 %v1774
        %v1854 = vpop.f32.mrf.mxu0
        %v1855 = vadd.f32 0.0, %v1854
        %v1856 = vpop.f32.mrf.mxu0
        %v1857 = vadd.f32 0.0, %v1856
        %1858 = vmatmul.bf16.gmra.mxu0 %v1777
        %v1859 = vpop.f32.mrf.mxu0
        %v1860 = vpop.f32.mrf.mxu0
        %v1861 = vadd.f32 0.0, %v1860
        %1862 = vmatmul.bf16.gmra.mxu0 %v1780
        %v1863 = vpop.f32.mrf.mxu0
        %v1864 = vadd.f32 0.0, %v1863
        %v1865 = vpop.f32.mrf.mxu0
        %1866 = vmatmul.bf16.gmra.mxu0 %v1783
        %v1867 = vpop.f32.mrf.mxu0
        %v1868 = vadd.f32 0.0, %v1867
        %v1869 = vpop.f32.mrf.mxu0
        %v1870 = vadd.f32 0.0, %v1869
        %1871 = vmatmul.bf16.gmra.mxu0 %v1786
        %v1872 = vpop.f32.mrf.mxu0
        %v1873 = vpop.f32.mrf.mxu0
        %v1874 = vadd.f32 0.0, %v1873
        %1875 = vmatmul.bf16.gmra.mxu0 %v1789
        %v1876 = vpop.f32.mrf.mxu0
        %v1877 = vadd.f32 0.0, %v1876
        %v1878 = vpop.f32.mrf.mxu0
        %1879 = vmatmul.bf16.gmra.mxu0 %v1792
        %v1880 = vpop.f32.mrf.mxu0
        %v1881 = vadd.f32 0.0, %v1880
        %v1882 = vpop.f32.mrf.mxu0
        %v1883 = vadd.f32 0.0, %v1882
        %1884 = vmatmul.bf16.gmra.mxu0 %v1795
        %v1885 = vpop.f32.mrf.mxu0
        %v1886 = vpop.f32.mrf.mxu0
        %v1887 = vadd.f32 0.0, %v1886
        %1888 = vmatmul.bf16.gmra.mxu0 %v1798
        %v1889 = vpop.f32.mrf.mxu0
        %v1890 = vadd.f32 0.0, %v1889
        %v1891 = vpop.f32.mrf.mxu0
        %1892 = vmatmul.bf16.gmra.mxu0 %v1801
        %v1893 = vpop.f32.mrf.mxu0
        %v1894 = vadd.f32 0.0, %v1893
        %v1895 = vpop.f32.mrf.mxu0
        %v1896 = vadd.f32 0.0, %v1895
        %1897 = vmatmul.bf16.gmra.mxu0 %v1804
        %v1898 = vpop.f32.mrf.mxu0
        %v1899 = vpop.f32.mrf.mxu0
        %v1900 = vadd.f32 0.0, %v1899
        %1901 = vmatmul.bf16.gmra.mxu0 %v1807
        %v1902 = vpop.f32.mrf.mxu0
        %v1903 = vadd.f32 0.0, %v1902
        %v1904 = vpop.f32.mrf.mxu0
        %1905 = vmatmul.bf16.gmra.mxu0 %v1810
        %v1906 = vpop.f32.mrf.mxu0
        %v1907 = vadd.f32 0.0, %v1906
        %v1908 = vpop.f32.mrf.mxu0
        %v1909 = vadd.f32 0.0, %v1908
        %1910 = vmatmul.bf16.gmra.mxu0 %v1813
        %v1911 = vpop.f32.mrf.mxu0
        %v1912 = vpop.f32.mrf.mxu0
        %v1913 = vadd.f32 0.0, %v1912
        %1914 = vmatmul.bf16.gmra.mxu0 %v1816
        %v1915 = vpop.f32.mrf.mxu0
        %v1916 = vadd.f32 0.0, %v1915
        %v1917 = vpop.f32.mrf.mxu0
        %1918 = vmatmul.bf16.gmra.mxu0 %v1819
        %v1919 = vpop.f32.mrf.mxu0
        %v1920 = vadd.f32 0.0, %v1919
        %v1921 = vpop.f32.mrf.mxu0
        %v1922 = vadd.f32 0.0, %v1921
        %1923 = vmatmul.bf16.gmra.mxu0 %v1822
        %v1924 = vpop.f32.mrf.mxu0
        %v1925 = vpop.f32.mrf.mxu0
        %v1926 = vadd.f32 0.0, %v1925
        %1927 = vmatmul.bf16.gmra.mxu0 %v1825
        %v1928 = vpop.f32.mrf.mxu0
        %v1929 = vadd.f32 0.0, %v1928
        %v1930 = vpop.f32.mrf.mxu0
        %1931 = vmatmul.bf16.gmra.mxu0 %v1828
        %v1932 = vpop.f32.mrf.mxu0
        %v1933 = vadd.f32 0.0, %v1932
        %v1934 = vpop.f32.mrf.mxu0
        %v1935 = vadd.f32 0.0, %v1934
        %1936 = vmatmul.bf16.gmra.mxu0 %v1831
        %v1937 = vpop.f32.mrf.mxu0
        %v1938 = vpop.f32.mrf.mxu0
        %v1939 = vadd.f32 0.0, %v1938
        %1940 = vmatmul.bf16.gmra.mxu0 %v1834
        %v1941 = vpop.f32.mrf.mxu0
        %v1942 = vadd.f32 0.0, %v1941
        %v1943 = vpop.f32.mrf.mxu0
        %1944 = vmatmul.bf16.gmra.mxu0 %v1837
        %v1945 = vpop.f32.mrf.mxu0
        %v1946 = vadd.f32 0.0, %v1945
        %v1947 = vpop.f32.mrf.mxu0
        %v1948 = vadd.f32 0.0, %v1947
        %1949 = vmatmul.bf16.gmra.mxu0 %v1840
        %v1950 = vpop.f32.mrf.mxu0
        %v1951 = vpop.f32.mrf.mxu0
        %v1952 = vadd.f32 0.0, %v1951
        %1953 = vmatmul.bf16.gmra.mxu0 %v1843
        %v1954 = vpop.f32.mrf.mxu0
        %v1955 = vadd.f32 0.0, %v1954
        %v1956 = vpop.f32.mrf.mxu0
        %1957 = vdwg.mxu0
        %v1958 = vadd.f32 %v1603, %v1855
        %v1959 = vadd.f32 %v1605, %v1857
        %v1960 = vadd.f32 %v1609, %v1861
        %v1961 = vadd.f32 %v1612, %v1864
        %v1962 = vadd.f32 %v1616, %v1868
        %v1963 = vadd.f32 %v1618, %v1870
        %v1964 = vadd.f32 %v1622, %v1874
        %v1965 = vadd.f32 %v1625, %v1877
        %v1966 = vadd.f32 %v1629, %v1881
        %v1967 = vadd.f32 %v1631, %v1883
        %v1968 = vadd.f32 %v1635, %v1887
        %v1969 = vadd.f32 %v1638, %v1890
        %v1970 = vadd.f32 %v1642, %v1894
        %v1971 = vadd.f32 %v1644, %v1896
        %v1972 = vadd.f32 %v1648, %v1900
        %v1973 = vadd.f32 %v1651, %v1903
        %v1974 = vadd.f32 %v1655, %v1907
        %v1975 = vadd.f32 %v1657, %v1909
        %v1976 = vadd.f32 %v1661, %v1913
        %v1977 = vadd.f32 %v1664, %v1916
        %v1978 = vadd.f32 %v1668, %v1920
        %v1979 = vadd.f32 %v1670, %v1922
        %v1980 = vadd.f32 %v1674, %v1926
        %v1981 = vadd.f32 %v1677, %v1929
        %v1982 = vadd.f32 %v1681, %v1933
        %v1983 = vadd.f32 %v1683, %v1935
        %v1984 = vadd.f32 %v1687, %v1939
        %v1985 = vadd.f32 %v1690, %v1942
        %v1986 = vadd.f32 %v1694, %v1946
        %v1987 = vadd.f32 %v1696, %v1948
        %v1988 = vadd.f32 %v1700, %v1952
        %v1989 = vadd.f32 %v1703, %v1955
        %s1990 = scalar_lea.vmem %s3, 48
        %v1991 = vld [vmem:[%s1990] sm:$0xf]
        %v1992 = vld [vmem:[%s1990 + $0x4] sm:$0xf]
        %v1993 = vld [vmem:[%s1990 + $0x8] sm:$0xf]
        %v1994 = vld [vmem:[%s1990 + $0xc] sm:$0xf]
        %v1995 = vpack.c.b16 %v1053, %v1052
        %v1996 = vpack.c.b16 %v1055, %v1054
        %v1997 = vpack.c.b16 %v1057, %v1056
        %v1998 = vpack.c.b16 %v1059, %v1058
        %v1999 = vpack.c.b16 %v1061, %v1060
        %v2000 = vpack.c.b16 %v1063, %v1062
        %v2001 = vpack.c.b16 %v1065, %v1064
        %v2002 = vpack.c.b16 %v1067, %v1066
        %v2003 = vpack.c.b16 %v1069, %v1068
        %v2004 = vpack.c.b16 %v1071, %v1070
        %v2005 = vpack.c.b16 %v1073, %v1072
        %v2006 = vpack.c.b16 %v1075, %v1074
        %v2007 = vpack.c.b16 %v1077, %v1076
        %v2008 = vpack.c.b16 %v1079, %v1078
        %v2009 = vpack.c.b16 %v1081, %v1080
        %v2010 = vpack.c.b16 %v1083, %v1082
        %v2011 = vpack.c.b16 %v1085, %v1084
        %v2012 = vpack.c.b16 %v1087, %v1086
        %v2013 = vpack.c.b16 %v1089, %v1088
        %v2014 = vpack.c.b16 %v1091, %v1090
        %v2015 = vpack.c.b16 %v1093, %v1092
        %v2016 = vpack.c.b16 %v1095, %v1094
        %v2017 = vpack.c.b16 %v1097, %v1096
        %v2018 = vpack.c.b16 %v1099, %v1098
        %v2023 = vunpack.c.l.b16 %v1991
        %v2024 = vunpack.c.l.b16 %v1992
        %v2025 = vunpack.c.l.b16 %v1993
        %v2026 = vunpack.c.l.b16 %v1994
        %v2027 = vpack.c.b16 %v2024, %v2023
        %v2028 = vpack.c.b16 %v2026, %v2025
        %v2032 = vsel %vm1347, %v1995, 0
        %v2035 = vsel %vm1347, %v1996, 0
        %v2038 = vsel %vm1347, %v1997, 0
        %v2041 = vsel %vm1347, %v1998, 0
        %v2044 = vsel %vm1347, %v1999, 0
        %v2047 = vsel %vm1347, %v2000, 0
        %v2050 = vsel %vm1347, %v2001, 0
        %v2053 = vsel %vm1347, %v2002, 0
        %v2056 = vsel %vm1347, %v2003, 0
        %v2059 = vsel %vm1347, %v2004, 0
        %v2062 = vsel %vm1347, %v2005, 0
        %v2065 = vsel %vm1347, %v2006, 0
        %v2068 = vsel %vm1347, %v2007, 0
        %v2071 = vsel %vm1347, %v2008, 0
        %v2074 = vsel %vm1347, %v2009, 0
        %v2077 = vsel %vm1347, %v2010, 0
        %v2080 = vsel %vm1347, %v2011, 0
        %v2083 = vsel %vm1347, %v2012, 0
        %v2086 = vsel %vm1347, %v2013, 0
        %v2089 = vsel %vm1347, %v2014, 0
        %v2092 = vsel %vm1347, %v2015, 0
        %v2095 = vsel %vm1347, %v2016, 0
        %v2098 = vsel %vm1347, %v2017, 0
        %v2101 = vsel %vm1347, %v2018, 0
        %2103 = vmatpush.bf16.msra.mxu0 0
        %2104 = vmatpush.bf16.msra.mxu0 0
        %2105 = vmatpush.bf16.msra.mxu0 0
        %2106 = vmatpush.bf16.msra.mxu0 0
        %2107 = vmatpush.bf16.msra.mxu0 0
        %2108 = vmatpush.bf16.msra.mxu0 0
        %2109 = vmatpush.bf16.msra.mxu0 %v2028
        %2110 = vmatpush.bf16.msra.mxu0 %v2027
        %2111 = vmatmul.bf16.gmra.mxu0 %v2032
        %v2112 = vpop.f32.mrf.mxu0
        %v2113 = vadd.f32 0.0, %v2112
        %v2114 = vpop.f32.mrf.mxu0
        %v2115 = vadd.f32 0.0, %v2114
        %2116 = vmatmul.bf16.gmra.mxu0 %v2035
        %v2117 = vpop.f32.mrf.mxu0
        %v2118 = vpop.f32.mrf.mxu0
        %v2119 = vadd.f32 0.0, %v2118
        %2120 = vmatmul.bf16.gmra.mxu0 %v2038
        %v2121 = vpop.f32.mrf.mxu0
        %v2122 = vadd.f32 0.0, %v2121
        %v2123 = vpop.f32.mrf.mxu0
        %2124 = vmatmul.bf16.gmra.mxu0 %v2041
        %v2125 = vpop.f32.mrf.mxu0
        %v2126 = vadd.f32 0.0, %v2125
        %v2127 = vpop.f32.mrf.mxu0
        %v2128 = vadd.f32 0.0, %v2127
        %2129 = vmatmul.bf16.gmra.mxu0 %v2044
        %v2130 = vpop.f32.mrf.mxu0
        %v2131 = vpop.f32.mrf.mxu0
        %v2132 = vadd.f32 0.0, %v2131
        %2133 = vmatmul.bf16.gmra.mxu0 %v2047
        %v2134 = vpop.f32.mrf.mxu0
        %v2135 = vadd.f32 0.0, %v2134
        %v2136 = vpop.f32.mrf.mxu0
        %2137 = vmatmul.bf16.gmra.mxu0 %v2050
        %v2138 = vpop.f32.mrf.mxu0
        %v2139 = vadd.f32 0.0, %v2138
        %v2140 = vpop.f32.mrf.mxu0
        %v2141 = vadd.f32 0.0, %v2140
        %2142 = vmatmul.bf16.gmra.mxu0 %v2053
        %v2143 = vpop.f32.mrf.mxu0
        %v2144 = vpop.f32.mrf.mxu0
        %v2145 = vadd.f32 0.0, %v2144
        %2146 = vmatmul.bf16.gmra.mxu0 %v2056
        %v2147 = vpop.f32.mrf.mxu0
        %v2148 = vadd.f32 0.0, %v2147
        %v2149 = vpop.f32.mrf.mxu0
        %2150 = vmatmul.bf16.gmra.mxu0 %v2059
        %v2151 = vpop.f32.mrf.mxu0
        %v2152 = vadd.f32 0.0, %v2151
        %v2153 = vpop.f32.mrf.mxu0
        %v2154 = vadd.f32 0.0, %v2153
        %2155 = vmatmul.bf16.gmra.mxu0 %v2062
        %v2156 = vpop.f32.mrf.mxu0
        %v2157 = vpop.f32.mrf.mxu0
        %v2158 = vadd.f32 0.0, %v2157
        %2159 = vmatmul.bf16.gmra.mxu0 %v2065
        %v2160 = vpop.f32.mrf.mxu0
        %v2161 = vadd.f32 0.0, %v2160
        %v2162 = vpop.f32.mrf.mxu0
        %2163 = vmatmul.bf16.gmra.mxu0 %v2068
        %v2164 = vpop.f32.mrf.mxu0
        %v2165 = vadd.f32 0.0, %v2164
        %v2166 = vpop.f32.mrf.mxu0
        %v2167 = vadd.f32 0.0, %v2166
        %2168 = vmatmul.bf16.gmra.mxu0 %v2071
        %v2169 = vpop.f32.mrf.mxu0
        %v2170 = vpop.f32.mrf.mxu0
        %v2171 = vadd.f32 0.0, %v2170
        %2172 = vmatmul.bf16.gmra.mxu0 %v2074
        %v2173 = vpop.f32.mrf.mxu0
        %v2174 = vadd.f32 0.0, %v2173
        %v2175 = vpop.f32.mrf.mxu0
        %2176 = vmatmul.bf16.gmra.mxu0 %v2077
        %v2177 = vpop.f32.mrf.mxu0
        %v2178 = vadd.f32 0.0, %v2177
        %v2179 = vpop.f32.mrf.mxu0
        %v2180 = vadd.f32 0.0, %v2179
        %2181 = vmatmul.bf16.gmra.mxu0 %v2080
        %v2182 = vpop.f32.mrf.mxu0
        %v2183 = vpop.f32.mrf.mxu0
        %v2184 = vadd.f32 0.0, %v2183
        %2185 = vmatmul.bf16.gmra.mxu0 %v2083
        %v2186 = vpop.f32.mrf.mxu0
        %v2187 = vadd.f32 0.0, %v2186
        %v2188 = vpop.f32.mrf.mxu0
        %2189 = vmatmul.bf16.gmra.mxu0 %v2086
        %v2190 = vpop.f32.mrf.mxu0
        %v2191 = vadd.f32 0.0, %v2190
        %v2192 = vpop.f32.mrf.mxu0
        %v2193 = vadd.f32 0.0, %v2192
        %2194 = vmatmul.bf16.gmra.mxu0 %v2089
        %v2195 = vpop.f32.mrf.mxu0
        %v2196 = vpop.f32.mrf.mxu0
        %v2197 = vadd.f32 0.0, %v2196
        %2198 = vmatmul.bf16.gmra.mxu0 %v2092
        %v2199 = vpop.f32.mrf.mxu0
        %v2200 = vadd.f32 0.0, %v2199
        %v2201 = vpop.f32.mrf.mxu0
        %2202 = vmatmul.bf16.gmra.mxu0 %v2095
        %v2203 = vpop.f32.mrf.mxu0
        %v2204 = vadd.f32 0.0, %v2203
        %v2205 = vpop.f32.mrf.mxu0
        %v2206 = vadd.f32 0.0, %v2205
        %2207 = vmatmul.bf16.gmra.mxu0 %v2098
        %v2208 = vpop.f32.mrf.mxu0
        %v2209 = vpop.f32.mrf.mxu0
        %v2210 = vadd.f32 0.0, %v2209
        %2211 = vmatmul.bf16.gmra.mxu0 %v2101
        %v2212 = vpop.f32.mrf.mxu0
        %v2213 = vadd.f32 0.0, %v2212
        %v2214 = vpop.f32.mrf.mxu0
        %2215 = vdwg.mxu0
        %v2216 = vadd.f32 %v1958, %v2113
        %v2217 = vadd.f32 %v1959, %v2115
        %v2218 = vadd.f32 %v1960, %v2119
        %v2219 = vadd.f32 %v1961, %v2122
        %v2220 = vadd.f32 %v1962, %v2126
        %v2221 = vadd.f32 %v1963, %v2128
        %v2222 = vadd.f32 %v1964, %v2132
        %v2223 = vadd.f32 %v1965, %v2135
        %v2224 = vadd.f32 %v1966, %v2139
        %v2225 = vadd.f32 %v1967, %v2141
        %v2226 = vadd.f32 %v1968, %v2145
        %v2227 = vadd.f32 %v1969, %v2148
        %v2228 = vadd.f32 %v1970, %v2152
        %v2229 = vadd.f32 %v1971, %v2154
        %v2230 = vadd.f32 %v1972, %v2158
        %v2231 = vadd.f32 %v1973, %v2161
        %v2232 = vadd.f32 %v1974, %v2165
        %v2233 = vadd.f32 %v1975, %v2167
        %v2234 = vadd.f32 %v1976, %v2171
        %v2235 = vadd.f32 %v1977, %v2174
        %v2236 = vadd.f32 %v1978, %v2178
        %v2237 = vadd.f32 %v1979, %v2180
        %v2238 = vadd.f32 %v1980, %v2184
        %v2239 = vadd.f32 %v1981, %v2187
        %v2240 = vadd.f32 %v1982, %v2191
        %v2241 = vadd.f32 %v1983, %v2193
        %v2242 = vadd.f32 %v1984, %v2197
        %v2243 = vadd.f32 %v1985, %v2200
        %v2244 = vadd.f32 %v1986, %v2204
        %v2245 = vadd.f32 %v1987, %v2206
        %v2246 = vadd.f32 %v1988, %v2210
        %v2247 = vadd.f32 %v1989, %v2213
        %s2248 = scalar_lea.vmem %s3, 64
        %v2249 = vld [vmem:[%s2248] sm:$0xf]
        %v2250 = vld [vmem:[%s2248 + $0x4] sm:$0xf]
        %v2251 = vld [vmem:[%s2248 + $0x8] sm:$0xf]
        %v2252 = vld [vmem:[%s2248 + $0xc] sm:$0xf]
        %v2253 = vpack.c.b16 %v1100, %v1100
        %v2254 = vshrl.u32 %v1995, 16
        %v2256 = vshll.u32 %v1995, 16
        %v2258 = vrot.slane %v2256, 1
        %v2259 = vor.u32 %v2254, %v2258
        %v2260 = vshll.u32 %v1996, 16
        %v2262 = vrot.slane %v2260, 1
        %v2263 = vsel %vm1138, %v2259, %v2262
        %v2264 = vshrl.u32 %v1996, 16
        %v2266 = vor.u32 %v2264, %v2262
        %v2267 = vshll.u32 %v1997, 16
        %v2269 = vrot.slane %v2267, 1
        %v2270 = vsel %vm1138, %v2266, %v2269
        %v2271 = vshrl.u32 %v1997, 16
        %v2273 = vor.u32 %v2271, %v2269
        %v2274 = vshll.u32 %v1998, 16
        %v2276 = vrot.slane %v2274, 1
        %v2277 = vsel %vm1138, %v2273, %v2276
        %v2278 = vshrl.u32 %v1998, 16
        %v2280 = vor.u32 %v2278, %v2276
        %v2281 = vshll.u32 %v1999, 16
        %v2283 = vrot.slane %v2281, 1
        %v2284 = vsel %vm1138, %v2280, %v2283
        %v2285 = vshrl.u32 %v1999, 16
        %v2287 = vor.u32 %v2285, %v2283
        %v2288 = vshll.u32 %v2000, 16
        %v2290 = vrot.slane %v2288, 1
        %v2291 = vsel %vm1138, %v2287, %v2290
        %v2292 = vshrl.u32 %v2000, 16
        %v2294 = vor.u32 %v2292, %v2290
        %v2295 = vshll.u32 %v2001, 16
        %v2297 = vrot.slane %v2295, 1
        %v2298 = vsel %vm1138, %v2294, %v2297
        %v2299 = vshrl.u32 %v2001, 16
        %v2301 = vor.u32 %v2299, %v2297
        %v2302 = vshll.u32 %v2002, 16
        %v2304 = vrot.slane %v2302, 1
        %v2305 = vsel %vm1138, %v2301, %v2304
        %v2306 = vshrl.u32 %v2002, 16
        %v2308 = vor.u32 %v2306, %v2304
        %v2309 = vshll.u32 %v2003, 16
        %v2311 = vrot.slane %v2309, 1
        %v2312 = vsel %vm1138, %v2308, %v2311
        %v2313 = vshrl.u32 %v2003, 16
        %v2315 = vor.u32 %v2313, %v2311
        %v2316 = vshll.u32 %v2004, 16
        %v2318 = vrot.slane %v2316, 1
        %v2319 = vsel %vm1138, %v2315, %v2318
        %v2320 = vshrl.u32 %v2004, 16
        %v2322 = vor.u32 %v2320, %v2318
        %v2323 = vshll.u32 %v2005, 16
        %v2325 = vrot.slane %v2323, 1
        %v2326 = vsel %vm1138, %v2322, %v2325
        %v2327 = vshrl.u32 %v2005, 16
        %v2329 = vor.u32 %v2327, %v2325
        %v2330 = vshll.u32 %v2006, 16
        %v2332 = vrot.slane %v2330, 1
        %v2333 = vsel %vm1138, %v2329, %v2332
        %v2334 = vshrl.u32 %v2006, 16
        %v2336 = vor.u32 %v2334, %v2332
        %v2337 = vshll.u32 %v2007, 16
        %v2339 = vrot.slane %v2337, 1
        %v2340 = vsel %vm1138, %v2336, %v2339
        %v2341 = vshrl.u32 %v2007, 16
        %v2343 = vor.u32 %v2341, %v2339
        %v2344 = vshll.u32 %v2008, 16
        %v2346 = vrot.slane %v2344, 1
        %v2347 = vsel %vm1138, %v2343, %v2346
        %v2348 = vshrl.u32 %v2008, 16
        %v2350 = vor.u32 %v2348, %v2346
        %v2351 = vshll.u32 %v2009, 16
        %v2353 = vrot.slane %v2351, 1
        %v2354 = vsel %vm1138, %v2350, %v2353
        %v2355 = vshrl.u32 %v2009, 16
        %v2357 = vor.u32 %v2355, %v2353
        %v2358 = vshll.u32 %v2010, 16
        %v2360 = vrot.slane %v2358, 1
        %v2361 = vsel %vm1138, %v2357, %v2360
        %v2362 = vshrl.u32 %v2010, 16
        %v2364 = vor.u32 %v2362, %v2360
        %v2365 = vshll.u32 %v2011, 16
        %v2367 = vrot.slane %v2365, 1
        %v2368 = vsel %vm1138, %v2364, %v2367
        %v2369 = vshrl.u32 %v2011, 16
        %v2371 = vor.u32 %v2369, %v2367
        %v2372 = vshll.u32 %v2012, 16
        %v2374 = vrot.slane %v2372, 1
        %v2375 = vsel %vm1138, %v2371, %v2374
        %v2376 = vshrl.u32 %v2012, 16
        %v2378 = vor.u32 %v2376, %v2374
        %v2379 = vshll.u32 %v2013, 16
        %v2381 = vrot.slane %v2379, 1
        %v2382 = vsel %vm1138, %v2378, %v2381
        %v2383 = vshrl.u32 %v2013, 16
        %v2385 = vor.u32 %v2383, %v2381
        %v2386 = vshll.u32 %v2014, 16
        %v2388 = vrot.slane %v2386, 1
        %v2389 = vsel %vm1138, %v2385, %v2388
        %v2390 = vshrl.u32 %v2014, 16
        %v2392 = vor.u32 %v2390, %v2388
        %v2393 = vshll.u32 %v2015, 16
        %v2395 = vrot.slane %v2393, 1
        %v2396 = vsel %vm1138, %v2392, %v2395
        %v2397 = vshrl.u32 %v2015, 16
        %v2399 = vor.u32 %v2397, %v2395
        %v2400 = vshll.u32 %v2016, 16
        %v2402 = vrot.slane %v2400, 1
        %v2403 = vsel %vm1138, %v2399, %v2402
        %v2404 = vshrl.u32 %v2016, 16
        %v2406 = vor.u32 %v2404, %v2402
        %v2407 = vshll.u32 %v2017, 16
        %v2409 = vrot.slane %v2407, 1
        %v2410 = vsel %vm1138, %v2406, %v2409
        %v2411 = vshrl.u32 %v2017, 16
        %v2413 = vor.u32 %v2411, %v2409
        %v2414 = vshll.u32 %v2018, 16
        %v2416 = vrot.slane %v2414, 1
        %v2417 = vsel %vm1138, %v2413, %v2416
        %v2418 = vshrl.u32 %v2018, 16
        %v2420 = vor.u32 %v2418, %v2416
        %v2422 = vshll.u32 %v2253, 16
        %v2424 = vrot.slane %v2422, 1
        %v2425 = vsel %vm1138, %v2420, %v2424
        %v2430 = vunpack.c.l.b16 %v2249
        %v2431 = vunpack.c.l.b16 %v2250
        %v2432 = vunpack.c.l.b16 %v2251
        %v2433 = vunpack.c.l.b16 %v2252
        %v2434 = vpack.c.b16 %v2431, %v2430
        %v2435 = vpack.c.b16 %v2433, %v2432
        %v2439 = vsel %vm1347, %v2263, 0
        %v2442 = vsel %vm1347, %v2270, 0
        %v2445 = vsel %vm1347, %v2277, 0
        %v2448 = vsel %vm1347, %v2284, 0
        %v2451 = vsel %vm1347, %v2291, 0
        %v2454 = vsel %vm1347, %v2298, 0
        %v2457 = vsel %vm1347, %v2305, 0
        %v2460 = vsel %vm1347, %v2312, 0
        %v2463 = vsel %vm1347, %v2319, 0
        %v2466 = vsel %vm1347, %v2326, 0
        %v2469 = vsel %vm1347, %v2333, 0
        %v2472 = vsel %vm1347, %v2340, 0
        %v2475 = vsel %vm1347, %v2347, 0
        %v2478 = vsel %vm1347, %v2354, 0
        %v2481 = vsel %vm1347, %v2361, 0
        %v2484 = vsel %vm1347, %v2368, 0
        %v2487 = vsel %vm1347, %v2375, 0
        %v2490 = vsel %vm1347, %v2382, 0
        %v2493 = vsel %vm1347, %v2389, 0
        %v2496 = vsel %vm1347, %v2396, 0
        %v2499 = vsel %vm1347, %v2403, 0
        %v2502 = vsel %vm1347, %v2410, 0
        %v2505 = vsel %vm1347, %v2417, 0
        %v2508 = vsel %vm1347, %v2425, 0
        %2510 = vmatpush.bf16.msra.mxu0 0
        %2511 = vmatpush.bf16.msra.mxu0 0
        %2512 = vmatpush.bf16.msra.mxu0 0
        %2513 = vmatpush.bf16.msra.mxu0 0
        %2514 = vmatpush.bf16.msra.mxu0 0
        %2515 = vmatpush.bf16.msra.mxu0 0
        %2516 = vmatpush.bf16.msra.mxu0 %v2435
        %2517 = vmatpush.bf16.msra.mxu0 %v2434
        %2518 = vmatmul.bf16.gmra.mxu0 %v2439
        %v2519 = vpop.f32.mrf.mxu0
        %v2520 = vadd.f32 0.0, %v2519
        %v2521 = vpop.f32.mrf.mxu0
        %v2522 = vadd.f32 0.0, %v2521
        %2523 = vmatmul.bf16.gmra.mxu0 %v2442
        %v2524 = vpop.f32.mrf.mxu0
        %v2525 = vpop.f32.mrf.mxu0
        %v2526 = vadd.f32 0.0, %v2525
        %2527 = vmatmul.bf16.gmra.mxu0 %v2445
        %v2528 = vpop.f32.mrf.mxu0
        %v2529 = vadd.f32 0.0, %v2528
        %v2530 = vpop.f32.mrf.mxu0
        %2531 = vmatmul.bf16.gmra.mxu0 %v2448
        %v2532 = vpop.f32.mrf.mxu0
        %v2533 = vadd.f32 0.0, %v2532
        %v2534 = vpop.f32.mrf.mxu0
        %v2535 = vadd.f32 0.0, %v2534
        %2536 = vmatmul.bf16.gmra.mxu0 %v2451
        %v2537 = vpop.f32.mrf.mxu0
        %v2538 = vpop.f32.mrf.mxu0
        %v2539 = vadd.f32 0.0, %v2538
        %2540 = vmatmul.bf16.gmra.mxu0 %v2454
        %v2541 = vpop.f32.mrf.mxu0
        %v2542 = vadd.f32 0.0, %v2541
        %v2543 = vpop.f32.mrf.mxu0
        %2544 = vmatmul.bf16.gmra.mxu0 %v2457
        %v2545 = vpop.f32.mrf.mxu0
        %v2546 = vadd.f32 0.0, %v2545
        %v2547 = vpop.f32.mrf.mxu0
        %v2548 = vadd.f32 0.0, %v2547
        %2549 = vmatmul.bf16.gmra.mxu0 %v2460
        %v2550 = vpop.f32.mrf.mxu0
        %v2551 = vpop.f32.mrf.mxu0
        %v2552 = vadd.f32 0.0, %v2551
        %2553 = vmatmul.bf16.gmra.mxu0 %v2463
        %v2554 = vpop.f32.mrf.mxu0
        %v2555 = vadd.f32 0.0, %v2554
        %v2556 = vpop.f32.mrf.mxu0
        %2557 = vmatmul.bf16.gmra.mxu0 %v2466
        %v2558 = vpop.f32.mrf.mxu0
        %v2559 = vadd.f32 0.0, %v2558
        %v2560 = vpop.f32.mrf.mxu0
        %v2561 = vadd.f32 0.0, %v2560
        %2562 = vmatmul.bf16.gmra.mxu0 %v2469
        %v2563 = vpop.f32.mrf.mxu0
        %v2564 = vpop.f32.mrf.mxu0
        %v2565 = vadd.f32 0.0, %v2564
        %2566 = vmatmul.bf16.gmra.mxu0 %v2472
        %v2567 = vpop.f32.mrf.mxu0
        %v2568 = vadd.f32 0.0, %v2567
        %v2569 = vpop.f32.mrf.mxu0
        %2570 = vmatmul.bf16.gmra.mxu0 %v2475
        %v2571 = vpop.f32.mrf.mxu0
        %v2572 = vadd.f32 0.0, %v2571
        %v2573 = vpop.f32.mrf.mxu0
        %v2574 = vadd.f32 0.0, %v2573
        %2575 = vmatmul.bf16.gmra.mxu0 %v2478
        %v2576 = vpop.f32.mrf.mxu0
        %v2577 = vpop.f32.mrf.mxu0
        %v2578 = vadd.f32 0.0, %v2577
        %2579 = vmatmul.bf16.gmra.mxu0 %v2481
        %v2580 = vpop.f32.mrf.mxu0
        %v2581 = vadd.f32 0.0, %v2580
        %v2582 = vpop.f32.mrf.mxu0
        %2583 = vmatmul.bf16.gmra.mxu0 %v2484
        %v2584 = vpop.f32.mrf.mxu0
        %v2585 = vadd.f32 0.0, %v2584
        %v2586 = vpop.f32.mrf.mxu0
        %v2587 = vadd.f32 0.0, %v2586
        %2588 = vmatmul.bf16.gmra.mxu0 %v2487
        %v2589 = vpop.f32.mrf.mxu0
        %v2590 = vpop.f32.mrf.mxu0
        %v2591 = vadd.f32 0.0, %v2590
        %2592 = vmatmul.bf16.gmra.mxu0 %v2490
        %v2593 = vpop.f32.mrf.mxu0
        %v2594 = vadd.f32 0.0, %v2593
        %v2595 = vpop.f32.mrf.mxu0
        %2596 = vmatmul.bf16.gmra.mxu0 %v2493
        %v2597 = vpop.f32.mrf.mxu0
        %v2598 = vadd.f32 0.0, %v2597
        %v2599 = vpop.f32.mrf.mxu0
        %v2600 = vadd.f32 0.0, %v2599
        %2601 = vmatmul.bf16.gmra.mxu0 %v2496
        %v2602 = vpop.f32.mrf.mxu0
        %v2603 = vpop.f32.mrf.mxu0
        %v2604 = vadd.f32 0.0, %v2603
        %2605 = vmatmul.bf16.gmra.mxu0 %v2499
        %v2606 = vpop.f32.mrf.mxu0
        %v2607 = vadd.f32 0.0, %v2606
        %v2608 = vpop.f32.mrf.mxu0
        %2609 = vmatmul.bf16.gmra.mxu0 %v2502
        %v2610 = vpop.f32.mrf.mxu0
        %v2611 = vadd.f32 0.0, %v2610
        %v2612 = vpop.f32.mrf.mxu0
        %v2613 = vadd.f32 0.0, %v2612
        %2614 = vmatmul.bf16.gmra.mxu0 %v2505
        %v2615 = vpop.f32.mrf.mxu0
        %v2616 = vpop.f32.mrf.mxu0
        %v2617 = vadd.f32 0.0, %v2616
        %2618 = vmatmul.bf16.gmra.mxu0 %v2508
        %v2619 = vpop.f32.mrf.mxu0
        %v2620 = vadd.f32 0.0, %v2619
        %v2621 = vpop.f32.mrf.mxu0
        %2622 = vdwg.mxu0
        %v2623 = vadd.f32 %v2216, %v2520
        %v2624 = vadd.f32 %v2217, %v2522
        %v2625 = vadd.f32 %v2218, %v2526
        %v2626 = vadd.f32 %v2219, %v2529
        %v2627 = vadd.f32 %v2220, %v2533
        %v2628 = vadd.f32 %v2221, %v2535
        %v2629 = vadd.f32 %v2222, %v2539
        %v2630 = vadd.f32 %v2223, %v2542
        %v2631 = vadd.f32 %v2224, %v2546
        %v2632 = vadd.f32 %v2225, %v2548
        %v2633 = vadd.f32 %v2226, %v2552
        %v2634 = vadd.f32 %v2227, %v2555
        %v2635 = vadd.f32 %v2228, %v2559
        %v2636 = vadd.f32 %v2229, %v2561
        %v2637 = vadd.f32 %v2230, %v2565
        %v2638 = vadd.f32 %v2231, %v2568
        %v2639 = vadd.f32 %v2232, %v2572
        %v2640 = vadd.f32 %v2233, %v2574
        %v2641 = vadd.f32 %v2234, %v2578
        %v2642 = vadd.f32 %v2235, %v2581
        %v2643 = vadd.f32 %v2236, %v2585
        %v2644 = vadd.f32 %v2237, %v2587
        %v2645 = vadd.f32 %v2238, %v2591
        %v2646 = vadd.f32 %v2239, %v2594
        %v2647 = vadd.f32 %v2240, %v2598
        %v2648 = vadd.f32 %v2241, %v2600
        %v2649 = vadd.f32 %v2242, %v2604
        %v2650 = vadd.f32 %v2243, %v2607
        %v2651 = vadd.f32 %v2244, %v2611
        %v2652 = vadd.f32 %v2245, %v2613
        %v2653 = vadd.f32 %v2246, %v2617
        %v2654 = vadd.f32 %v2247, %v2620
        %s2655 = scalar_lea.vmem %s3, 80
        %v2656 = vld [vmem:[%s2655] sm:$0xf]
        %v2657 = vld [vmem:[%s2655 + $0x4] sm:$0xf]
        %v2658 = vld [vmem:[%s2655 + $0x8] sm:$0xf]
        %v2659 = vld [vmem:[%s2655 + $0xc] sm:$0xf]
        %v2660 = vrot.slane %v1995, 1
        %v2661 = vrot.slane %v1996, 1
        %v2662 = vsel %vm1711, %v2660, %v2661
        %v2663 = vrot.slane %v1997, 1
        %v2664 = vsel %vm1711, %v2661, %v2663
        %v2665 = vrot.slane %v1998, 1
        %v2666 = vsel %vm1711, %v2663, %v2665
        %v2667 = vrot.slane %v1999, 1
        %v2668 = vsel %vm1711, %v2665, %v2667
        %v2669 = vrot.slane %v2000, 1
        %v2670 = vsel %vm1711, %v2667, %v2669
        %v2671 = vrot.slane %v2001, 1
        %v2672 = vsel %vm1711, %v2669, %v2671
        %v2673 = vrot.slane %v2002, 1
        %v2674 = vsel %vm1711, %v2671, %v2673
        %v2675 = vrot.slane %v2003, 1
        %v2676 = vsel %vm1711, %v2673, %v2675
        %v2677 = vrot.slane %v2004, 1
        %v2678 = vsel %vm1711, %v2675, %v2677
        %v2679 = vrot.slane %v2005, 1
        %v2680 = vsel %vm1711, %v2677, %v2679
        %v2681 = vrot.slane %v2006, 1
        %v2682 = vsel %vm1711, %v2679, %v2681
        %v2683 = vrot.slane %v2007, 1
        %v2684 = vsel %vm1711, %v2681, %v2683
        %v2685 = vrot.slane %v2008, 1
        %v2686 = vsel %vm1711, %v2683, %v2685
        %v2687 = vrot.slane %v2009, 1
        %v2688 = vsel %vm1711, %v2685, %v2687
        %v2689 = vrot.slane %v2010, 1
        %v2690 = vsel %vm1711, %v2687, %v2689
        %v2691 = vrot.slane %v2011, 1
        %v2692 = vsel %vm1711, %v2689, %v2691
        %v2693 = vrot.slane %v2012, 1
        %v2694 = vsel %vm1711, %v2691, %v2693
        %v2695 = vrot.slane %v2013, 1
        %v2696 = vsel %vm1711, %v2693, %v2695
        %v2697 = vrot.slane %v2014, 1
        %v2698 = vsel %vm1711, %v2695, %v2697
        %v2699 = vrot.slane %v2015, 1
        %v2700 = vsel %vm1711, %v2697, %v2699
        %v2701 = vrot.slane %v2016, 1
        %v2702 = vsel %vm1711, %v2699, %v2701
        %v2703 = vrot.slane %v2017, 1
        %v2704 = vsel %vm1711, %v2701, %v2703
        %v2705 = vrot.slane %v2018, 1
        %v2706 = vsel %vm1711, %v2703, %v2705
        %v2707 = vrot.slane %v2253, 1
        %v2708 = vsel %vm1711, %v2705, %v2707
        %v2713 = vunpack.c.l.b16 %v2656
        %v2714 = vunpack.c.l.b16 %v2657
        %v2715 = vunpack.c.l.b16 %v2658
        %v2716 = vunpack.c.l.b16 %v2659
        %v2717 = vpack.c.b16 %v2714, %v2713
        %v2718 = vpack.c.b16 %v2716, %v2715
        %v2722 = vsel %vm1347, %v2662, 0
        %v2725 = vsel %vm1347, %v2664, 0
        %v2728 = vsel %vm1347, %v2666, 0
        %v2731 = vsel %vm1347, %v2668, 0
        %v2734 = vsel %vm1347, %v2670, 0
        %v2737 = vsel %vm1347, %v2672, 0
        %v2740 = vsel %vm1347, %v2674, 0
        %v2743 = vsel %vm1347, %v2676, 0
        %v2746 = vsel %vm1347, %v2678, 0
        %v2749 = vsel %vm1347, %v2680, 0
        %v2752 = vsel %vm1347, %v2682, 0
        %v2755 = vsel %vm1347, %v2684, 0
        %v2758 = vsel %vm1347, %v2686, 0
        %v2761 = vsel %vm1347, %v2688, 0
        %v2764 = vsel %vm1347, %v2690, 0
        %v2767 = vsel %vm1347, %v2692, 0
        %v2770 = vsel %vm1347, %v2694, 0
        %v2773 = vsel %vm1347, %v2696, 0
        %v2776 = vsel %vm1347, %v2698, 0
        %v2779 = vsel %vm1347, %v2700, 0
        %v2782 = vsel %vm1347, %v2702, 0
        %v2785 = vsel %vm1347, %v2704, 0
        %v2788 = vsel %vm1347, %v2706, 0
        %v2791 = vsel %vm1347, %v2708, 0
        %2793 = vmatpush.bf16.msra.mxu0 0
        %2794 = vmatpush.bf16.msra.mxu0 0
        %2795 = vmatpush.bf16.msra.mxu0 0
        %2796 = vmatpush.bf16.msra.mxu0 0
        %2797 = vmatpush.bf16.msra.mxu0 0
        %2798 = vmatpush.bf16.msra.mxu0 0
        %2799 = vmatpush.bf16.msra.mxu0 %v2718
        %2800 = vmatpush.bf16.msra.mxu0 %v2717
        %2801 = vmatmul.bf16.gmra.mxu0 %v2722
        %v2802 = vpop.f32.mrf.mxu0
        %v2803 = vadd.f32 0.0, %v2802
        %v2804 = vpop.f32.mrf.mxu0
        %v2805 = vadd.f32 0.0, %v2804
        %2806 = vmatmul.bf16.gmra.mxu0 %v2725
        %v2807 = vpop.f32.mrf.mxu0
        %v2808 = vpop.f32.mrf.mxu0
        %v2809 = vadd.f32 0.0, %v2808
        %2810 = vmatmul.bf16.gmra.mxu0 %v2728
        %v2811 = vpop.f32.mrf.mxu0
        %v2812 = vadd.f32 0.0, %v2811
        %v2813 = vpop.f32.mrf.mxu0
        %2814 = vmatmul.bf16.gmra.mxu0 %v2731
        %v2815 = vpop.f32.mrf.mxu0
        %v2816 = vadd.f32 0.0, %v2815
        %v2817 = vpop.f32.mrf.mxu0
        %v2818 = vadd.f32 0.0, %v2817
        %2819 = vmatmul.bf16.gmra.mxu0 %v2734
        %v2820 = vpop.f32.mrf.mxu0
        %v2821 = vpop.f32.mrf.mxu0
        %v2822 = vadd.f32 0.0, %v2821
        %2823 = vmatmul.bf16.gmra.mxu0 %v2737
        %v2824 = vpop.f32.mrf.mxu0
        %v2825 = vadd.f32 0.0, %v2824
        %v2826 = vpop.f32.mrf.mxu0
        %2827 = vmatmul.bf16.gmra.mxu0 %v2740
        %v2828 = vpop.f32.mrf.mxu0
        %v2829 = vadd.f32 0.0, %v2828
        %v2830 = vpop.f32.mrf.mxu0
        %v2831 = vadd.f32 0.0, %v2830
        %2832 = vmatmul.bf16.gmra.mxu0 %v2743
        %v2833 = vpop.f32.mrf.mxu0
        %v2834 = vpop.f32.mrf.mxu0
        %v2835 = vadd.f32 0.0, %v2834
        %2836 = vmatmul.bf16.gmra.mxu0 %v2746
        %v2837 = vpop.f32.mrf.mxu0
        %v2838 = vadd.f32 0.0, %v2837
        %v2839 = vpop.f32.mrf.mxu0
        %2840 = vmatmul.bf16.gmra.mxu0 %v2749
        %v2841 = vpop.f32.mrf.mxu0
        %v2842 = vadd.f32 0.0, %v2841
        %v2843 = vpop.f32.mrf.mxu0
        %v2844 = vadd.f32 0.0, %v2843
        %2845 = vmatmul.bf16.gmra.mxu0 %v2752
        %v2846 = vpop.f32.mrf.mxu0
        %v2847 = vpop.f32.mrf.mxu0
        %v2848 = vadd.f32 0.0, %v2847
        %2849 = vmatmul.bf16.gmra.mxu0 %v2755
        %v2850 = vpop.f32.mrf.mxu0
        %v2851 = vadd.f32 0.0, %v2850
        %v2852 = vpop.f32.mrf.mxu0
        %2853 = vmatmul.bf16.gmra.mxu0 %v2758
        %v2854 = vpop.f32.mrf.mxu0
        %v2855 = vadd.f32 0.0, %v2854
        %v2856 = vpop.f32.mrf.mxu0
        %v2857 = vadd.f32 0.0, %v2856
        %2858 = vmatmul.bf16.gmra.mxu0 %v2761
        %v2859 = vpop.f32.mrf.mxu0
        %v2860 = vpop.f32.mrf.mxu0
        %v2861 = vadd.f32 0.0, %v2860
        %2862 = vmatmul.bf16.gmra.mxu0 %v2764
        %v2863 = vpop.f32.mrf.mxu0
        %v2864 = vadd.f32 0.0, %v2863
        %v2865 = vpop.f32.mrf.mxu0
        %2866 = vmatmul.bf16.gmra.mxu0 %v2767
        %v2867 = vpop.f32.mrf.mxu0
        %v2868 = vadd.f32 0.0, %v2867
        %v2869 = vpop.f32.mrf.mxu0
        %v2870 = vadd.f32 0.0, %v2869
        %2871 = vmatmul.bf16.gmra.mxu0 %v2770
        %v2872 = vpop.f32.mrf.mxu0
        %v2873 = vpop.f32.mrf.mxu0
        %v2874 = vadd.f32 0.0, %v2873
        %2875 = vmatmul.bf16.gmra.mxu0 %v2773
        %v2876 = vpop.f32.mrf.mxu0
        %v2877 = vadd.f32 0.0, %v2876
        %v2878 = vpop.f32.mrf.mxu0
        %2879 = vmatmul.bf16.gmra.mxu0 %v2776
        %v2880 = vpop.f32.mrf.mxu0
        %v2881 = vadd.f32 0.0, %v2880
        %v2882 = vpop.f32.mrf.mxu0
        %v2883 = vadd.f32 0.0, %v2882
        %2884 = vmatmul.bf16.gmra.mxu0 %v2779
        %v2885 = vpop.f32.mrf.mxu0
        %v2886 = vpop.f32.mrf.mxu0
        %v2887 = vadd.f32 0.0, %v2886
        %2888 = vmatmul.bf16.gmra.mxu0 %v2782
        %v2889 = vpop.f32.mrf.mxu0
        %v2890 = vadd.f32 0.0, %v2889
        %v2891 = vpop.f32.mrf.mxu0
        %2892 = vmatmul.bf16.gmra.mxu0 %v2785
        %v2893 = vpop.f32.mrf.mxu0
        %v2894 = vadd.f32 0.0, %v2893
        %v2895 = vpop.f32.mrf.mxu0
        %v2896 = vadd.f32 0.0, %v2895
        %2897 = vmatmul.bf16.gmra.mxu0 %v2788
        %v2898 = vpop.f32.mrf.mxu0
        %v2899 = vpop.f32.mrf.mxu0
        %v2900 = vadd.f32 0.0, %v2899
        %2901 = vmatmul.bf16.gmra.mxu0 %v2791
        %v2902 = vpop.f32.mrf.mxu0
        %v2903 = vadd.f32 0.0, %v2902
        %v2904 = vpop.f32.mrf.mxu0
        %2905 = vdwg.mxu0
        %v2906 = vadd.f32 %v2623, %v2803
        %v2907 = vadd.f32 %v2624, %v2805
        %v2908 = vadd.f32 %v2625, %v2809
        %v2909 = vadd.f32 %v2626, %v2812
        %v2910 = vadd.f32 %v2627, %v2816
        %v2911 = vadd.f32 %v2628, %v2818
        %v2912 = vadd.f32 %v2629, %v2822
        %v2913 = vadd.f32 %v2630, %v2825
        %v2914 = vadd.f32 %v2631, %v2829
        %v2915 = vadd.f32 %v2632, %v2831
        %v2916 = vadd.f32 %v2633, %v2835
        %v2917 = vadd.f32 %v2634, %v2838
        %v2918 = vadd.f32 %v2635, %v2842
        %v2919 = vadd.f32 %v2636, %v2844
        %v2920 = vadd.f32 %v2637, %v2848
        %v2921 = vadd.f32 %v2638, %v2851
        %v2922 = vadd.f32 %v2639, %v2855
        %v2923 = vadd.f32 %v2640, %v2857
        %v2924 = vadd.f32 %v2641, %v2861
        %v2925 = vadd.f32 %v2642, %v2864
        %v2926 = vadd.f32 %v2643, %v2868
        %v2927 = vadd.f32 %v2644, %v2870
        %v2928 = vadd.f32 %v2645, %v2874
        %v2929 = vadd.f32 %v2646, %v2877
        %v2930 = vadd.f32 %v2647, %v2881
        %v2931 = vadd.f32 %v2648, %v2883
        %v2932 = vadd.f32 %v2649, %v2887
        %v2933 = vadd.f32 %v2650, %v2890
        %v2934 = vadd.f32 %v2651, %v2894
        %v2935 = vadd.f32 %v2652, %v2896
        %v2936 = vadd.f32 %v2653, %v2900
        %v2937 = vadd.f32 %v2654, %v2903
        %s2938 = scalar_lea.vmem %s3, 96
        %v2939 = vld [vmem:[%s2938] sm:$0xf]
        %v2940 = vld [vmem:[%s2938 + $0x4] sm:$0xf]
        %v2941 = vld [vmem:[%s2938 + $0x8] sm:$0xf]
        %v2942 = vld [vmem:[%s2938 + $0xc] sm:$0xf]
        %v2943 = vpack.c.b16 %v1098, %v1097
        %v2944 = vpack.c.b16 %v1100, %v1099
        %v2945 = vpack.c.b16 %v1102, %v1101
        %v2950 = vunpack.c.l.b16 %v2939
        %v2951 = vunpack.c.l.b16 %v2940
        %v2952 = vunpack.c.l.b16 %v2941
        %v2953 = vunpack.c.l.b16 %v2942
        %v2954 = vpack.c.b16 %v2951, %v2950
        %v2955 = vpack.c.b16 %v2953, %v2952
        %v2959 = vsel %vm1347, %v2943, 0
        %v2962 = vsel %vm1347, %v2944, 0
        %v2965 = vsel %vm1347, %v2945, 0
        %2967 = vmatpush.bf16.msra.mxu0 0
        %2968 = vmatpush.bf16.msra.mxu0 0
        %2969 = vmatpush.bf16.msra.mxu0 0
        %2970 = vmatpush.bf16.msra.mxu0 0
        %2971 = vmatpush.bf16.msra.mxu0 0
        %2972 = vmatpush.bf16.msra.mxu0 0
        %2973 = vmatpush.bf16.msra.mxu0 %v2955
        %2974 = vmatpush.bf16.msra.mxu0 %v2954
        %2975 = vmatmul.bf16.gmra.mxu0 %v1551
        %v2976 = vpop.f32.mrf.mxu0
        %v2977 = vadd.f32 0.0, %v2976
        %v2978 = vpop.f32.mrf.mxu0
        %v2979 = vadd.f32 0.0, %v2978
        %2980 = vmatmul.bf16.gmra.mxu0 %v1553
        %v2981 = vpop.f32.mrf.mxu0
        %v2982 = vpop.f32.mrf.mxu0
        %v2983 = vadd.f32 0.0, %v2982
        %2984 = vmatmul.bf16.gmra.mxu0 %v1555
        %v2985 = vpop.f32.mrf.mxu0
        %v2986 = vadd.f32 0.0, %v2985
        %v2987 = vpop.f32.mrf.mxu0
        %2988 = vmatmul.bf16.gmra.mxu0 %v1557
        %v2989 = vpop.f32.mrf.mxu0
        %v2990 = vadd.f32 0.0, %v2989
        %v2991 = vpop.f32.mrf.mxu0
        %v2992 = vadd.f32 0.0, %v2991
        %2993 = vmatmul.bf16.gmra.mxu0 %v1559
        %v2994 = vpop.f32.mrf.mxu0
        %v2995 = vpop.f32.mrf.mxu0
        %v2996 = vadd.f32 0.0, %v2995
        %2997 = vmatmul.bf16.gmra.mxu0 %v1561
        %v2998 = vpop.f32.mrf.mxu0
        %v2999 = vadd.f32 0.0, %v2998
        %v3000 = vpop.f32.mrf.mxu0
        %3001 = vmatmul.bf16.gmra.mxu0 %v1563
        %v3002 = vpop.f32.mrf.mxu0
        %v3003 = vadd.f32 0.0, %v3002
        %v3004 = vpop.f32.mrf.mxu0
        %v3005 = vadd.f32 0.0, %v3004
        %3006 = vmatmul.bf16.gmra.mxu0 %v1565
        %v3007 = vpop.f32.mrf.mxu0
        %v3008 = vpop.f32.mrf.mxu0
        %v3009 = vadd.f32 0.0, %v3008
        %3010 = vmatmul.bf16.gmra.mxu0 %v1567
        %v3011 = vpop.f32.mrf.mxu0
        %v3012 = vadd.f32 0.0, %v3011
        %v3013 = vpop.f32.mrf.mxu0
        %3014 = vmatmul.bf16.gmra.mxu0 %v1569
        %v3015 = vpop.f32.mrf.mxu0
        %v3016 = vadd.f32 0.0, %v3015
        %v3017 = vpop.f32.mrf.mxu0
        %v3018 = vadd.f32 0.0, %v3017
        %3019 = vmatmul.bf16.gmra.mxu0 %v1571
        %v3020 = vpop.f32.mrf.mxu0
        %v3021 = vpop.f32.mrf.mxu0
        %v3022 = vadd.f32 0.0, %v3021
        %3023 = vmatmul.bf16.gmra.mxu0 %v1573
        %v3024 = vpop.f32.mrf.mxu0
        %v3025 = vadd.f32 0.0, %v3024
        %v3026 = vpop.f32.mrf.mxu0
        %3027 = vmatmul.bf16.gmra.mxu0 %v1575
        %v3028 = vpop.f32.mrf.mxu0
        %v3029 = vadd.f32 0.0, %v3028
        %v3030 = vpop.f32.mrf.mxu0
        %v3031 = vadd.f32 0.0, %v3030
        %3032 = vmatmul.bf16.gmra.mxu0 %v1577
        %v3033 = vpop.f32.mrf.mxu0
        %v3034 = vpop.f32.mrf.mxu0
        %v3035 = vadd.f32 0.0, %v3034
        %3036 = vmatmul.bf16.gmra.mxu0 %v1579
        %v3037 = vpop.f32.mrf.mxu0
        %v3038 = vadd.f32 0.0, %v3037
        %v3039 = vpop.f32.mrf.mxu0
        %3040 = vmatmul.bf16.gmra.mxu0 %v1581
        %v3041 = vpop.f32.mrf.mxu0
        %v3042 = vadd.f32 0.0, %v3041
        %v3043 = vpop.f32.mrf.mxu0
        %v3044 = vadd.f32 0.0, %v3043
        %3045 = vmatmul.bf16.gmra.mxu0 %v1583
        %v3046 = vpop.f32.mrf.mxu0
        %v3047 = vpop.f32.mrf.mxu0
        %v3048 = vadd.f32 0.0, %v3047
        %3049 = vmatmul.bf16.gmra.mxu0 %v1585
        %v3050 = vpop.f32.mrf.mxu0
        %v3051 = vadd.f32 0.0, %v3050
        %v3052 = vpop.f32.mrf.mxu0
        %3053 = vmatmul.bf16.gmra.mxu0 %v1587
        %v3054 = vpop.f32.mrf.mxu0
        %v3055 = vadd.f32 0.0, %v3054
        %v3056 = vpop.f32.mrf.mxu0
        %v3057 = vadd.f32 0.0, %v3056
        %3058 = vmatmul.bf16.gmra.mxu0 %v1589
        %v3059 = vpop.f32.mrf.mxu0
        %v3060 = vpop.f32.mrf.mxu0
        %v3061 = vadd.f32 0.0, %v3060
        %3062 = vmatmul.bf16.gmra.mxu0 %v1591
        %v3063 = vpop.f32.mrf.mxu0
        %v3064 = vadd.f32 0.0, %v3063
        %v3065 = vpop.f32.mrf.mxu0
        %3066 = vmatmul.bf16.gmra.mxu0 %v2959
        %v3067 = vpop.f32.mrf.mxu0
        %v3068 = vadd.f32 0.0, %v3067
        %v3069 = vpop.f32.mrf.mxu0
        %v3070 = vadd.f32 0.0, %v3069
        %3071 = vmatmul.bf16.gmra.mxu0 %v2962
        %v3072 = vpop.f32.mrf.mxu0
        %v3073 = vpop.f32.mrf.mxu0
        %v3074 = vadd.f32 0.0, %v3073
        %3075 = vmatmul.bf16.gmra.mxu0 %v2965
        %v3076 = vpop.f32.mrf.mxu0
        %v3077 = vadd.f32 0.0, %v3076
        %v3078 = vpop.f32.mrf.mxu0
        %3079 = vdwg.mxu0
        %v3080 = vadd.f32 %v2906, %v2977
        %v3081 = vadd.f32 %v2907, %v2979
        %v3082 = vadd.f32 %v2908, %v2983
        %v3083 = vadd.f32 %v2909, %v2986
        %v3084 = vadd.f32 %v2910, %v2990
        %v3085 = vadd.f32 %v2911, %v2992
        %v3086 = vadd.f32 %v2912, %v2996
        %v3087 = vadd.f32 %v2913, %v2999
        %v3088 = vadd.f32 %v2914, %v3003
        %v3089 = vadd.f32 %v2915, %v3005
        %v3090 = vadd.f32 %v2916, %v3009
        %v3091 = vadd.f32 %v2917, %v3012
        %v3092 = vadd.f32 %v2918, %v3016
        %v3093 = vadd.f32 %v2919, %v3018
        %v3094 = vadd.f32 %v2920, %v3022
        %v3095 = vadd.f32 %v2921, %v3025
        %v3096 = vadd.f32 %v2922, %v3029
        %v3097 = vadd.f32 %v2923, %v3031
        %v3098 = vadd.f32 %v2924, %v3035
        %v3099 = vadd.f32 %v2925, %v3038
        %v3100 = vadd.f32 %v2926, %v3042
        %v3101 = vadd.f32 %v2927, %v3044
        %v3102 = vadd.f32 %v2928, %v3048
        %v3103 = vadd.f32 %v2929, %v3051
        %v3104 = vadd.f32 %v2930, %v3055
        %v3105 = vadd.f32 %v2931, %v3057
        %v3106 = vadd.f32 %v2932, %v3061
        %v3107 = vadd.f32 %v2933, %v3064
        %v3108 = vadd.f32 %v2934, %v3068
        %v3109 = vadd.f32 %v2935, %v3070
        %v3110 = vadd.f32 %v2936, %v3074
        %v3111 = vadd.f32 %v2937, %v3077
        %s3112 = scalar_lea.vmem %s3, 112
        %v3113 = vld [vmem:[%s3112] sm:$0xf]
        %v3114 = vld [vmem:[%s3112 + $0x4] sm:$0xf]
        %v3115 = vld [vmem:[%s3112 + $0x8] sm:$0xf]
        %v3116 = vld [vmem:[%s3112 + $0xc] sm:$0xf]
        %v3117 = vpack.c.b16 %v1103, %v1103
        %v3118 = vshll.u32 %v2943, 16
        %v3120 = vrot.slane %v3118, 1
        %v3121 = vsel %vm1138, %v1329, %v3120
        %v3122 = vshrl.u32 %v2943, 16
        %v3124 = vor.u32 %v3122, %v3120
        %v3125 = vshll.u32 %v2944, 16
        %v3127 = vrot.slane %v3125, 1
        %v3128 = vsel %vm1138, %v3124, %v3127
        %v3129 = vshrl.u32 %v2944, 16
        %v3131 = vor.u32 %v3129, %v3127
        %v3132 = vshll.u32 %v2945, 16
        %v3134 = vrot.slane %v3132, 1
        %v3135 = vsel %vm1138, %v3131, %v3134
        %v3136 = vshrl.u32 %v2945, 16
        %v3138 = vor.u32 %v3136, %v3134
        %v3140 = vshll.u32 %v3117, 16
        %v3142 = vrot.slane %v3140, 1
        %v3143 = vsel %vm1138, %v3138, %v3142
        %v3148 = vunpack.c.l.b16 %v3113
        %v3149 = vunpack.c.l.b16 %v3114
        %v3150 = vunpack.c.l.b16 %v3115
        %v3151 = vunpack.c.l.b16 %v3116
        %v3152 = vpack.c.b16 %v3149, %v3148
        %v3153 = vpack.c.b16 %v3151, %v3150
        %v3157 = vsel %vm1347, %v3121, 0
        %v3160 = vsel %vm1347, %v3128, 0
        %v3163 = vsel %vm1347, %v3135, 0
        %v3166 = vsel %vm1347, %v3143, 0
        %3168 = vmatpush.bf16.msra.mxu0 0
        %3169 = vmatpush.bf16.msra.mxu0 0
        %3170 = vmatpush.bf16.msra.mxu0 0
        %3171 = vmatpush.bf16.msra.mxu0 0
        %3172 = vmatpush.bf16.msra.mxu0 0
        %3173 = vmatpush.bf16.msra.mxu0 0
        %3174 = vmatpush.bf16.msra.mxu0 %v3153
        %3175 = vmatpush.bf16.msra.mxu0 %v3152
        %3176 = vmatmul.bf16.gmra.mxu0 %v1358
        %v3177 = vpop.f32.mrf.mxu0
        %v3178 = vadd.f32 0.0, %v3177
        %v3179 = vpop.f32.mrf.mxu0
        %v3180 = vadd.f32 0.0, %v3179
        %3181 = vmatmul.bf16.gmra.mxu0 %v1361
        %v3182 = vpop.f32.mrf.mxu0
        %v3183 = vpop.f32.mrf.mxu0
        %v3184 = vadd.f32 0.0, %v3183
        %3185 = vmatmul.bf16.gmra.mxu0 %v1364
        %v3186 = vpop.f32.mrf.mxu0
        %v3187 = vadd.f32 0.0, %v3186
        %v3188 = vpop.f32.mrf.mxu0
        %3189 = vmatmul.bf16.gmra.mxu0 %v1367
        %v3190 = vpop.f32.mrf.mxu0
        %v3191 = vadd.f32 0.0, %v3190
        %v3192 = vpop.f32.mrf.mxu0
        %v3193 = vadd.f32 0.0, %v3192
        %3194 = vmatmul.bf16.gmra.mxu0 %v1370
        %v3195 = vpop.f32.mrf.mxu0
        %v3196 = vpop.f32.mrf.mxu0
        %v3197 = vadd.f32 0.0, %v3196
        %3198 = vmatmul.bf16.gmra.mxu0 %v1373
        %v3199 = vpop.f32.mrf.mxu0
        %v3200 = vadd.f32 0.0, %v3199
        %v3201 = vpop.f32.mrf.mxu0
        %3202 = vmatmul.bf16.gmra.mxu0 %v1376
        %v3203 = vpop.f32.mrf.mxu0
        %v3204 = vadd.f32 0.0, %v3203
        %v3205 = vpop.f32.mrf.mxu0
        %v3206 = vadd.f32 0.0, %v3205
        %3207 = vmatmul.bf16.gmra.mxu0 %v1379
        %v3208 = vpop.f32.mrf.mxu0
        %v3209 = vpop.f32.mrf.mxu0
        %v3210 = vadd.f32 0.0, %v3209
        %3211 = vmatmul.bf16.gmra.mxu0 %v1382
        %v3212 = vpop.f32.mrf.mxu0
        %v3213 = vadd.f32 0.0, %v3212
        %v3214 = vpop.f32.mrf.mxu0
        %3215 = vmatmul.bf16.gmra.mxu0 %v1385
        %v3216 = vpop.f32.mrf.mxu0
        %v3217 = vadd.f32 0.0, %v3216
        %v3218 = vpop.f32.mrf.mxu0
        %v3219 = vadd.f32 0.0, %v3218
        %3220 = vmatmul.bf16.gmra.mxu0 %v1388
        %v3221 = vpop.f32.mrf.mxu0
        %v3222 = vpop.f32.mrf.mxu0
        %v3223 = vadd.f32 0.0, %v3222
        %3224 = vmatmul.bf16.gmra.mxu0 %v1391
        %v3225 = vpop.f32.mrf.mxu0
        %v3226 = vadd.f32 0.0, %v3225
        %v3227 = vpop.f32.mrf.mxu0
        %3228 = vmatmul.bf16.gmra.mxu0 %v1394
        %v3229 = vpop.f32.mrf.mxu0
        %v3230 = vadd.f32 0.0, %v3229
        %v3231 = vpop.f32.mrf.mxu0
        %v3232 = vadd.f32 0.0, %v3231
        %3233 = vmatmul.bf16.gmra.mxu0 %v1397
        %v3234 = vpop.f32.mrf.mxu0
        %v3235 = vpop.f32.mrf.mxu0
        %v3236 = vadd.f32 0.0, %v3235
        %3237 = vmatmul.bf16.gmra.mxu0 %v1400
        %v3238 = vpop.f32.mrf.mxu0
        %v3239 = vadd.f32 0.0, %v3238
        %v3240 = vpop.f32.mrf.mxu0
        %3241 = vmatmul.bf16.gmra.mxu0 %v1403
        %v3242 = vpop.f32.mrf.mxu0
        %v3243 = vadd.f32 0.0, %v3242
        %v3244 = vpop.f32.mrf.mxu0
        %v3245 = vadd.f32 0.0, %v3244
        %3246 = vmatmul.bf16.gmra.mxu0 %v1406
        %v3247 = vpop.f32.mrf.mxu0
        %v3248 = vpop.f32.mrf.mxu0
        %v3249 = vadd.f32 0.0, %v3248
        %3250 = vmatmul.bf16.gmra.mxu0 %v1409
        %v3251 = vpop.f32.mrf.mxu0
        %v3252 = vadd.f32 0.0, %v3251
        %v3253 = vpop.f32.mrf.mxu0
        %3254 = vmatmul.bf16.gmra.mxu0 %v1412
        %v3255 = vpop.f32.mrf.mxu0
        %v3256 = vadd.f32 0.0, %v3255
        %v3257 = vpop.f32.mrf.mxu0
        %v3258 = vadd.f32 0.0, %v3257
        %3259 = vmatmul.bf16.gmra.mxu0 %v1415
        %v3260 = vpop.f32.mrf.mxu0
        %v3261 = vpop.f32.mrf.mxu0
        %v3262 = vadd.f32 0.0, %v3261
        %3263 = vmatmul.bf16.gmra.mxu0 %v3157
        %v3264 = vpop.f32.mrf.mxu0
        %v3265 = vadd.f32 0.0, %v3264
        %v3266 = vpop.f32.mrf.mxu0
        %3267 = vmatmul.bf16.gmra.mxu0 %v3160
        %v3268 = vpop.f32.mrf.mxu0
        %v3269 = vadd.f32 0.0, %v3268
        %v3270 = vpop.f32.mrf.mxu0
        %v3271 = vadd.f32 0.0, %v3270
        %3272 = vmatmul.bf16.gmra.mxu0 %v3163
        %v3273 = vpop.f32.mrf.mxu0
        %v3274 = vpop.f32.mrf.mxu0
        %v3275 = vadd.f32 0.0, %v3274
        %3276 = vmatmul.bf16.gmra.mxu0 %v3166
        %v3277 = vpop.f32.mrf.mxu0
        %v3278 = vadd.f32 0.0, %v3277
        %v3279 = vpop.f32.mrf.mxu0
        %3280 = vdwg.mxu0
        %v3281 = vadd.f32 %v3080, %v3178
        %v3282 = vadd.f32 %v3081, %v3180
        %v3283 = vadd.f32 %v3082, %v3184
        %v3284 = vadd.f32 %v3083, %v3187
        %v3285 = vadd.f32 %v3084, %v3191
        %v3286 = vadd.f32 %v3085, %v3193
        %v3287 = vadd.f32 %v3086, %v3197
        %v3288 = vadd.f32 %v3087, %v3200
        %v3289 = vadd.f32 %v3088, %v3204
        %v3290 = vadd.f32 %v3089, %v3206
        %v3291 = vadd.f32 %v3090, %v3210
        %v3292 = vadd.f32 %v3091, %v3213
        %v3293 = vadd.f32 %v3092, %v3217
        %v3294 = vadd.f32 %v3093, %v3219
        %v3295 = vadd.f32 %v3094, %v3223
        %v3296 = vadd.f32 %v3095, %v3226
        %v3297 = vadd.f32 %v3096, %v3230
        %v3298 = vadd.f32 %v3097, %v3232
        %v3299 = vadd.f32 %v3098, %v3236
        %v3300 = vadd.f32 %v3099, %v3239
        %v3301 = vadd.f32 %v3100, %v3243
        %v3302 = vadd.f32 %v3101, %v3245
        %v3303 = vadd.f32 %v3102, %v3249
        %v3304 = vadd.f32 %v3103, %v3252
        %v3305 = vadd.f32 %v3104, %v3256
        %v3306 = vadd.f32 %v3105, %v3258
        %v3307 = vadd.f32 %v3106, %v3262
        %v3308 = vadd.f32 %v3107, %v3265
        %v3309 = vadd.f32 %v3108, %v3269
        %v3310 = vadd.f32 %v3109, %v3271
        %v3311 = vadd.f32 %v3110, %v3275
        %v3312 = vadd.f32 %v3111, %v3278
        %s3313 = scalar_lea.vmem %s3, 128
        %v3314 = vld [vmem:[%s3313] sm:$0xf]
        %v3315 = vld [vmem:[%s3313 + $0x4] sm:$0xf]
        %v3316 = vld [vmem:[%s3313 + $0x8] sm:$0xf]
        %v3317 = vld [vmem:[%s3313 + $0xc] sm:$0xf]
        %v3318 = vrot.slane %v2943, 1
        %v3319 = vsel %vm1711, %v1757, %v3318
        %v3320 = vrot.slane %v2944, 1
        %v3321 = vsel %vm1711, %v3318, %v3320
        %v3322 = vrot.slane %v2945, 1
        %v3323 = vsel %vm1711, %v3320, %v3322
        %v3324 = vrot.slane %v3117, 1
        %v3325 = vsel %vm1711, %v3322, %v3324
        %v3330 = vunpack.c.l.b16 %v3314
        %v3331 = vunpack.c.l.b16 %v3315
        %v3332 = vunpack.c.l.b16 %v3316
        %v3333 = vunpack.c.l.b16 %v3317
        %v3334 = vpack.c.b16 %v3331, %v3330
        %v3335 = vpack.c.b16 %v3333, %v3332
        %v3339 = vsel %vm1347, %v3319, 0
        %v3342 = vsel %vm1347, %v3321, 0
        %v3345 = vsel %vm1347, %v3323, 0
        %v3348 = vsel %vm1347, %v3325, 0
        %3350 = vmatpush.bf16.msra.mxu0 0
        %3351 = vmatpush.bf16.msra.mxu0 0
        %3352 = vmatpush.bf16.msra.mxu0 0
        %3353 = vmatpush.bf16.msra.mxu0 0
        %3354 = vmatpush.bf16.msra.mxu0 0
        %3355 = vmatpush.bf16.msra.mxu0 0
        %3356 = vmatpush.bf16.msra.mxu0 %v3335
        %3357 = vmatpush.bf16.msra.mxu0 %v3334
        %3358 = vmatmul.bf16.gmra.mxu0 %v1783
        %v3359 = vpop.f32.mrf.mxu0
        %v3360 = vadd.f32 0.0, %v3359
        %v3361 = vpop.f32.mrf.mxu0
        %v3362 = vadd.f32 0.0, %v3361
        %3363 = vmatmul.bf16.gmra.mxu0 %v1786
        %v3364 = vpop.f32.mrf.mxu0
        %v3365 = vpop.f32.mrf.mxu0
        %v3366 = vadd.f32 0.0, %v3365
        %3367 = vmatmul.bf16.gmra.mxu0 %v1789
        %v3368 = vpop.f32.mrf.mxu0
        %v3369 = vadd.f32 0.0, %v3368
        %v3370 = vpop.f32.mrf.mxu0
        %3371 = vmatmul.bf16.gmra.mxu0 %v1792
        %v3372 = vpop.f32.mrf.mxu0
        %v3373 = vadd.f32 0.0, %v3372
        %v3374 = vpop.f32.mrf.mxu0
        %v3375 = vadd.f32 0.0, %v3374
        %3376 = vmatmul.bf16.gmra.mxu0 %v1795
        %v3377 = vpop.f32.mrf.mxu0
        %v3378 = vpop.f32.mrf.mxu0
        %v3379 = vadd.f32 0.0, %v3378
        %3380 = vmatmul.bf16.gmra.mxu0 %v1798
        %v3381 = vpop.f32.mrf.mxu0
        %v3382 = vadd.f32 0.0, %v3381
        %v3383 = vpop.f32.mrf.mxu0
        %3384 = vmatmul.bf16.gmra.mxu0 %v1801
        %v3385 = vpop.f32.mrf.mxu0
        %v3386 = vadd.f32 0.0, %v3385
        %v3387 = vpop.f32.mrf.mxu0
        %v3388 = vadd.f32 0.0, %v3387
        %3389 = vmatmul.bf16.gmra.mxu0 %v1804
        %v3390 = vpop.f32.mrf.mxu0
        %v3391 = vpop.f32.mrf.mxu0
        %v3392 = vadd.f32 0.0, %v3391
        %3393 = vmatmul.bf16.gmra.mxu0 %v1807
        %v3394 = vpop.f32.mrf.mxu0
        %v3395 = vadd.f32 0.0, %v3394
        %v3396 = vpop.f32.mrf.mxu0
        %3397 = vmatmul.bf16.gmra.mxu0 %v1810
        %v3398 = vpop.f32.mrf.mxu0
        %v3399 = vadd.f32 0.0, %v3398
        %v3400 = vpop.f32.mrf.mxu0
        %v3401 = vadd.f32 0.0, %v3400
        %3402 = vmatmul.bf16.gmra.mxu0 %v1813
        %v3403 = vpop.f32.mrf.mxu0
        %v3404 = vpop.f32.mrf.mxu0
        %v3405 = vadd.f32 0.0, %v3404
        %3406 = vmatmul.bf16.gmra.mxu0 %v1816
        %v3407 = vpop.f32.mrf.mxu0
        %v3408 = vadd.f32 0.0, %v3407
        %v3409 = vpop.f32.mrf.mxu0
        %3410 = vmatmul.bf16.gmra.mxu0 %v1819
        %v3411 = vpop.f32.mrf.mxu0
        %v3412 = vadd.f32 0.0, %v3411
        %v3413 = vpop.f32.mrf.mxu0
        %v3414 = vadd.f32 0.0, %v3413
        %3415 = vmatmul.bf16.gmra.mxu0 %v1822
        %v3416 = vpop.f32.mrf.mxu0
        %v3417 = vpop.f32.mrf.mxu0
        %v3418 = vadd.f32 0.0, %v3417
        %3419 = vmatmul.bf16.gmra.mxu0 %v1825
        %v3420 = vpop.f32.mrf.mxu0
        %v3421 = vadd.f32 0.0, %v3420
        %v3422 = vpop.f32.mrf.mxu0
        %3423 = vmatmul.bf16.gmra.mxu0 %v1828
        %v3424 = vpop.f32.mrf.mxu0
        %v3425 = vadd.f32 0.0, %v3424
        %v3426 = vpop.f32.mrf.mxu0
        %v3427 = vadd.f32 0.0, %v3426
        %3428 = vmatmul.bf16.gmra.mxu0 %v1831
        %v3429 = vpop.f32.mrf.mxu0
        %v3430 = vpop.f32.mrf.mxu0
        %v3431 = vadd.f32 0.0, %v3430
        %3432 = vmatmul.bf16.gmra.mxu0 %v1834
        %v3433 = vpop.f32.mrf.mxu0
        %v3434 = vadd.f32 0.0, %v3433
        %v3435 = vpop.f32.mrf.mxu0
        %3436 = vmatmul.bf16.gmra.mxu0 %v1837
        %v3437 = vpop.f32.mrf.mxu0
        %v3438 = vadd.f32 0.0, %v3437
        %v3439 = vpop.f32.mrf.mxu0
        %v3440 = vadd.f32 0.0, %v3439
        %3441 = vmatmul.bf16.gmra.mxu0 %v1840
        %v3442 = vpop.f32.mrf.mxu0
        %v3443 = vpop.f32.mrf.mxu0
        %v3444 = vadd.f32 0.0, %v3443
        %3445 = vmatmul.bf16.gmra.mxu0 %v3339
        %v3446 = vpop.f32.mrf.mxu0
        %v3447 = vadd.f32 0.0, %v3446
        %v3448 = vpop.f32.mrf.mxu0
        %3449 = vmatmul.bf16.gmra.mxu0 %v3342
        %v3450 = vpop.f32.mrf.mxu0
        %v3451 = vadd.f32 0.0, %v3450
        %v3452 = vpop.f32.mrf.mxu0
        %v3453 = vadd.f32 0.0, %v3452
        %3454 = vmatmul.bf16.gmra.mxu0 %v3345
        %v3455 = vpop.f32.mrf.mxu0
        %v3456 = vpop.f32.mrf.mxu0
        %v3457 = vadd.f32 0.0, %v3456
        %3458 = vmatmul.bf16.gmra.mxu0 %v3348
        %v3459 = vpop.f32.mrf.mxu0
        %v3460 = vadd.f32 0.0, %v3459
        %v3461 = vpop.f32.mrf.mxu0
        %3462 = vdwg.mxu0
        %v3463 = vadd.f32 %v3281, %v3360
        %v3464 = vadd.f32 %v3282, %v3362
        %v3465 = vadd.f32 %v3283, %v3366
        %v3466 = vadd.f32 %v3284, %v3369
        %v3467 = vadd.f32 %v3285, %v3373
        %v3468 = vadd.f32 %v3286, %v3375
        %v3469 = vadd.f32 %v3287, %v3379
        %v3470 = vadd.f32 %v3288, %v3382
        %v3471 = vadd.f32 %v3289, %v3386
        %v3472 = vadd.f32 %v3290, %v3388
        %v3473 = vadd.f32 %v3291, %v3392
        %v3474 = vadd.f32 %v3292, %v3395
        %v3475 = vadd.f32 %v3293, %v3399
        %v3476 = vadd.f32 %v3294, %v3401
        %v3477 = vadd.f32 %v3295, %v3405
        %v3478 = vadd.f32 %v3296, %v3408
        %v3479 = vadd.f32 %v3297, %v3412
        %v3480 = vadd.f32 %v3298, %v3414
        %v3481 = vadd.f32 %v3299, %v3418
        %v3482 = vadd.f32 %v3300, %v3421
        %v3483 = vadd.f32 %v3301, %v3425
        %v3484 = vadd.f32 %v3302, %v3427
        %v3485 = vadd.f32 %v3303, %v3431
        %v3486 = vadd.f32 %v3304, %v3434
        %v3487 = vadd.f32 %v3305, %v3438
        %v3488 = vadd.f32 %v3306, %v3440
        %v3489 = vadd.f32 %v3307, %v3444
        %v3490 = vadd.f32 %v3308, %v3447
        %v3491 = vadd.f32 %v3309, %v3451
        %v3492 = vadd.f32 %v3310, %v3453
        %v3493 = vadd.f32 %v3311, %v3457
        %v3494 = vadd.f32 %v3312, %v3460
        %v3495 = vld [vmem:[%s4] sm:$0x1]
        %v3497 = vperm.slane %v3495, 0
        %v3499 = vadd.f32 %v3463, %v3497
        %v3500 = vadd.f32 %v3464, %v3497
        %v3501 = vadd.f32 %v3465, %v3497
        %v3502 = vadd.f32 %v3466, %v3497
        %v3503 = vadd.f32 %v3467, %v3497
        %v3504 = vadd.f32 %v3468, %v3497
        %v3505 = vadd.f32 %v3469, %v3497
        %v3506 = vadd.f32 %v3470, %v3497
        %v3507 = vadd.f32 %v3471, %v3497
        %v3508 = vadd.f32 %v3472, %v3497
        %v3509 = vadd.f32 %v3473, %v3497
        %v3510 = vadd.f32 %v3474, %v3497
        %v3511 = vadd.f32 %v3475, %v3497
        %v3512 = vadd.f32 %v3476, %v3497
        %v3513 = vadd.f32 %v3477, %v3497
        %v3514 = vadd.f32 %v3478, %v3497
        %v3515 = vadd.f32 %v3479, %v3497
        %v3516 = vadd.f32 %v3480, %v3497
        %v3517 = vadd.f32 %v3481, %v3497
        %v3518 = vadd.f32 %v3482, %v3497
        %v3519 = vadd.f32 %v3483, %v3497
        %v3520 = vadd.f32 %v3484, %v3497
        %v3521 = vadd.f32 %v3485, %v3497
        %v3522 = vadd.f32 %v3486, %v3497
        %v3523 = vadd.f32 %v3487, %v3497
        %v3524 = vadd.f32 %v3488, %v3497
        %v3525 = vadd.f32 %v3489, %v3497
        %v3526 = vadd.f32 %v3490, %v3497
        %v3527 = vadd.f32 %v3491, %v3497
        %v3528 = vadd.f32 %v3492, %v3497
        %v3529 = vadd.f32 %v3493, %v3497
        %v3530 = vadd.f32 %v3494, %v3497
        %v3531 = vmax.f32 %v3499, 0.0
        %v3532 = vmax.f32 %v3500, 0.0
        %v3533 = vmax.f32 %v3501, 0.0
        %v3534 = vmax.f32 %v3502, 0.0
        %v3535 = vmax.f32 %v3503, 0.0
        %v3536 = vmax.f32 %v3504, 0.0
        %v3537 = vmax.f32 %v3505, 0.0
        %v3538 = vmax.f32 %v3506, 0.0
        %v3539 = vmax.f32 %v3507, 0.0
        %v3540 = vmax.f32 %v3508, 0.0
        %v3541 = vmax.f32 %v3509, 0.0
        %v3542 = vmax.f32 %v3510, 0.0
        %v3543 = vmax.f32 %v3511, 0.0
        %v3544 = vmax.f32 %v3512, 0.0
        %v3545 = vmax.f32 %v3513, 0.0
        %v3546 = vmax.f32 %v3514, 0.0
        %v3547 = vmax.f32 %v3515, 0.0
        %v3548 = vmax.f32 %v3516, 0.0
        %v3549 = vmax.f32 %v3517, 0.0
        %v3550 = vmax.f32 %v3518, 0.0
        %v3551 = vmax.f32 %v3519, 0.0
        %v3552 = vmax.f32 %v3520, 0.0
        %v3553 = vmax.f32 %v3521, 0.0
        %v3554 = vmax.f32 %v3522, 0.0
        %v3555 = vmax.f32 %v3523, 0.0
        %v3556 = vmax.f32 %v3524, 0.0
        %v3557 = vmax.f32 %v3525, 0.0
        %v3558 = vmax.f32 %v3526, 0.0
        %v3559 = vmax.f32 %v3527, 0.0
        %v3560 = vmax.f32 %v3528, 0.0
        %v3561 = vmax.f32 %v3529, 0.0
        %v3562 = vmax.f32 %v3530, 0.0
        %v3563 = vpack.c.bf16 %v3531, %v3531
        %v3564 = vpack.c.bf16 %v3532, %v3532
        %v3565 = vpack.c.bf16 %v3533, %v3533
        %v3566 = vpack.c.bf16 %v3534, %v3534
        %v3567 = vpack.c.bf16 %v3535, %v3535
        %v3568 = vpack.c.bf16 %v3536, %v3536
        %v3569 = vpack.c.bf16 %v3537, %v3537
        %v3570 = vpack.c.bf16 %v3538, %v3538
        %v3571 = vpack.c.bf16 %v3539, %v3539
        %v3572 = vpack.c.bf16 %v3540, %v3540
        %v3573 = vpack.c.bf16 %v3541, %v3541
        %v3574 = vpack.c.bf16 %v3542, %v3542
        %v3575 = vpack.c.bf16 %v3543, %v3543
        %v3576 = vpack.c.bf16 %v3544, %v3544
        %v3577 = vpack.c.bf16 %v3545, %v3545
        %v3578 = vpack.c.bf16 %v3546, %v3546
        %v3579 = vpack.c.bf16 %v3547, %v3547
        %v3580 = vpack.c.bf16 %v3548, %v3548
        %v3581 = vpack.c.bf16 %v3549, %v3549
        %v3582 = vpack.c.bf16 %v3550, %v3550
        %v3583 = vpack.c.bf16 %v3551, %v3551
        %v3584 = vpack.c.bf16 %v3552, %v3552
        %v3585 = vpack.c.bf16 %v3553, %v3553
        %v3586 = vpack.c.bf16 %v3554, %v3554
        %v3587 = vpack.c.bf16 %v3555, %v3555
        %v3588 = vpack.c.bf16 %v3556, %v3556
        %v3589 = vpack.c.bf16 %v3557, %v3557
        %v3590 = vpack.c.bf16 %v3558, %v3558
        %v3591 = vpack.c.bf16 %v3559, %v3559
        %v3592 = vpack.c.bf16 %v3560, %v3560
        %v3593 = vpack.c.bf16 %v3561, %v3561
        %v3594 = vpack.c.bf16 %v3562, %v3562
        %v3595 = vld [vmem:[%s5] sm:$0xf]
        %v3596 = vld [vmem:[%s5 + $0x4] sm:$0xf]
        %v3597 = vld [vmem:[%s5 + $0x8] sm:$0xf]
        %v3598 = vld [vmem:[%s5 + $0xc] sm:$0xf]
        %v3599 = vld [vmem:[%s6] sm:$0x1]
        %v3601 = vperm.slane %v3599, 0
        %v3635 = vunpack.c.l.b16 %v3563
        %v3636 = vunpack.c.l.b16 %v3564
        %v3637 = vunpack.c.l.b16 %v3565
        %v3638 = vunpack.c.l.b16 %v3566
        %v3639 = vunpack.c.l.b16 %v3567
        %v3640 = vunpack.c.l.b16 %v3568
        %v3641 = vunpack.c.l.b16 %v3569
        %v3642 = vunpack.c.l.b16 %v3570
        %v3643 = vunpack.c.l.b16 %v3571
        %v3644 = vunpack.c.l.b16 %v3572
        %v3645 = vunpack.c.l.b16 %v3573
        %v3646 = vunpack.c.l.b16 %v3574
        %v3647 = vunpack.c.l.b16 %v3575
        %v3648 = vunpack.c.l.b16 %v3576
        %v3649 = vunpack.c.l.b16 %v3577
        %v3650 = vunpack.c.l.b16 %v3578
        %v3651 = vunpack.c.l.b16 %v3579
        %v3652 = vunpack.c.l.b16 %v3580
        %v3653 = vunpack.c.l.b16 %v3581
        %v3654 = vunpack.c.l.b16 %v3582
        %v3655 = vunpack.c.l.b16 %v3583
        %v3656 = vunpack.c.l.b16 %v3584
        %v3657 = vunpack.c.l.b16 %v3585
        %v3658 = vunpack.c.l.b16 %v3586
        %v3659 = vunpack.c.l.b16 %v3587
        %v3660 = vunpack.c.l.b16 %v3588
        %v3661 = vunpack.c.l.b16 %v3589
        %v3662 = vunpack.c.l.b16 %v3590
        %v3663 = vunpack.c.l.b16 %v3591
        %v3664 = vunpack.c.l.b16 %v3592
        %v3665 = vunpack.c.l.b16 %v3593
        %v3666 = vunpack.c.l.b16 %v3594
        %v3667 = vpack.c.b16 %v3636, %v3635
        %v3668 = vpack.c.b16 %v3638, %v3637
        %v3669 = vpack.c.b16 %v3640, %v3639
        %v3670 = vpack.c.b16 %v3642, %v3641
        %v3671 = vpack.c.b16 %v3644, %v3643
        %v3672 = vpack.c.b16 %v3646, %v3645
        %v3673 = vpack.c.b16 %v3648, %v3647
        %v3674 = vpack.c.b16 %v3650, %v3649
        %v3675 = vpack.c.b16 %v3652, %v3651
        %v3676 = vpack.c.b16 %v3654, %v3653
        %v3677 = vpack.c.b16 %v3656, %v3655
        %v3678 = vpack.c.b16 %v3658, %v3657
        %v3679 = vpack.c.b16 %v3660, %v3659
        %v3680 = vpack.c.b16 %v3662, %v3661
        %v3681 = vpack.c.b16 %v3664, %v3663
        %v3682 = vpack.c.b16 %v3666, %v3665
        %v3687 = vunpack.c.l.b16 %v3595
        %v3688 = vunpack.c.l.b16 %v3596
        %v3689 = vunpack.c.l.b16 %v3597
        %v3690 = vunpack.c.l.b16 %v3598
        %v3691 = vpack.c.b16 %v3688, %v3687
        %v3692 = vpack.c.b16 %v3690, %v3689
        %v3696 = vsel %vm1347, %v3667, 0
        %v3699 = vsel %vm1347, %v3668, 0
        %v3702 = vsel %vm1347, %v3669, 0
        %v3705 = vsel %vm1347, %v3670, 0
        %v3708 = vsel %vm1347, %v3671, 0
        %v3711 = vsel %vm1347, %v3672, 0
        %v3714 = vsel %vm1347, %v3673, 0
        %v3717 = vsel %vm1347, %v3674, 0
        %v3720 = vsel %vm1347, %v3675, 0
        %v3723 = vsel %vm1347, %v3676, 0
        %v3726 = vsel %vm1347, %v3677, 0
        %v3729 = vsel %vm1347, %v3678, 0
        %v3732 = vsel %vm1347, %v3679, 0
        %v3735 = vsel %vm1347, %v3680, 0
        %v3738 = vsel %vm1347, %v3681, 0
        %v3741 = vsel %vm1347, %v3682, 0
        %3743 = vmatpush.bf16.msra.mxu0 0
        %3744 = vmatpush.bf16.msra.mxu0 0
        %3745 = vmatpush.bf16.msra.mxu0 0
        %3746 = vmatpush.bf16.msra.mxu0 0
        %3747 = vmatpush.bf16.msra.mxu0 0
        %3748 = vmatpush.bf16.msra.mxu0 0
        %3749 = vmatpush.bf16.msra.mxu0 %v3692
        %3750 = vmatpush.bf16.msra.mxu0 %v3691
        %3751 = vmatmul.bf16.gmra.mxu0 %v3696
        %v3752 = vpop.f32.mrf.mxu0
        %v3753 = vadd.f32 %v3601, %v3752
        %v3754 = vpop.f32.mrf.mxu0
        %v3755 = vadd.f32 %v3601, %v3754
        %3756 = vmatmul.bf16.gmra.mxu0 %v3699
        %v3757 = vpop.f32.mrf.mxu0
        %v3758 = vadd.f32 %v3601, %v3757
        %v3759 = vpop.f32.mrf.mxu0
        %v3760 = vadd.f32 %v3601, %v3759
        %3761 = vmatmul.bf16.gmra.mxu0 %v3702
        %v3762 = vpop.f32.mrf.mxu0
        %v3763 = vadd.f32 %v3601, %v3762
        %v3764 = vpop.f32.mrf.mxu0
        %v3765 = vadd.f32 %v3601, %v3764
        %3766 = vmatmul.bf16.gmra.mxu0 %v3705
        %v3767 = vpop.f32.mrf.mxu0
        %v3768 = vadd.f32 %v3601, %v3767
        %v3769 = vpop.f32.mrf.mxu0
        %v3770 = vadd.f32 %v3601, %v3769
        %3771 = vmatmul.bf16.gmra.mxu0 %v3708
        %v3772 = vpop.f32.mrf.mxu0
        %v3773 = vadd.f32 %v3601, %v3772
        %v3774 = vpop.f32.mrf.mxu0
        %v3775 = vadd.f32 %v3601, %v3774
        %3776 = vmatmul.bf16.gmra.mxu0 %v3711
        %v3777 = vpop.f32.mrf.mxu0
        %v3778 = vadd.f32 %v3601, %v3777
        %v3779 = vpop.f32.mrf.mxu0
        %v3780 = vadd.f32 %v3601, %v3779
        %3781 = vmatmul.bf16.gmra.mxu0 %v3714
        %v3782 = vpop.f32.mrf.mxu0
        %v3783 = vadd.f32 %v3601, %v3782
        %v3784 = vpop.f32.mrf.mxu0
        %v3785 = vadd.f32 %v3601, %v3784
        %3786 = vmatmul.bf16.gmra.mxu0 %v3717
        %v3787 = vpop.f32.mrf.mxu0
        %v3788 = vadd.f32 %v3601, %v3787
        %v3789 = vpop.f32.mrf.mxu0
        %v3790 = vadd.f32 %v3601, %v3789
        %3791 = vmatmul.bf16.gmra.mxu0 %v3720
        %v3792 = vpop.f32.mrf.mxu0
        %v3793 = vadd.f32 %v3601, %v3792
        %v3794 = vpop.f32.mrf.mxu0
        %v3795 = vadd.f32 %v3601, %v3794
        %3796 = vmatmul.bf16.gmra.mxu0 %v3723
        %v3797 = vpop.f32.mrf.mxu0
        %v3798 = vadd.f32 %v3601, %v3797
        %v3799 = vpop.f32.mrf.mxu0
        %v3800 = vadd.f32 %v3601, %v3799
        %3801 = vmatmul.bf16.gmra.mxu0 %v3726
        %v3802 = vpop.f32.mrf.mxu0
        %v3803 = vadd.f32 %v3601, %v3802
        %v3804 = vpop.f32.mrf.mxu0
        %v3805 = vadd.f32 %v3601, %v3804
        %3806 = vmatmul.bf16.gmra.mxu0 %v3729
        %v3807 = vpop.f32.mrf.mxu0
        %v3808 = vadd.f32 %v3601, %v3807
        %v3809 = vpop.f32.mrf.mxu0
        %v3810 = vadd.f32 %v3601, %v3809
        %3811 = vmatmul.bf16.gmra.mxu0 %v3732
        %v3812 = vpop.f32.mrf.mxu0
        %v3813 = vadd.f32 %v3601, %v3812
        %v3814 = vpop.f32.mrf.mxu0
        %v3815 = vadd.f32 %v3601, %v3814
        %3816 = vmatmul.bf16.gmra.mxu0 %v3735
        %v3817 = vpop.f32.mrf.mxu0
        %v3818 = vadd.f32 %v3601, %v3817
        %v3819 = vpop.f32.mrf.mxu0
        %v3820 = vadd.f32 %v3601, %v3819
        %3821 = vmatmul.bf16.gmra.mxu0 %v3738
        %v3822 = vpop.f32.mrf.mxu0
        %v3823 = vadd.f32 %v3601, %v3822
        %v3824 = vpop.f32.mrf.mxu0
        %v3825 = vadd.f32 %v3601, %v3824
        %3826 = vmatmul.bf16.gmra.mxu0 %v3741
        %v3827 = vpop.f32.mrf.mxu0
        %v3828 = vadd.f32 %v3601, %v3827
        %v3829 = vpop.f32.mrf.mxu0
        %v3830 = vadd.f32 %v3601, %v3829
        %3831 = vdwg.mxu0
        %v3832 = vadd.f32 %v3753, %v296
        %v3833 = vadd.f32 %v3755, %v297
        %v3834 = vadd.f32 %v3758, %v298
        %v3835 = vadd.f32 %v3760, %v299
        %v3836 = vadd.f32 %v3763, %v300
        %v3837 = vadd.f32 %v3765, %v301
        %v3838 = vadd.f32 %v3768, %v302
        %v3839 = vadd.f32 %v3770, %v303
        %v3840 = vadd.f32 %v3773, %v304
        %v3841 = vadd.f32 %v3775, %v305
        %v3842 = vadd.f32 %v3778, %v306
        %v3843 = vadd.f32 %v3780, %v307
        %v3844 = vadd.f32 %v3783, %v308
        %v3845 = vadd.f32 %v3785, %v309
        %v3846 = vadd.f32 %v3788, %v310
        %v3847 = vadd.f32 %v3790, %v311
        %v3848 = vadd.f32 %v3793, %v312
        %v3849 = vadd.f32 %v3795, %v313
        %v3850 = vadd.f32 %v3798, %v314
        %v3851 = vadd.f32 %v3800, %v315
        %v3852 = vadd.f32 %v3803, %v316
        %v3853 = vadd.f32 %v3805, %v317
        %v3854 = vadd.f32 %v3808, %v318
        %v3855 = vadd.f32 %v3810, %v319
        %v3856 = vadd.f32 %v3813, %v320
        %v3857 = vadd.f32 %v3815, %v321
        %v3858 = vadd.f32 %v3818, %v322
        %v3859 = vadd.f32 %v3820, %v323
        %v3860 = vadd.f32 %v3823, %v324
        %v3861 = vadd.f32 %v3825, %v325
        %v3862 = vadd.f32 %v3828, %v326
        %v3863 = vadd.f32 %v3830, %v327
        %v3864 = vmax.f32 %v3832, 0.0
        %v3865 = vmax.f32 %v3833, 0.0
        %v3866 = vmax.f32 %v3834, 0.0
        %v3867 = vmax.f32 %v3835, 0.0
        %v3868 = vmax.f32 %v3836, 0.0
        %v3869 = vmax.f32 %v3837, 0.0
        %v3870 = vmax.f32 %v3838, 0.0
        %v3871 = vmax.f32 %v3839, 0.0
        %v3872 = vmax.f32 %v3840, 0.0
        %v3873 = vmax.f32 %v3841, 0.0
        %v3874 = vmax.f32 %v3842, 0.0
        %v3875 = vmax.f32 %v3843, 0.0
        %v3876 = vmax.f32 %v3844, 0.0
        %v3877 = vmax.f32 %v3845, 0.0
        %v3878 = vmax.f32 %v3846, 0.0
        %v3879 = vmax.f32 %v3847, 0.0
        %v3880 = vmax.f32 %v3848, 0.0
        %v3881 = vmax.f32 %v3849, 0.0
        %v3882 = vmax.f32 %v3850, 0.0
        %v3883 = vmax.f32 %v3851, 0.0
        %v3884 = vmax.f32 %v3852, 0.0
        %v3885 = vmax.f32 %v3853, 0.0
        %v3886 = vmax.f32 %v3854, 0.0
        %v3887 = vmax.f32 %v3855, 0.0
        %v3888 = vmax.f32 %v3856, 0.0
        %v3889 = vmax.f32 %v3857, 0.0
        %v3890 = vmax.f32 %v3858, 0.0
        %v3891 = vmax.f32 %v3859, 0.0
        %v3892 = vmax.f32 %v3860, 0.0
        %v3893 = vmax.f32 %v3861, 0.0
        %v3894 = vmax.f32 %v3862, 0.0
        %v3895 = vmax.f32 %v3863, 0.0
        %3896 = vst [vmem:[%s285] sm:$0xff] %v3864
        %3897 = vst [vmem:[%s285 + $0x8] sm:$0xff] %v3865
        %3898 = vst [vmem:[%s285 + $0x10] sm:$0xff] %v3866
        %3899 = vst [vmem:[%s285 + $0x18] sm:$0xff] %v3867
        %3900 = vst [vmem:[%s285 + $0x20] sm:$0xff] %v3868
        %3901 = vst [vmem:[%s285 + $0x28] sm:$0xff] %v3869
        %3902 = vst [vmem:[%s285 + $0x30] sm:$0xff] %v3870
        %3903 = vst [vmem:[%s285 + $0x38] sm:$0xff] %v3871
        %3904 = vst [vmem:[%s285 + $0x40] sm:$0xff] %v3872
        %3905 = vst [vmem:[%s285 + $0x48] sm:$0xff] %v3873
        %3906 = vst [vmem:[%s285 + $0x50] sm:$0xff] %v3874
        %3907 = vst [vmem:[%s285 + $0x58] sm:$0xff] %v3875
        %3908 = vst [vmem:[%s285 + $0x60] sm:$0xff] %v3876
        %3909 = vst [vmem:[%s285 + $0x68] sm:$0xff] %v3877
        %3910 = vst [vmem:[%s285 + $0x70] sm:$0xff] %v3878
        %3911 = vst [vmem:[%s285 + $0x78] sm:$0xff] %v3879
        %3912 = vst [vmem:[%s285 + $0x80] sm:$0xff] %v3880
        %3913 = vst [vmem:[%s285 + $0x88] sm:$0xff] %v3881
        %3914 = vst [vmem:[%s285 + $0x90] sm:$0xff] %v3882
        %3915 = vst [vmem:[%s285 + $0x98] sm:$0xff] %v3883
        %3916 = vst [vmem:[%s285 + $0xa0] sm:$0xff] %v3884
        %3917 = vst [vmem:[%s285 + $0xa8] sm:$0xff] %v3885
        %3918 = vst [vmem:[%s285 + $0xb0] sm:$0xff] %v3886
        %3919 = vst [vmem:[%s285 + $0xb8] sm:$0xff] %v3887
        %3920 = vst [vmem:[%s285 + $0xc0] sm:$0xff] %v3888
        %3921 = vst [vmem:[%s285 + $0xc8] sm:$0xff] %v3889
        %3922 = vst [vmem:[%s285 + $0xd0] sm:$0xff] %v3890
        %3923 = vst [vmem:[%s285 + $0xd8] sm:$0xff] %v3891
        %3924 = vst [vmem:[%s285 + $0xe0] sm:$0xff] %v3892
        %3925 = vst [vmem:[%s285 + $0xe8] sm:$0xff] %v3893
        %3926 = vst [vmem:[%s285 + $0xf0] sm:$0xff] %v3894
        %3927 = vst [vmem:[%s285 + $0xf8] sm:$0xff] %v3895
        %s3928 = sand.u32 %s195, 1
        %s3929 = scalar_lea.sflag [#allocation3], %s3928
        %s3930 = sand.u32 %s195, 1
        %s3931 = smul.addr %s3930, 256
        %s3932 = scalar_lea.vmem [#allocation2], %s3931
        // Predicated region
        $region49: #{bottleneck_forward.1} parent=47 // pred_check
          %p3933 = pneg %p205
        $region50: #{bottleneck_forward.1} parent=47 // pred_check_branch
          %3935 = sbr.rel (%p3933) target = $region52
        $region51: #{bottleneck_forward.1} parent=47 // pred_region
          %s3936 = smul.u32 16, %s26
          %3938 = vsyncadd %s3929, 0
          %s3939 = smul.addr %s3936, 2
          %s3940 = smul.addr %s25, 32
          %s3941 = sadd.s32 %s3939, %s3940
          %s3942 = smul.addr %s3941, 8
          %s3943 = scalar_lea.hbm %s7, %s3942
          %s3944 = sshll.u32 %s3932, 4
          %s3945 = int_to_ptr.vmem [resolvable:$true] %s3944
          %s3946 = sshll.u32 %s3943, 4
          %s3947 = int_to_ptr.hbm [resolvable:$true] %s3946
          %3952 = dma.vmem_to_hbm [thread:$0]  %s3945, 4096, %s3947, %s3929, 128, 128, 8
        $region52: #{bottleneck_forward.1} parent=47 // pred_fallthru
          _
      $region48: #{bottleneck_forward.1} parent=5 // pred_fallthru
        _
      %p3953 = scmp.le.s32.totalorder 2, %s16
      // Predicated region
      $region53: #{bottleneck_forward.1} parent=5 // pred_check
        %p3954 = pneg %p3953
      $region54: #{bottleneck_forward.1} parent=5 // pred_check_branch
        %3956 = sbr.rel (%p3954) target = $region56
      $region55: #{bottleneck_forward.1} parent=5 // pred_region
        %s3957 = ssub.s32 %s16, 2
        // Predicated region
        $region57: #{bottleneck_forward.1} parent=55 // pred_check
          %p3958 = pneg %p211
        $region58: #{bottleneck_forward.1} parent=55 // pred_check_branch
          %3960 = sbr.rel (%p3958) target = $region60
        $region59: #{bottleneck_forward.1} parent=55 // pred_region
          %s3961 = sand.u32 %s196, 1
          %s3962 = scalar_lea.sflag [#allocation3], %s3961
          %s3963 = sand.u32 %s196, 1
          %s3964 = smul.addr %s3963, 256
          %s3965 = scalar_lea.vmem [#allocation2], %s3964
          %3967 = dma.done %s3962, 4096
        $region60: #{bottleneck_forward.1} parent=55 // pred_fallthru
          _
      $region56: #{bottleneck_forward.1} parent=5 // pred_fallthru
        _
    $region6: #{bottleneck_forward.1} parent=1 // loop_footer
      %s20 = sadd.s32 1, %s16
    $region7: #{bottleneck_forward.1} parent=1 // loop_footer_branch
      %15 = sbr.rel target = $region3
    $region8: #{bottleneck_forward.1} parent=1 // loop_exit
      _
    %3968 = vsyncpa [#allocation3], 1
    %s3969 = scalar_lea.sflag [#allocation3], 1
    %3970 = vsyncpa %s3969, 1

</llo_original>
